<compile_context>
chip_gen: v7x
topology: tpu7x:2x2x1
jax: 0.10.0
libtpu: 0.0.40
codegen_flags: <defaults>
</compile_context>

<pallas_src>
import functools

import jax
import jax.numpy as jnp
from jax.experimental import pallas as pl
from jax.experimental.pallas import tpu as pltpu

NN_INPUTS = 4            # nn_inputs global from train.py (stacked frames)
HIDDEN_LAYER_1 = 16
HIDDEN_LAYER_2 = 32
HIDDEN_LAYER_3 = 32
KERNEL_SIZE = 5
STRIDE = 2
BN_EPS = 1e-5
SUBLANE = 8              # f32 sublane tile height
LANE = 128


def conv2d_size_out(size, kernel_size=KERNEL_SIZE, stride=STRIDE):
    return (size - (kernel_size - 1) - 1) // stride + 1


def _round_up(x, m):
    return ((x + m - 1) // m) * m


# ---------------- fused Pallas kernel ----------------

def _fused_dqn_kernel(n_real, npad,
                      p0_ref, w1e_ref, w2e_ref, w3e_ref, hwe_ref,
                      g1_ref, be1_ref, g2_ref, be2_ref, g3_ref, be3_ref,
                      hb_ref, m1_ref, m2_ref, m3_ref, out_ref):
    k = KERNEL_SIZE

    def channel_fold(v, ow, cout):
        # (1, ow*cout) -> (1, cout): sum over the ow column groups
        acc = v[:, :cout]
        for g in range(1, ow):
            acc = acc + v[:, g * cout:(g + 1) * cout]
        return acc

    def channel_tile(v, ow):
        # (1, cout) -> (1, ow*cout) by lane concatenation
        return v if ow == 1 else jnp.concatenate([v] * ow, axis=1)

    def conv_bn_relu(y, we_ref, g_ref, b_ref, m_ref):
        # y: packed activation (H_in*Npad, W_in*C_in), row = h*Npad + n, col = w*Cin + c
        cout = g_ref.shape[1]
        ow = we_ref.shape[1] // cout
        hin = y.shape[0] // npad
        oh = (hin - k) // STRIDE + 1

        # im2col row gather: sublane-aligned Npad-row slices; one slab per kernel row
        # kh, lane-concatenated so the whole conv is a SINGLE MXU GEMM.
        slabs = []
        for kh in range(k):
            parts = [y[(STRIDE * i + kh) * npad:(STRIDE * i + kh) * npad + npad, :]
                     for i in range(oh)]
            slabs.append(parts[0] if oh == 1 else jnp.concatenate(parts, axis=0))
        b = jnp.concatenate(slabs, axis=1)                    # (oh*npad, k*Win*Cin)

        acc = jnp.dot(b.astype(jnp.bfloat16), we_ref[...],
                      preferred_element_type=jnp.float32)     # (oh*npad, ow*cout)

        # BatchNorm2d, training-mode batch stats (biased variance), single pass.
        # Padded batch rows of `acc` are exactly zero, so summing over ALL rows and
        # dividing by the REAL element count gives the exact batch statistics.
        count = float(n_real * oh * ow)
        s1 = channel_fold(jnp.sum(acc, axis=0, keepdims=True), ow, cout)
        s2 = channel_fold(jnp.sum(acc * acc, axis=0, keepdims=True), ow, cout)
        mean = s1 / count
        var = s2 / count - mean * mean
        scale = g_ref[...] * jax.lax.rsqrt(var + BN_EPS)      # (1, cout)
        shift = b_ref[...] - mean * scale                     # (1, cout)
        out = acc * channel_tile(scale, ow) + channel_tile(shift, ow)
        # ReLU, then zero the padded batch rows so the NEXT layer's stats stay exact.
        return jnp.maximum(out, 0.0) * m_ref[...]

    y1 = conv_bn_relu(p0_ref[...], w1e_ref, g1_ref, be1_ref, m1_ref)   # (OH1*Np, OW1*16)
    y2 = conv_bn_relu(y1, w2e_ref, g2_ref, be2_ref, m2_ref)            # (OH2*Np, OW2*32)
    y3 = conv_bn_relu(y2, w3e_ref, g3_ref, be3_ref, m3_ref)            # (OH3*Np, OW3*32)

    # Linear head, single GEMM, output padded to a 128-lane slab (lane-dense store).
    oh3 = y3.shape[0] // npad
    parts = [y3[h * npad:(h + 1) * npad, :] for h in range(oh3)]
    bh = parts[0] if oh3 == 1 else jnp.concatenate(parts, axis=1)      # (Np, OH3*OW3*32)
    out_ref[...] = jnp.dot(bh.astype(jnp.bfloat16), hwe_ref[...],
                           preferred_element_type=jnp.float32) + hb_ref[...]


# ---------------- one-time weight preprocessing (plain JAX, hoisted out of forward) ----

def expand_conv_weight(w, w_in):
    """PyTorch conv weight (Cout, Cin, K, K) -> (K*w_in*Cin, OW*Cout) bf16.

    Row block kh holds e[w*Cin + ci, j*Cout + co] = w[co, ci, kh, w - STRIDE*j]
    (zero elsewhere) so one GEMM of the lane-concatenated per-kh slabs against this
    weight produces the conv output in the packed (OH*Npad, OW*Cout) layout.
    """
    cout, cin, kk, _ = w.shape
    ow = (w_in - kk) // STRIDE + 1
    wt = jnp.transpose(w, (2, 3, 1, 0)).astype(jnp.float32)   # (kh, kw, Cin, Cout)
    e = jnp.zeros((kk, w_in * cin, ow * cout), jnp.float32)
    for j in range(ow):
        for kw in range(kk):
            col = STRIDE * j + kw
            e = e.at[:, col * cin:(col + 1) * cin,
                     j * cout:(j + 1) * cout].set(wt[:, kw])
    return e.reshape(kk * w_in * cin, ow * cout).astype(jnp.bfloat16)


def expand_head_weight(hw, oh, ow, cch, out_pad):
    """Head weight (cch*oh*ow, outputs), features in PyTorch NCHW-flatten order,
    -> (oh*ow*cch, out_pad) bf16 matching the packed activation column order."""
    outputs = hw.shape[1]
    hw4 = hw.reshape(cch, oh, ow, outputs)                    # f = c*oh*ow + h*ow + w
    e = jnp.transpose(hw4, (1, 2, 0, 3)).reshape(oh * ow * cch, outputs)
    e = jnp.pad(e, ((0, 0), (0, out_pad - outputs)))
    return e.astype(jnp.bfloat16)


def preprocess_params(params, h, w):
    """Build packed/expanded kernel weights ONCE per parameter update (hot forward
    path consumes these directly - no per-call scatter/transpose glue)."""
    ow1, oh1 = conv2d_size_out(w), conv2d_size_out(h)
    ow2, oh2 = conv2d_size_out(ow1), conv2d_size_out(oh1)
    ow3, oh3 = conv2d_size_out(ow2), conv2d_size_out(oh2)
    outputs = params["hw"].shape[1]
    out_pad = _round_up(outputs, LANE)
    return {
        "w1e": expand_conv_weight(params["w1"], w),
        "w2e": expand_conv_weight(params["w2"], ow1),
        "w3e": expand_conv_weight(params["w3"], ow2),
        "hwe": expand_head_weight(params["hw"], oh3, ow3, HIDDEN_LAYER_3, out_pad),
        "hb": jnp.pad(params["hb"], (0, out_pad - outputs)).reshape(1, out_pad)
                 .astype(jnp.float32),
        "g1": params["g1"].reshape(1, -1), "be1": params["be1"].reshape(1, -1),
        "g2": params["g2"].reshape(1, -1), "be2": params["be2"].reshape(1, -1),
        "g3": params["g3"].reshape(1, -1), "be3": params["be3"].reshape(1, -1),
    }


# ---------------- params & forward ----------------

def init_params(key, h, w, outputs):
    convw = conv2d_size_out(conv2d_size_out(conv2d_size_out(w)))
    convh = conv2d_size_out(conv2d_size_out(conv2d_size_out(h)))
    linear_in = convw * convh * HIDDEN_LAYER_3
    keys = jax.random.split(key, 5)

    def conv_w(k, cout, cin):
        fan_in = cin * KERNEL_SIZE * KERNEL_SIZE
        bound = 1.0 / (fan_in ** 0.5)
        return jax.random.uniform(k, (cout, cin, KERNEL_SIZE, KERNEL_SIZE),
                                  jnp.float32, -bound, bound)

    # NOTE: conv biases intentionally not created - a per-channel bias added before
    # BatchNorm is exactly cancelled by the BN mean subtraction (identical forward).
    w1 = conv_w(keys[0], HIDDEN_LAYER_1, NN_INPUTS)
    w2 = conv_w(keys[1], HIDDEN_LAYER_2, HIDDEN_LAYER_1)
    w3 = conv_w(keys[2], HIDDEN_LAYER_3, HIDDEN_LAYER_2)

    bound = 1.0 / (linear_in ** 0.5)
    hw = jax.random.uniform(keys[3], (linear_in, outputs), jnp.float32, -bound, bound)
    hb = jax.random.uniform(keys[4], (outputs,), jnp.float32, -bound, bound)

    return {
        "w1": w1, "g1": jnp.ones((HIDDEN_LAYER_1,), jnp.float32),
        "be1": jnp.zeros((HIDDEN_LAYER_1,), jnp.float32),
        "w2": w2, "g2": jnp.ones((HIDDEN_LAYER_2,), jnp.float32),
        "be2": jnp.zeros((HIDDEN_LAYER_2,), jnp.float32),
        "w3": w3, "g3": jnp.ones((HIDDEN_LAYER_3,), jnp.float32),
        "be3": jnp.zeros((HIDDEN_LAYER_3,), jnp.float32),
        "hw": hw, "hb": hb,
    }


def dqn_forward(prep, x, outputs):
    # x: (N, C, H, W) float32, NCHW like PyTorch
    n, c, h, w = x.shape
    npad = _round_up(max(n, 1), SUBLANE)

    ow1, oh1 = conv2d_size_out(w), conv2d_size_out(h)
    ow2, oh2 = conv2d_size_out(ow1), conv2d_size_out(oh1)
    ow3, oh3 = conv2d_size_out(ow2), conv2d_size_out(oh2)

    # Zero-pad the batch to the sublane height and pack once to the channels-last
    # "(H*Npad, W*C)" layout (row = h*Npad + n, col = w*C + c).
    xp = jnp.pad(x.astype(jnp.float32), ((0, npad - n), (0, 0), (0, 0), (0, 0)))
    p0 = jnp.transpose(xp, (2, 0, 3, 1)).reshape(h * npad, w * c)

    # Row masks (1 for real batch rows, 0 for padded rows) per layer output.
    base = (jnp.arange(npad, dtype=jnp.int32) < n).astype(jnp.float32).reshape(npad, 1)
    m1 = jnp.tile(base, (oh1, 1))
    m2 = jnp.tile(base, (oh2, 1))
    m3 = jnp.tile(base, (oh3, 1))

    out_pad = prep["hb"].shape[1]
    vmem = pl.BlockSpec(memory_space=pltpu.MemorySpace.VMEM)
    out = pl.pallas_call(
        functools.partial(_fused_dqn_kernel, n, npad),
        out_shape=jax.ShapeDtypeStruct((npad, out_pad), jnp.float32),
        in_specs=[vmem] * 15,
        out_specs=vmem,
    )(p0, prep["w1e"], prep["w2e"], prep["w3e"], prep["hwe"],
      prep["g1"], prep["be1"], prep["g2"], prep["be2"], prep["g3"], prep["be3"],
      prep["hb"], m1, m2, m3)
    return out[:n, :outputs]


if __name__ == "__main__":
    key = jax.random.PRNGKey(0)
    H = W = 32            # three k=5,s=2 convs need spatial >= 29; 32 -> 14 -> 5 -> 1
    OUTPUTS = 2           # number of actions
    BATCH = 2

    pkey, xkey = jax.random.split(key)
    params = init_params(pkey, H, W, OUTPUTS)
    prep = preprocess_params(params, H, W)     # hoisted out of the hot forward path
    x = jax.random.normal(xkey, (BATCH, NN_INPUTS, H, W), jnp.float32)

    fwd = jax.jit(dqn_forward, static_argnames=("outputs",))
    out = fwd(prep, x, outputs=OUTPUTS)
    out = jax.block_until_ready(out)
    assert out.shape == (BATCH, OUTPUTS)
    print("KERNEL_OK")
</pallas_src>

<mosaic_0001>
module attributes {stable_mosaic.version = 11 : i64} {
  func.func @_fused_dqn_kernel(%arg0: memref<256x128xf32, #tpu.memory_space<vmem>>, %arg1: memref<640x224xbf16, #tpu.memory_space<vmem>>, %arg2: memref<1120x160xbf16, #tpu.memory_space<vmem>>, %arg3: memref<800x32xbf16, #tpu.memory_space<vmem>>, %arg4: memref<32x128xbf16, #tpu.memory_space<vmem>>, %arg5: memref<1x16xf32, #tpu.memory_space<vmem>>, %arg6: memref<1x16xf32, #tpu.memory_space<vmem>>, %arg7: memref<1x32xf32, #tpu.memory_space<vmem>>, %arg8: memref<1x32xf32, #tpu.memory_space<vmem>>, %arg9: memref<1x32xf32, #tpu.memory_space<vmem>>, %arg10: memref<1x32xf32, #tpu.memory_space<vmem>>, %arg11: memref<1x128xf32, #tpu.memory_space<vmem>>, %arg12: memref<112x1xf32, #tpu.memory_space<vmem>>, %arg13: memref<40x1xf32, #tpu.memory_space<vmem>>, %arg14: memref<8x1xf32, #tpu.memory_space<vmem>>, %arg15: memref<8x128xf32, #tpu.memory_space<vmem>>) attributes {dimension_semantics = [], scalar_prefetch = 0 : i64, scratch_operands = 0 : i64, tpu.core_type = #tpu.core_type<tc>} {
    %c0 = arith.constant 0 : index
    %c0_0 = arith.constant 0 : index
    %0 = vector.load %arg0[%c0, %c0_0] : memref<256x128xf32, #tpu.memory_space<vmem>>, vector<256x128xf32>
    %1 = vector.extract_strided_slice %0 {offsets = [0, 0], sizes = [8, 128], strides = [1, 1]} : vector<256x128xf32> to vector<8x128xf32>
    %2 = vector.extract_strided_slice %0 {offsets = [16, 0], sizes = [8, 128], strides = [1, 1]} : vector<256x128xf32> to vector<8x128xf32>
    %3 = vector.extract_strided_slice %0 {offsets = [32, 0], sizes = [8, 128], strides = [1, 1]} : vector<256x128xf32> to vector<8x128xf32>
    %4 = vector.extract_strided_slice %0 {offsets = [48, 0], sizes = [8, 128], strides = [1, 1]} : vector<256x128xf32> to vector<8x128xf32>
    %5 = vector.extract_strided_slice %0 {offsets = [64, 0], sizes = [8, 128], strides = [1, 1]} : vector<256x128xf32> to vector<8x128xf32>
    %6 = vector.extract_strided_slice %0 {offsets = [80, 0], sizes = [8, 128], strides = [1, 1]} : vector<256x128xf32> to vector<8x128xf32>
    %7 = vector.extract_strided_slice %0 {offsets = [96, 0], sizes = [8, 128], strides = [1, 1]} : vector<256x128xf32> to vector<8x128xf32>
    %8 = vector.extract_strided_slice %0 {offsets = [112, 0], sizes = [8, 128], strides = [1, 1]} : vector<256x128xf32> to vector<8x128xf32>
    %9 = vector.extract_strided_slice %0 {offsets = [128, 0], sizes = [8, 128], strides = [1, 1]} : vector<256x128xf32> to vector<8x128xf32>
    %10 = vector.extract_strided_slice %0 {offsets = [144, 0], sizes = [8, 128], strides = [1, 1]} : vector<256x128xf32> to vector<8x128xf32>
    %11 = vector.extract_strided_slice %0 {offsets = [160, 0], sizes = [8, 128], strides = [1, 1]} : vector<256x128xf32> to vector<8x128xf32>
    %12 = vector.extract_strided_slice %0 {offsets = [176, 0], sizes = [8, 128], strides = [1, 1]} : vector<256x128xf32> to vector<8x128xf32>
    %13 = vector.extract_strided_slice %0 {offsets = [192, 0], sizes = [8, 128], strides = [1, 1]} : vector<256x128xf32> to vector<8x128xf32>
    %14 = vector.extract_strided_slice %0 {offsets = [208, 0], sizes = [8, 128], strides = [1, 1]} : vector<256x128xf32> to vector<8x128xf32>
    %15 = tpu.concatenate %1, %2, %3, %4, %5, %6, %7, %8, %9, %10, %11, %12, %13, %14 in 0 : vector<8x128xf32>, vector<8x128xf32>, vector<8x128xf32>, vector<8x128xf32>, vector<8x128xf32>, vector<8x128xf32>, vector<8x128xf32>, vector<8x128xf32>, vector<8x128xf32>, vector<8x128xf32>, vector<8x128xf32>, vector<8x128xf32>, vector<8x128xf32>, vector<8x128xf32> -> vector<112x128xf32>
    %16 = vector.extract_strided_slice %0 {offsets = [8, 0], sizes = [8, 128], strides = [1, 1]} : vector<256x128xf32> to vector<8x128xf32>
    %17 = vector.extract_strided_slice %0 {offsets = [24, 0], sizes = [8, 128], strides = [1, 1]} : vector<256x128xf32> to vector<8x128xf32>
    %18 = vector.extract_strided_slice %0 {offsets = [40, 0], sizes = [8, 128], strides = [1, 1]} : vector<256x128xf32> to vector<8x128xf32>
    %19 = vector.extract_strided_slice %0 {offsets = [56, 0], sizes = [8, 128], strides = [1, 1]} : vector<256x128xf32> to vector<8x128xf32>
    %20 = vector.extract_strided_slice %0 {offsets = [72, 0], sizes = [8, 128], strides = [1, 1]} : vector<256x128xf32> to vector<8x128xf32>
    %21 = vector.extract_strided_slice %0 {offsets = [88, 0], sizes = [8, 128], strides = [1, 1]} : vector<256x128xf32> to vector<8x128xf32>
    %22 = vector.extract_strided_slice %0 {offsets = [104, 0], sizes = [8, 128], strides = [1, 1]} : vector<256x128xf32> to vector<8x128xf32>
    %23 = vector.extract_strided_slice %0 {offsets = [120, 0], sizes = [8, 128], strides = [1, 1]} : vector<256x128xf32> to vector<8x128xf32>
    %24 = vector.extract_strided_slice %0 {offsets = [136, 0], sizes = [8, 128], strides = [1, 1]} : vector<256x128xf32> to vector<8x128xf32>
    %25 = vector.extract_strided_slice %0 {offsets = [152, 0], sizes = [8, 128], strides = [1, 1]} : vector<256x128xf32> to vector<8x128xf32>
    %26 = vector.extract_strided_slice %0 {offsets = [168, 0], sizes = [8, 128], strides = [1, 1]} : vector<256x128xf32> to vector<8x128xf32>
    %27 = vector.extract_strided_slice %0 {offsets = [184, 0], sizes = [8, 128], strides = [1, 1]} : vector<256x128xf32> to vector<8x128xf32>
    %28 = vector.extract_strided_slice %0 {offsets = [200, 0], sizes = [8, 128], strides = [1, 1]} : vector<256x128xf32> to vector<8x128xf32>
    %29 = vector.extract_strided_slice %0 {offsets = [216, 0], sizes = [8, 128], strides = [1, 1]} : vector<256x128xf32> to vector<8x128xf32>
    %30 = tpu.concatenate %16, %17, %18, %19, %20, %21, %22, %23, %24, %25, %26, %27, %28, %29 in 0 : vector<8x128xf32>, vector<8x128xf32>, vector<8x128xf32>, vector<8x128xf32>, vector<8x128xf32>, vector<8x128xf32>, vector<8x128xf32>, vector<8x128xf32>, vector<8x128xf32>, vector<8x128xf32>, vector<8x128xf32>, vector<8x128xf32>, vector<8x128xf32>, vector<8x128xf32> -> vector<112x128xf32>
    %31 = vector.extract_strided_slice %0 {offsets = [16, 0], sizes = [8, 128], strides = [1, 1]} : vector<256x128xf32> to vector<8x128xf32>
    %32 = vector.extract_strided_slice %0 {offsets = [32, 0], sizes = [8, 128], strides = [1, 1]} : vector<256x128xf32> to vector<8x128xf32>
    %33 = vector.extract_strided_slice %0 {offsets = [48, 0], sizes = [8, 128], strides = [1, 1]} : vector<256x128xf32> to vector<8x128xf32>
    %34 = vector.extract_strided_slice %0 {offsets = [64, 0], sizes = [8, 128], strides = [1, 1]} : vector<256x128xf32> to vector<8x128xf32>
    %35 = vector.extract_strided_slice %0 {offsets = [80, 0], sizes = [8, 128], strides = [1, 1]} : vector<256x128xf32> to vector<8x128xf32>
    %36 = vector.extract_strided_slice %0 {offsets = [96, 0], sizes = [8, 128], strides = [1, 1]} : vector<256x128xf32> to vector<8x128xf32>
    %37 = vector.extract_strided_slice %0 {offsets = [112, 0], sizes = [8, 128], strides = [1, 1]} : vector<256x128xf32> to vector<8x128xf32>
    %38 = vector.extract_strided_slice %0 {offsets = [128, 0], sizes = [8, 128], strides = [1, 1]} : vector<256x128xf32> to vector<8x128xf32>
    %39 = vector.extract_strided_slice %0 {offsets = [144, 0], sizes = [8, 128], strides = [1, 1]} : vector<256x128xf32> to vector<8x128xf32>
    %40 = vector.extract_strided_slice %0 {offsets = [160, 0], sizes = [8, 128], strides = [1, 1]} : vector<256x128xf32> to vector<8x128xf32>
    %41 = vector.extract_strided_slice %0 {offsets = [176, 0], sizes = [8, 128], strides = [1, 1]} : vector<256x128xf32> to vector<8x128xf32>
    %42 = vector.extract_strided_slice %0 {offsets = [192, 0], sizes = [8, 128], strides = [1, 1]} : vector<256x128xf32> to vector<8x128xf32>
    %43 = vector.extract_strided_slice %0 {offsets = [208, 0], sizes = [8, 128], strides = [1, 1]} : vector<256x128xf32> to vector<8x128xf32>
    %44 = vector.extract_strided_slice %0 {offsets = [224, 0], sizes = [8, 128], strides = [1, 1]} : vector<256x128xf32> to vector<8x128xf32>
    %45 = tpu.concatenate %31, %32, %33, %34, %35, %36, %37, %38, %39, %40, %41, %42, %43, %44 in 0 : vector<8x128xf32>, vector<8x128xf32>, vector<8x128xf32>, vector<8x128xf32>, vector<8x128xf32>, vector<8x128xf32>, vector<8x128xf32>, vector<8x128xf32>, vector<8x128xf32>, vector<8x128xf32>, vector<8x128xf32>, vector<8x128xf32>, vector<8x128xf32>, vector<8x128xf32> -> vector<112x128xf32>
    %46 = vector.extract_strided_slice %0 {offsets = [24, 0], sizes = [8, 128], strides = [1, 1]} : vector<256x128xf32> to vector<8x128xf32>
    %47 = vector.extract_strided_slice %0 {offsets = [40, 0], sizes = [8, 128], strides = [1, 1]} : vector<256x128xf32> to vector<8x128xf32>
    %48 = vector.extract_strided_slice %0 {offsets = [56, 0], sizes = [8, 128], strides = [1, 1]} : vector<256x128xf32> to vector<8x128xf32>
    %49 = vector.extract_strided_slice %0 {offsets = [72, 0], sizes = [8, 128], strides = [1, 1]} : vector<256x128xf32> to vector<8x128xf32>
    %50 = vector.extract_strided_slice %0 {offsets = [88, 0], sizes = [8, 128], strides = [1, 1]} : vector<256x128xf32> to vector<8x128xf32>
    %51 = vector.extract_strided_slice %0 {offsets = [104, 0], sizes = [8, 128], strides = [1, 1]} : vector<256x128xf32> to vector<8x128xf32>
    %52 = vector.extract_strided_slice %0 {offsets = [120, 0], sizes = [8, 128], strides = [1, 1]} : vector<256x128xf32> to vector<8x128xf32>
    %53 = vector.extract_strided_slice %0 {offsets = [136, 0], sizes = [8, 128], strides = [1, 1]} : vector<256x128xf32> to vector<8x128xf32>
    %54 = vector.extract_strided_slice %0 {offsets = [152, 0], sizes = [8, 128], strides = [1, 1]} : vector<256x128xf32> to vector<8x128xf32>
    %55 = vector.extract_strided_slice %0 {offsets = [168, 0], sizes = [8, 128], strides = [1, 1]} : vector<256x128xf32> to vector<8x128xf32>
    %56 = vector.extract_strided_slice %0 {offsets = [184, 0], sizes = [8, 128], strides = [1, 1]} : vector<256x128xf32> to vector<8x128xf32>
    %57 = vector.extract_strided_slice %0 {offsets = [200, 0], sizes = [8, 128], strides = [1, 1]} : vector<256x128xf32> to vector<8x128xf32>
    %58 = vector.extract_strided_slice %0 {offsets = [216, 0], sizes = [8, 128], strides = [1, 1]} : vector<256x128xf32> to vector<8x128xf32>
    %59 = vector.extract_strided_slice %0 {offsets = [232, 0], sizes = [8, 128], strides = [1, 1]} : vector<256x128xf32> to vector<8x128xf32>
    %60 = tpu.concatenate %46, %47, %48, %49, %50, %51, %52, %53, %54, %55, %56, %57, %58, %59 in 0 : vector<8x128xf32>, vector<8x128xf32>, vector<8x128xf32>, vector<8x128xf32>, vector<8x128xf32>, vector<8x128xf32>, vector<8x128xf32>, vector<8x128xf32>, vector<8x128xf32>, vector<8x128xf32>, vector<8x128xf32>, vector<8x128xf32>, vector<8x128xf32>, vector<8x128xf32> -> vector<112x128xf32>
    %61 = vector.extract_strided_slice %0 {offsets = [32, 0], sizes = [8, 128], strides = [1, 1]} : vector<256x128xf32> to vector<8x128xf32>
    %62 = vector.extract_strided_slice %0 {offsets = [48, 0], sizes = [8, 128], strides = [1, 1]} : vector<256x128xf32> to vector<8x128xf32>
    %63 = vector.extract_strided_slice %0 {offsets = [64, 0], sizes = [8, 128], strides = [1, 1]} : vector<256x128xf32> to vector<8x128xf32>
    %64 = vector.extract_strided_slice %0 {offsets = [80, 0], sizes = [8, 128], strides = [1, 1]} : vector<256x128xf32> to vector<8x128xf32>
    %65 = vector.extract_strided_slice %0 {offsets = [96, 0], sizes = [8, 128], strides = [1, 1]} : vector<256x128xf32> to vector<8x128xf32>
    %66 = vector.extract_strided_slice %0 {offsets = [112, 0], sizes = [8, 128], strides = [1, 1]} : vector<256x128xf32> to vector<8x128xf32>
    %67 = vector.extract_strided_slice %0 {offsets = [128, 0], sizes = [8, 128], strides = [1, 1]} : vector<256x128xf32> to vector<8x128xf32>
    %68 = vector.extract_strided_slice %0 {offsets = [144, 0], sizes = [8, 128], strides = [1, 1]} : vector<256x128xf32> to vector<8x128xf32>
    %69 = vector.extract_strided_slice %0 {offsets = [160, 0], sizes = [8, 128], strides = [1, 1]} : vector<256x128xf32> to vector<8x128xf32>
    %70 = vector.extract_strided_slice %0 {offsets = [176, 0], sizes = [8, 128], strides = [1, 1]} : vector<256x128xf32> to vector<8x128xf32>
    %71 = vector.extract_strided_slice %0 {offsets = [192, 0], sizes = [8, 128], strides = [1, 1]} : vector<256x128xf32> to vector<8x128xf32>
    %72 = vector.extract_strided_slice %0 {offsets = [208, 0], sizes = [8, 128], strides = [1, 1]} : vector<256x128xf32> to vector<8x128xf32>
    %73 = vector.extract_strided_slice %0 {offsets = [224, 0], sizes = [8, 128], strides = [1, 1]} : vector<256x128xf32> to vector<8x128xf32>
    %74 = vector.extract_strided_slice %0 {offsets = [240, 0], sizes = [8, 128], strides = [1, 1]} : vector<256x128xf32> to vector<8x128xf32>
    %75 = tpu.concatenate %61, %62, %63, %64, %65, %66, %67, %68, %69, %70, %71, %72, %73, %74 in 0 : vector<8x128xf32>, vector<8x128xf32>, vector<8x128xf32>, vector<8x128xf32>, vector<8x128xf32>, vector<8x128xf32>, vector<8x128xf32>, vector<8x128xf32>, vector<8x128xf32>, vector<8x128xf32>, vector<8x128xf32>, vector<8x128xf32>, vector<8x128xf32>, vector<8x128xf32> -> vector<112x128xf32>
    %76 = tpu.concatenate %15, %30, %45, %60, %75 in 1 : vector<112x128xf32>, vector<112x128xf32>, vector<112x128xf32>, vector<112x128xf32>, vector<112x128xf32> -> vector<112x640xf32>
    %77 = arith.truncf %76 : vector<112x640xf32> to vector<112x640xbf16>
    %c0_1 = arith.constant 0 : index
    %c0_2 = arith.constant 0 : index
    %78 = vector.load %arg1[%c0_1, %c0_2] : memref<640x224xbf16, #tpu.memory_space<vmem>>, vector<640x224xbf16>
    %cst = arith.constant dense<0.000000e+00> : vector<112x224xf32>
    %79 = tpu.matmul %77, %78, %cst {dimension_numbers = #tpu.dot_dimension_numbers<[1], [0], [0], [1], [0, 0, 1, 1], [], []>} : vector<112x640xbf16>, vector<640x224xbf16>, vector<112x224xf32> -> vector<112x224xf32>
    %cst_3 = arith.constant dense<0.000000e+00> : vector<224xf32>
    %80 = vector.multi_reduction <add>, %79, %cst_3 [0] : vector<112x224xf32> to vector<224xf32>
    %81 = vector.shape_cast %80 : vector<224xf32> to vector<1x224xf32>
    %82 = vector.extract_strided_slice %81 {offsets = [0, 0], sizes = [1, 16], strides = [1, 1]} : vector<1x224xf32> to vector<1x16xf32>
    %83 = vector.extract_strided_slice %81 {offsets = [0, 16], sizes = [1, 16], strides = [1, 1]} : vector<1x224xf32> to vector<1x16xf32>
    %84 = arith.addf %82, %83 : vector<1x16xf32>
    %85 = vector.extract_strided_slice %81 {offsets = [0, 32], sizes = [1, 16], strides = [1, 1]} : vector<1x224xf32> to vector<1x16xf32>
    %86 = arith.addf %84, %85 : vector<1x16xf32>
    %87 = vector.extract_strided_slice %81 {offsets = [0, 48], sizes = [1, 16], strides = [1, 1]} : vector<1x224xf32> to vector<1x16xf32>
    %88 = arith.addf %86, %87 : vector<1x16xf32>
    %89 = vector.extract_strided_slice %81 {offsets = [0, 64], sizes = [1, 16], strides = [1, 1]} : vector<1x224xf32> to vector<1x16xf32>
    %90 = arith.addf %88, %89 : vector<1x16xf32>
    %91 = vector.extract_strided_slice %81 {offsets = [0, 80], sizes = [1, 16], strides = [1, 1]} : vector<1x224xf32> to vector<1x16xf32>
    %92 = arith.addf %90, %91 : vector<1x16xf32>
    %93 = vector.extract_strided_slice %81 {offsets = [0, 96], sizes = [1, 16], strides = [1, 1]} : vector<1x224xf32> to vector<1x16xf32>
    %94 = arith.addf %92, %93 : vector<1x16xf32>
    %95 = vector.extract_strided_slice %81 {offsets = [0, 112], sizes = [1, 16], strides = [1, 1]} : vector<1x224xf32> to vector<1x16xf32>
    %96 = arith.addf %94, %95 : vector<1x16xf32>
    %97 = vector.extract_strided_slice %81 {offsets = [0, 128], sizes = [1, 16], strides = [1, 1]} : vector<1x224xf32> to vector<1x16xf32>
    %98 = arith.addf %96, %97 : vector<1x16xf32>
    %99 = vector.extract_strided_slice %81 {offsets = [0, 144], sizes = [1, 16], strides = [1, 1]} : vector<1x224xf32> to vector<1x16xf32>
    %100 = arith.addf %98, %99 : vector<1x16xf32>
    %101 = vector.extract_strided_slice %81 {offsets = [0, 160], sizes = [1, 16], strides = [1, 1]} : vector<1x224xf32> to vector<1x16xf32>
    %102 = arith.addf %100, %101 : vector<1x16xf32>
    %103 = vector.extract_strided_slice %81 {offsets = [0, 176], sizes = [1, 16], strides = [1, 1]} : vector<1x224xf32> to vector<1x16xf32>
    %104 = arith.addf %102, %103 : vector<1x16xf32>
    %105 = vector.extract_strided_slice %81 {offsets = [0, 192], sizes = [1, 16], strides = [1, 1]} : vector<1x224xf32> to vector<1x16xf32>
    %106 = arith.addf %104, %105 : vector<1x16xf32>
    %107 = vector.extract_strided_slice %81 {offsets = [0, 208], sizes = [1, 16], strides = [1, 1]} : vector<1x224xf32> to vector<1x16xf32>
    %108 = arith.addf %106, %107 : vector<1x16xf32>
    %109 = arith.mulf %79, %79 : vector<112x224xf32>
    %cst_4 = arith.constant dense<0.000000e+00> : vector<224xf32>
    %110 = vector.multi_reduction <add>, %109, %cst_4 [0] : vector<112x224xf32> to vector<224xf32>
    %111 = vector.shape_cast %110 : vector<224xf32> to vector<1x224xf32>
    %112 = vector.extract_strided_slice %111 {offsets = [0, 0], sizes = [1, 16], strides = [1, 1]} : vector<1x224xf32> to vector<1x16xf32>
    %113 = vector.extract_strided_slice %111 {offsets = [0, 16], sizes = [1, 16], strides = [1, 1]} : vector<1x224xf32> to vector<1x16xf32>
    %114 = arith.addf %112, %113 : vector<1x16xf32>
    %115 = vector.extract_strided_slice %111 {offsets = [0, 32], sizes = [1, 16], strides = [1, 1]} : vector<1x224xf32> to vector<1x16xf32>
    %116 = arith.addf %114, %115 : vector<1x16xf32>
    %117 = vector.extract_strided_slice %111 {offsets = [0, 48], sizes = [1, 16], strides = [1, 1]} : vector<1x224xf32> to vector<1x16xf32>
    %118 = arith.addf %116, %117 : vector<1x16xf32>
    %119 = vector.extract_strided_slice %111 {offsets = [0, 64], sizes = [1, 16], strides = [1, 1]} : vector<1x224xf32> to vector<1x16xf32>
    %120 = arith.addf %118, %119 : vector<1x16xf32>
    %121 = vector.extract_strided_slice %111 {offsets = [0, 80], sizes = [1, 16], strides = [1, 1]} : vector<1x224xf32> to vector<1x16xf32>
    %122 = arith.addf %120, %121 : vector<1x16xf32>
    %123 = vector.extract_strided_slice %111 {offsets = [0, 96], sizes = [1, 16], strides = [1, 1]} : vector<1x224xf32> to vector<1x16xf32>
    %124 = arith.addf %122, %123 : vector<1x16xf32>
    %125 = vector.extract_strided_slice %111 {offsets = [0, 112], sizes = [1, 16], strides = [1, 1]} : vector<1x224xf32> to vector<1x16xf32>
    %126 = arith.addf %124, %125 : vector<1x16xf32>
    %127 = vector.extract_strided_slice %111 {offsets = [0, 128], sizes = [1, 16], strides = [1, 1]} : vector<1x224xf32> to vector<1x16xf32>
    %128 = arith.addf %126, %127 : vector<1x16xf32>
    %129 = vector.extract_strided_slice %111 {offsets = [0, 144], sizes = [1, 16], strides = [1, 1]} : vector<1x224xf32> to vector<1x16xf32>
    %130 = arith.addf %128, %129 : vector<1x16xf32>
    %131 = vector.extract_strided_slice %111 {offsets = [0, 160], sizes = [1, 16], strides = [1, 1]} : vector<1x224xf32> to vector<1x16xf32>
    %132 = arith.addf %130, %131 : vector<1x16xf32>
    %133 = vector.extract_strided_slice %111 {offsets = [0, 176], sizes = [1, 16], strides = [1, 1]} : vector<1x224xf32> to vector<1x16xf32>
    %134 = arith.addf %132, %133 : vector<1x16xf32>
    %135 = vector.extract_strided_slice %111 {offsets = [0, 192], sizes = [1, 16], strides = [1, 1]} : vector<1x224xf32> to vector<1x16xf32>
    %136 = arith.addf %134, %135 : vector<1x16xf32>
    %137 = vector.extract_strided_slice %111 {offsets = [0, 208], sizes = [1, 16], strides = [1, 1]} : vector<1x224xf32> to vector<1x16xf32>
    %138 = arith.addf %136, %137 : vector<1x16xf32>
    %cst_5 = arith.constant 3.920000e+02 : f32
    %139 = vector.broadcast %cst_5 : f32 to vector<1x16xf32>
    %140 = arith.divf %108, %139 : vector<1x16xf32>
    %cst_6 = arith.constant 3.920000e+02 : f32
    %141 = vector.broadcast %cst_6 : f32 to vector<1x16xf32>
    %142 = arith.divf %138, %141 : vector<1x16xf32>
    %143 = arith.mulf %140, %140 : vector<1x16xf32>
    %144 = arith.subf %142, %143 : vector<1x16xf32>
    %c0_7 = arith.constant 0 : index
    %c0_8 = arith.constant 0 : index
    %145 = vector.load %arg5[%c0_7, %c0_8] : memref<1x16xf32, #tpu.memory_space<vmem>>, vector<1x16xf32>
    %cst_9 = arith.constant 9.99999974E-6 : f32
    %146 = vector.broadcast %cst_9 : f32 to vector<1x16xf32>
    %147 = arith.addf %144, %146 : vector<1x16xf32>
    %148 = math.rsqrt %147 : vector<1x16xf32>
    %149 = arith.mulf %145, %148 : vector<1x16xf32>
    %c0_10 = arith.constant 0 : index
    %c0_11 = arith.constant 0 : index
    %150 = vector.load %arg6[%c0_10, %c0_11] : memref<1x16xf32, #tpu.memory_space<vmem>>, vector<1x16xf32>
    %151 = arith.mulf %140, %149 : vector<1x16xf32>
    %152 = arith.subf %150, %151 : vector<1x16xf32>
    %153 = tpu.concatenate %149, %149, %149, %149, %149, %149, %149, %149, %149, %149, %149, %149, %149, %149 in 1 : vector<1x16xf32>, vector<1x16xf32>, vector<1x16xf32>, vector<1x16xf32>, vector<1x16xf32>, vector<1x16xf32>, vector<1x16xf32>, vector<1x16xf32>, vector<1x16xf32>, vector<1x16xf32>, vector<1x16xf32>, vector<1x16xf32>, vector<1x16xf32>, vector<1x16xf32> -> vector<1x224xf32>
    %154 = vector.broadcast %153 : vector<1x224xf32> to vector<112x224xf32>
    %155 = arith.mulf %79, %154 : vector<112x224xf32>
    %156 = tpu.concatenate %152, %152, %152, %152, %152, %152, %152, %152, %152, %152, %152, %152, %152, %152 in 1 : vector<1x16xf32>, vector<1x16xf32>, vector<1x16xf32>, vector<1x16xf32>, vector<1x16xf32>, vector<1x16xf32>, vector<1x16xf32>, vector<1x16xf32>, vector<1x16xf32>, vector<1x16xf32>, vector<1x16xf32>, vector<1x16xf32>, vector<1x16xf32>, vector<1x16xf32> -> vector<1x224xf32>
    %157 = vector.broadcast %156 : vector<1x224xf32> to vector<112x224xf32>
    %158 = arith.addf %155, %157 : vector<112x224xf32>
    %cst_12 = arith.constant 0.000000e+00 : f32
    %159 = vector.broadcast %cst_12 : f32 to vector<112x224xf32>
    %160 = arith.maximumf %158, %159 : vector<112x224xf32>
    %c0_13 = arith.constant 0 : index
    %c0_14 = arith.constant 0 : index
    %161 = vector.load %arg12[%c0_13, %c0_14] : memref<112x1xf32, #tpu.memory_space<vmem>>, vector<112x1xf32>
    %162 = vector.broadcast %161 : vector<112x1xf32> to vector<112x224xf32>
    %163 = arith.mulf %160, %162 : vector<112x224xf32>
    %164 = vector.extract_strided_slice %163 {offsets = [0, 0], sizes = [8, 224], strides = [1, 1]} : vector<112x224xf32> to vector<8x224xf32>
    %165 = vector.extract_strided_slice %163 {offsets = [16, 0], sizes = [8, 224], strides = [1, 1]} : vector<112x224xf32> to vector<8x224xf32>
    %166 = vector.extract_strided_slice %163 {offsets = [32, 0], sizes = [8, 224], strides = [1, 1]} : vector<112x224xf32> to vector<8x224xf32>
    %167 = vector.extract_strided_slice %163 {offsets = [48, 0], sizes = [8, 224], strides = [1, 1]} : vector<112x224xf32> to vector<8x224xf32>
    %168 = vector.extract_strided_slice %163 {offsets = [64, 0], sizes = [8, 224], strides = [1, 1]} : vector<112x224xf32> to vector<8x224xf32>
    %169 = tpu.concatenate %164, %165, %166, %167, %168 in 0 : vector<8x224xf32>, vector<8x224xf32>, vector<8x224xf32>, vector<8x224xf32>, vector<8x224xf32> -> vector<40x224xf32>
    %170 = vector.extract_strided_slice %163 {offsets = [8, 0], sizes = [8, 224], strides = [1, 1]} : vector<112x224xf32> to vector<8x224xf32>
    %171 = vector.extract_strided_slice %163 {offsets = [24, 0], sizes = [8, 224], strides = [1, 1]} : vector<112x224xf32> to vector<8x224xf32>
    %172 = vector.extract_strided_slice %163 {offsets = [40, 0], sizes = [8, 224], strides = [1, 1]} : vector<112x224xf32> to vector<8x224xf32>
    %173 = vector.extract_strided_slice %163 {offsets = [56, 0], sizes = [8, 224], strides = [1, 1]} : vector<112x224xf32> to vector<8x224xf32>
    %174 = vector.extract_strided_slice %163 {offsets = [72, 0], sizes = [8, 224], strides = [1, 1]} : vector<112x224xf32> to vector<8x224xf32>
    %175 = tpu.concatenate %170, %171, %172, %173, %174 in 0 : vector<8x224xf32>, vector<8x224xf32>, vector<8x224xf32>, vector<8x224xf32>, vector<8x224xf32> -> vector<40x224xf32>
    %176 = vector.extract_strided_slice %163 {offsets = [16, 0], sizes = [8, 224], strides = [1, 1]} : vector<112x224xf32> to vector<8x224xf32>
    %177 = vector.extract_strided_slice %163 {offsets = [32, 0], sizes = [8, 224], strides = [1, 1]} : vector<112x224xf32> to vector<8x224xf32>
    %178 = vector.extract_strided_slice %163 {offsets = [48, 0], sizes = [8, 224], strides = [1, 1]} : vector<112x224xf32> to vector<8x224xf32>
    %179 = vector.extract_strided_slice %163 {offsets = [64, 0], sizes = [8, 224], strides = [1, 1]} : vector<112x224xf32> to vector<8x224xf32>
    %180 = vector.extract_strided_slice %163 {offsets = [80, 0], sizes = [8, 224], strides = [1, 1]} : vector<112x224xf32> to vector<8x224xf32>
    %181 = tpu.concatenate %176, %177, %178, %179, %180 in 0 : vector<8x224xf32>, vector<8x224xf32>, vector<8x224xf32>, vector<8x224xf32>, vector<8x224xf32> -> vector<40x224xf32>
    %182 = vector.extract_strided_slice %163 {offsets = [24, 0], sizes = [8, 224], strides = [1, 1]} : vector<112x224xf32> to vector<8x224xf32>
    %183 = vector.extract_strided_slice %163 {offsets = [40, 0], sizes = [8, 224], strides = [1, 1]} : vector<112x224xf32> to vector<8x224xf32>
    %184 = vector.extract_strided_slice %163 {offsets = [56, 0], sizes = [8, 224], strides = [1, 1]} : vector<112x224xf32> to vector<8x224xf32>
    %185 = vector.extract_strided_slice %163 {offsets = [72, 0], sizes = [8, 224], strides = [1, 1]} : vector<112x224xf32> to vector<8x224xf32>
    %186 = vector.extract_strided_slice %163 {offsets = [88, 0], sizes = [8, 224], strides = [1, 1]} : vector<112x224xf32> to vector<8x224xf32>
    %187 = tpu.concatenate %182, %183, %184, %185, %186 in 0 : vector<8x224xf32>, vector<8x224xf32>, vector<8x224xf32>, vector<8x224xf32>, vector<8x224xf32> -> vector<40x224xf32>
    %188 = vector.extract_strided_slice %163 {offsets = [32, 0], sizes = [8, 224], strides = [1, 1]} : vector<112x224xf32> to vector<8x224xf32>
    %189 = vector.extract_strided_slice %163 {offsets = [48, 0], sizes = [8, 224], strides = [1, 1]} : vector<112x224xf32> to vector<8x224xf32>
    %190 = vector.extract_strided_slice %163 {offsets = [64, 0], sizes = [8, 224], strides = [1, 1]} : vector<112x224xf32> to vector<8x224xf32>
    %191 = vector.extract_strided_slice %163 {offsets = [80, 0], sizes = [8, 224], strides = [1, 1]} : vector<112x224xf32> to vector<8x224xf32>
    %192 = vector.extract_strided_slice %163 {offsets = [96, 0], sizes = [8, 224], strides = [1, 1]} : vector<112x224xf32> to vector<8x224xf32>
    %193 = tpu.concatenate %188, %189, %190, %191, %192 in 0 : vector<8x224xf32>, vector<8x224xf32>, vector<8x224xf32>, vector<8x224xf32>, vector<8x224xf32> -> vector<40x224xf32>
    %194 = tpu.concatenate %169, %175, %181, %187, %193 in 1 : vector<40x224xf32>, vector<40x224xf32>, vector<40x224xf32>, vector<40x224xf32>, vector<40x224xf32> -> vector<40x1120xf32>
    %195 = arith.truncf %194 : vector<40x1120xf32> to vector<40x1120xbf16>
    %c0_15 = arith.constant 0 : index
    %c0_16 = arith.constant 0 : index
    %196 = vector.load %arg2[%c0_15, %c0_16] : memref<1120x160xbf16, #tpu.memory_space<vmem>>, vector<1120x160xbf16>
    %cst_17 = arith.constant dense<0.000000e+00> : vector<40x160xf32>
    %197 = tpu.matmul %195, %196, %cst_17 {dimension_numbers = #tpu.dot_dimension_numbers<[1], [0], [0], [1], [0, 0, 1, 1], [], []>} : vector<40x1120xbf16>, vector<1120x160xbf16>, vector<40x160xf32> -> vector<40x160xf32>
    %cst_18 = arith.constant dense<0.000000e+00> : vector<160xf32>
    %198 = vector.multi_reduction <add>, %197, %cst_18 [0] : vector<40x160xf32> to vector<160xf32>
    %199 = vector.shape_cast %198 : vector<160xf32> to vector<1x160xf32>
    %200 = vector.extract_strided_slice %199 {offsets = [0, 0], sizes = [1, 32], strides = [1, 1]} : vector<1x160xf32> to vector<1x32xf32>
    %201 = vector.extract_strided_slice %199 {offsets = [0, 32], sizes = [1, 32], strides = [1, 1]} : vector<1x160xf32> to vector<1x32xf32>
    %202 = arith.addf %200, %201 : vector<1x32xf32>
    %203 = vector.extract_strided_slice %199 {offsets = [0, 64], sizes = [1, 32], strides = [1, 1]} : vector<1x160xf32> to vector<1x32xf32>
    %204 = arith.addf %202, %203 : vector<1x32xf32>
    %205 = vector.extract_strided_slice %199 {offsets = [0, 96], sizes = [1, 32], strides = [1, 1]} : vector<1x160xf32> to vector<1x32xf32>
    %206 = arith.addf %204, %205 : vector<1x32xf32>
    %207 = vector.extract_strided_slice %199 {offsets = [0, 128], sizes = [1, 32], strides = [1, 1]} : vector<1x160xf32> to vector<1x32xf32>
    %208 = arith.addf %206, %207 : vector<1x32xf32>
    %209 = arith.mulf %197, %197 : vector<40x160xf32>
    %cst_19 = arith.constant dense<0.000000e+00> : vector<160xf32>
    %210 = vector.multi_reduction <add>, %209, %cst_19 [0] : vector<40x160xf32> to vector<160xf32>
    %211 = vector.shape_cast %210 : vector<160xf32> to vector<1x160xf32>
    %212 = vector.extract_strided_slice %211 {offsets = [0, 0], sizes = [1, 32], strides = [1, 1]} : vector<1x160xf32> to vector<1x32xf32>
    %213 = vector.extract_strided_slice %211 {offsets = [0, 32], sizes = [1, 32], strides = [1, 1]} : vector<1x160xf32> to vector<1x32xf32>
    %214 = arith.addf %212, %213 : vector<1x32xf32>
    %215 = vector.extract_strided_slice %211 {offsets = [0, 64], sizes = [1, 32], strides = [1, 1]} : vector<1x160xf32> to vector<1x32xf32>
    %216 = arith.addf %214, %215 : vector<1x32xf32>
    %217 = vector.extract_strided_slice %211 {offsets = [0, 96], sizes = [1, 32], strides = [1, 1]} : vector<1x160xf32> to vector<1x32xf32>
    %218 = arith.addf %216, %217 : vector<1x32xf32>
    %219 = vector.extract_strided_slice %211 {offsets = [0, 128], sizes = [1, 32], strides = [1, 1]} : vector<1x160xf32> to vector<1x32xf32>
    %220 = arith.addf %218, %219 : vector<1x32xf32>
    %cst_20 = arith.constant 5.000000e+01 : f32
    %221 = vector.broadcast %cst_20 : f32 to vector<1x32xf32>
    %222 = arith.divf %208, %221 : vector<1x32xf32>
    %cst_21 = arith.constant 5.000000e+01 : f32
    %223 = vector.broadcast %cst_21 : f32 to vector<1x32xf32>
    %224 = arith.divf %220, %223 : vector<1x32xf32>
    %225 = arith.mulf %222, %222 : vector<1x32xf32>
    %226 = arith.subf %224, %225 : vector<1x32xf32>
    %c0_22 = arith.constant 0 : index
    %c0_23 = arith.constant 0 : index
    %227 = vector.load %arg7[%c0_22, %c0_23] : memref<1x32xf32, #tpu.memory_space<vmem>>, vector<1x32xf32>
    %cst_24 = arith.constant 9.99999974E-6 : f32
    %228 = vector.broadcast %cst_24 : f32 to vector<1x32xf32>
    %229 = arith.addf %226, %228 : vector<1x32xf32>
    %230 = math.rsqrt %229 : vector<1x32xf32>
    %231 = arith.mulf %227, %230 : vector<1x32xf32>
    %c0_25 = arith.constant 0 : index
    %c0_26 = arith.constant 0 : index
    %232 = vector.load %arg8[%c0_25, %c0_26] : memref<1x32xf32, #tpu.memory_space<vmem>>, vector<1x32xf32>
    %233 = arith.mulf %222, %231 : vector<1x32xf32>
    %234 = arith.subf %232, %233 : vector<1x32xf32>
    %235 = tpu.concatenate %231, %231, %231, %231, %231 in 1 : vector<1x32xf32>, vector<1x32xf32>, vector<1x32xf32>, vector<1x32xf32>, vector<1x32xf32> -> vector<1x160xf32>
    %236 = vector.broadcast %235 : vector<1x160xf32> to vector<40x160xf32>
    %237 = arith.mulf %197, %236 : vector<40x160xf32>
    %238 = tpu.concatenate %234, %234, %234, %234, %234 in 1 : vector<1x32xf32>, vector<1x32xf32>, vector<1x32xf32>, vector<1x32xf32>, vector<1x32xf32> -> vector<1x160xf32>
    %239 = vector.broadcast %238 : vector<1x160xf32> to vector<40x160xf32>
    %240 = arith.addf %237, %239 : vector<40x160xf32>
    %cst_27 = arith.constant 0.000000e+00 : f32
    %241 = vector.broadcast %cst_27 : f32 to vector<40x160xf32>
    %242 = arith.maximumf %240, %241 : vector<40x160xf32>
    %c0_28 = arith.constant 0 : index
    %c0_29 = arith.constant 0 : index
    %243 = vector.load %arg13[%c0_28, %c0_29] : memref<40x1xf32, #tpu.memory_space<vmem>>, vector<40x1xf32>
    %244 = vector.broadcast %243 : vector<40x1xf32> to vector<40x160xf32>
    %245 = arith.mulf %242, %244 : vector<40x160xf32>
    %246 = vector.extract_strided_slice %245 {offsets = [0, 0], sizes = [8, 160], strides = [1, 1]} : vector<40x160xf32> to vector<8x160xf32>
    %247 = vector.extract_strided_slice %245 {offsets = [8, 0], sizes = [8, 160], strides = [1, 1]} : vector<40x160xf32> to vector<8x160xf32>
    %248 = vector.extract_strided_slice %245 {offsets = [16, 0], sizes = [8, 160], strides = [1, 1]} : vector<40x160xf32> to vector<8x160xf32>
    %249 = vector.extract_strided_slice %245 {offsets = [24, 0], sizes = [8, 160], strides = [1, 1]} : vector<40x160xf32> to vector<8x160xf32>
    %250 = vector.extract_strided_slice %245 {offsets = [32, 0], sizes = [8, 160], strides = [1, 1]} : vector<40x160xf32> to vector<8x160xf32>
    %251 = tpu.concatenate %246, %247, %248, %249, %250 in 1 : vector<8x160xf32>, vector<8x160xf32>, vector<8x160xf32>, vector<8x160xf32>, vector<8x160xf32> -> vector<8x800xf32>
    %252 = arith.truncf %251 : vector<8x800xf32> to vector<8x800xbf16>
    %c0_30 = arith.constant 0 : index
    %c0_31 = arith.constant 0 : index
    %253 = vector.load %arg3[%c0_30, %c0_31] : memref<800x32xbf16, #tpu.memory_space<vmem>>, vector<800x32xbf16>
    %cst_32 = arith.constant dense<0.000000e+00> : vector<8x32xf32>
    %254 = tpu.matmul %252, %253, %cst_32 {dimension_numbers = #tpu.dot_dimension_numbers<[1], [0], [0], [1], [0, 0, 1, 1], [], []>} : vector<8x800xbf16>, vector<800x32xbf16>, vector<8x32xf32> -> vector<8x32xf32>
    %cst_33 = arith.constant dense<0.000000e+00> : vector<32xf32>
    %255 = vector.multi_reduction <add>, %254, %cst_33 [0] : vector<8x32xf32> to vector<32xf32>
    %256 = vector.shape_cast %255 : vector<32xf32> to vector<1x32xf32>
    %257 = arith.mulf %254, %254 : vector<8x32xf32>
    %cst_34 = arith.constant dense<0.000000e+00> : vector<32xf32>
    %258 = vector.multi_reduction <add>, %257, %cst_34 [0] : vector<8x32xf32> to vector<32xf32>
    %259 = vector.shape_cast %258 : vector<32xf32> to vector<1x32xf32>
    %cst_35 = arith.constant 2.000000e+00 : f32
    %260 = vector.broadcast %cst_35 : f32 to vector<1x32xf32>
    %261 = arith.divf %256, %260 : vector<1x32xf32>
    %cst_36 = arith.constant 2.000000e+00 : f32
    %262 = vector.broadcast %cst_36 : f32 to vector<1x32xf32>
    %263 = arith.divf %259, %262 : vector<1x32xf32>
    %264 = arith.mulf %261, %261 : vector<1x32xf32>
    %265 = arith.subf %263, %264 : vector<1x32xf32>
    %c0_37 = arith.constant 0 : index
    %c0_38 = arith.constant 0 : index
    %266 = vector.load %arg9[%c0_37, %c0_38] : memref<1x32xf32, #tpu.memory_space<vmem>>, vector<1x32xf32>
    %cst_39 = arith.constant 9.99999974E-6 : f32
    %267 = vector.broadcast %cst_39 : f32 to vector<1x32xf32>
    %268 = arith.addf %265, %267 : vector<1x32xf32>
    %269 = math.rsqrt %268 : vector<1x32xf32>
    %270 = arith.mulf %266, %269 : vector<1x32xf32>
    %c0_40 = arith.constant 0 : index
    %c0_41 = arith.constant 0 : index
    %271 = vector.load %arg10[%c0_40, %c0_41] : memref<1x32xf32, #tpu.memory_space<vmem>>, vector<1x32xf32>
    %272 = arith.mulf %261, %270 : vector<1x32xf32>
    %273 = arith.subf %271, %272 : vector<1x32xf32>
    %274 = vector.broadcast %270 : vector<1x32xf32> to vector<8x32xf32>
    %275 = arith.mulf %254, %274 : vector<8x32xf32>
    %276 = vector.broadcast %273 : vector<1x32xf32> to vector<8x32xf32>
    %277 = arith.addf %275, %276 : vector<8x32xf32>
    %cst_42 = arith.constant 0.000000e+00 : f32
    %278 = vector.broadcast %cst_42 : f32 to vector<8x32xf32>
    %279 = arith.maximumf %277, %278 : vector<8x32xf32>
    %c0_43 = arith.constant 0 : index
    %c0_44 = arith.constant 0 : index
    %280 = vector.load %arg14[%c0_43, %c0_44] : memref<8x1xf32, #tpu.memory_space<vmem>>, vector<8x1xf32>
    %281 = vector.broadcast %280 : vector<8x1xf32> to vector<8x32xf32>
    %282 = arith.mulf %279, %281 : vector<8x32xf32>
    %283 = arith.truncf %282 : vector<8x32xf32> to vector<8x32xbf16>
    %c0_45 = arith.constant 0 : index
    %c0_46 = arith.constant 0 : index
    %284 = vector.load %arg4[%c0_45, %c0_46] : memref<32x128xbf16, #tpu.memory_space<vmem>>, vector<32x128xbf16>
    %cst_47 = arith.constant dense<0.000000e+00> : vector<8x128xf32>
    %285 = tpu.matmul %283, %284, %cst_47 {dimension_numbers = #tpu.dot_dimension_numbers<[1], [0], [0], [1], [0, 0, 1, 1], [], []>} : vector<8x32xbf16>, vector<32x128xbf16>, vector<8x128xf32> -> vector<8x128xf32>
    %c0_48 = arith.constant 0 : index
    %c0_49 = arith.constant 0 : index
    %286 = vector.load %arg11[%c0_48, %c0_49] : memref<1x128xf32, #tpu.memory_space<vmem>>, vector<1x128xf32>
    %287 = vector.broadcast %286 : vector<1x128xf32> to vector<8x128xf32>
    %288 = arith.addf %285, %287 : vector<8x128xf32>
    %c0_50 = arith.constant 0 : index
    %c0_51 = arith.constant 0 : index
    %289 = vector.load %arg15[%c0_50, %c0_51] : memref<8x128xf32, #tpu.memory_space<vmem>>, vector<8x128xf32>
    tpu.vector_store %arg15[%c0_50, %c0_51], %288 {strides = array<i32>} : memref<8x128xf32, #tpu.memory_space<vmem>>, vector<8x128xf32>,
    return
  }
}

</mosaic_0001>

<llo_original>
// kernel: dqn_forward.1
$region0: #{dqn_forward.1}
  #allocation0 [shape = 'u32[]', space=smem, size = 0x4, offset = 0x4, fixed_abs, tag = 'smem constant byte address 0x4 - core index']
  #allocation1 [shape = 'u32[144,128]{1,0:T(1,128)}', space=vmem, size = 0x12000, scoped, tag = 'internal scratch']
  %s0 = inlined_call_operand.vmem [shape: f32[256,128], index: 0, kind: input, shape index: {}]
  %s1 = inlined_call_operand.vmem [shape: bf16[640,224], index: 1, kind: input, shape index: {}]
  %s2 = inlined_call_operand.vmem [shape: bf16[1120,160], index: 2, kind: input, shape index: {}]
  %s3 = inlined_call_operand.vmem [shape: bf16[800,32], index: 3, kind: input, shape index: {}]
  %s4 = inlined_call_operand.vmem [shape: bf16[32,128], index: 4, kind: input, shape index: {}]
  %s5 = inlined_call_operand.vmem [shape: f32[1,16], index: 5, kind: input, shape index: {}]
  %s6 = inlined_call_operand.vmem [shape: f32[1,16], index: 6, kind: input, shape index: {}]
  %s7 = inlined_call_operand.vmem [shape: f32[1,32], index: 7, kind: input, shape index: {}]
  %s8 = inlined_call_operand.vmem [shape: f32[1,32], index: 8, kind: input, shape index: {}]
  %s9 = inlined_call_operand.vmem [shape: f32[1,32], index: 9, kind: input, shape index: {}]
  %s10 = inlined_call_operand.vmem [shape: f32[1,32], index: 10, kind: input, shape index: {}]
  %s11 = inlined_call_operand.vmem [shape: f32[1,128], index: 11, kind: input, shape index: {}]
  %s12 = inlined_call_operand.vmem [shape: f32[112,1], index: 12, kind: input, shape index: {}]
  %s13 = inlined_call_operand.vmem [shape: f32[40,1], index: 13, kind: input, shape index: {}]
  %s14 = inlined_call_operand.vmem [shape: f32[8,1], index: 14, kind: input, shape index: {}]
  %s15 = inlined_call_operand.vmem [shape: f32[8,128], index: 15, kind: output, shape index: {}]
  %s16 = sld [smem:[#allocation0]]
  $region70: #{dqn_forward.1} parent=0
    _
  %s18 = ssub.s32 1, %s16
  %s19 = scalar_select 0, %s18, %s16
  // Predicated region
  $region2: #{dqn_forward.1} parent=0 // pred_check
    _
  $region3: #{dqn_forward.1} parent=0 // pred_check_branch
    %21 = sbr.rel (0) target = $region5
  $region4: #{dqn_forward.1} parent=0 // pred_region
    _
  $region5: #{dqn_forward.1} parent=0 // pred_fallthru
    _
  // Predicated region
  $region6: #{dqn_forward.1} parent=0 // pred_check
    _
  $region7: #{dqn_forward.1} parent=0 // pred_check_branch
    %23 = sbr.rel (0) target = $region9
  $region8: #{dqn_forward.1} parent=0 // pred_region
    _
  $region9: #{dqn_forward.1} parent=0 // pred_fallthru
    _
  // Predicated region
  $region10: #{dqn_forward.1} parent=0 // pred_check
    _
  $region11: #{dqn_forward.1} parent=0 // pred_check_branch
    %25 = sbr.rel (0) target = $region13
  $region12: #{dqn_forward.1} parent=0 // pred_region
    _
  $region13: #{dqn_forward.1} parent=0 // pred_fallthru
    _
  // Predicated region
  $region14: #{dqn_forward.1} parent=0 // pred_check
    _
  $region15: #{dqn_forward.1} parent=0 // pred_check_branch
    %27 = sbr.rel (0) target = $region17
  $region16: #{dqn_forward.1} parent=0 // pred_region
    _
  $region17: #{dqn_forward.1} parent=0 // pred_fallthru
    _
  // Predicated region
  $region18: #{dqn_forward.1} parent=0 // pred_check
    _
  $region19: #{dqn_forward.1} parent=0 // pred_check_branch
    %29 = sbr.rel (0) target = $region21
  $region20: #{dqn_forward.1} parent=0 // pred_region
    _
  $region21: #{dqn_forward.1} parent=0 // pred_fallthru
    _
  // Predicated region
  $region22: #{dqn_forward.1} parent=0 // pred_check
    _
  $region23: #{dqn_forward.1} parent=0 // pred_check_branch
    %31 = sbr.rel (0) target = $region25
  $region24: #{dqn_forward.1} parent=0 // pred_region
    _
  $region25: #{dqn_forward.1} parent=0 // pred_fallthru
    _
  // Predicated region
  $region26: #{dqn_forward.1} parent=0 // pred_check
    _
  $region27: #{dqn_forward.1} parent=0 // pred_check_branch
    %33 = sbr.rel (0) target = $region29
  $region28: #{dqn_forward.1} parent=0 // pred_region
    _
  $region29: #{dqn_forward.1} parent=0 // pred_fallthru
    _
  // Predicated region
  $region30: #{dqn_forward.1} parent=0 // pred_check
    _
  $region31: #{dqn_forward.1} parent=0 // pred_check_branch
    %35 = sbr.rel (0) target = $region33
  $region32: #{dqn_forward.1} parent=0 // pred_region
    _
  $region33: #{dqn_forward.1} parent=0 // pred_fallthru
    _
  // Predicated region
  $region34: #{dqn_forward.1} parent=0 // pred_check
    _
  $region35: #{dqn_forward.1} parent=0 // pred_check_branch
    %37 = sbr.rel (0) target = $region37
  $region36: #{dqn_forward.1} parent=0 // pred_region
    _
  $region37: #{dqn_forward.1} parent=0 // pred_fallthru
    _
  // Predicated region
  $region38: #{dqn_forward.1} parent=0 // pred_check
    _
  $region39: #{dqn_forward.1} parent=0 // pred_check_branch
    %39 = sbr.rel (0) target = $region41
  $region40: #{dqn_forward.1} parent=0 // pred_region
    _
  $region41: #{dqn_forward.1} parent=0 // pred_fallthru
    _
  // Predicated region
  $region42: #{dqn_forward.1} parent=0 // pred_check
    _
  $region43: #{dqn_forward.1} parent=0 // pred_check_branch
    %41 = sbr.rel (0) target = $region45
  $region44: #{dqn_forward.1} parent=0 // pred_region
    _
  $region45: #{dqn_forward.1} parent=0 // pred_fallthru
    _
  // Predicated region
  $region46: #{dqn_forward.1} parent=0 // pred_check
    _
  $region47: #{dqn_forward.1} parent=0 // pred_check_branch
    %43 = sbr.rel (0) target = $region49
  $region48: #{dqn_forward.1} parent=0 // pred_region
    _
  $region49: #{dqn_forward.1} parent=0 // pred_fallthru
    _
  // Predicated region
  $region50: #{dqn_forward.1} parent=0 // pred_check
    _
  $region51: #{dqn_forward.1} parent=0 // pred_check_branch
    %45 = sbr.rel (0) target = $region53
  $region52: #{dqn_forward.1} parent=0 // pred_region
    _
  $region53: #{dqn_forward.1} parent=0 // pred_fallthru
    _
  // Predicated region
  $region54: #{dqn_forward.1} parent=0 // pred_check
    _
  $region55: #{dqn_forward.1} parent=0 // pred_check_branch
    %47 = sbr.rel (0) target = $region57
  $region56: #{dqn_forward.1} parent=0 // pred_region
    _
  $region57: #{dqn_forward.1} parent=0 // pred_fallthru
    _
  // Predicated region
  $region58: #{dqn_forward.1} parent=0 // pred_check
    _
  $region59: #{dqn_forward.1} parent=0 // pred_check_branch
    %49 = sbr.rel (0) target = $region61
  $region60: #{dqn_forward.1} parent=0 // pred_region
    _
  $region61: #{dqn_forward.1} parent=0 // pred_fallthru
    _
  %v51 = vld [vmem:[%s0] sm:$0xff]
  %v52 = vld [vmem:[%s0 + $0x8] sm:$0xff]
  %v53 = vld [vmem:[%s0 + $0x10] sm:$0xff]
  %v54 = vld [vmem:[%s0 + $0x18] sm:$0xff]
  %v55 = vld [vmem:[%s0 + $0x20] sm:$0xff]
  %v56 = vld [vmem:[%s0 + $0x28] sm:$0xff]
  %v57 = vld [vmem:[%s0 + $0x30] sm:$0xff]
  %v58 = vld [vmem:[%s0 + $0x38] sm:$0xff]
  %v59 = vld [vmem:[%s0 + $0x40] sm:$0xff]
  %v60 = vld [vmem:[%s0 + $0x48] sm:$0xff]
  %v61 = vld [vmem:[%s0 + $0x50] sm:$0xff]
  %v62 = vld [vmem:[%s0 + $0x58] sm:$0xff]
  %v63 = vld [vmem:[%s0 + $0x60] sm:$0xff]
  %v64 = vld [vmem:[%s0 + $0x68] sm:$0xff]
  %v65 = vld [vmem:[%s0 + $0x70] sm:$0xff]
  %v66 = vld [vmem:[%s0 + $0x78] sm:$0xff]
  %v67 = vld [vmem:[%s0 + $0x80] sm:$0xff]
  %v68 = vld [vmem:[%s0 + $0x88] sm:$0xff]
  %v69 = vld [vmem:[%s0 + $0x90] sm:$0xff]
  %v70 = vld [vmem:[%s0 + $0x98] sm:$0xff]
  %v71 = vld [vmem:[%s0 + $0xa0] sm:$0xff]
  %v72 = vld [vmem:[%s0 + $0xa8] sm:$0xff]
  %v73 = vld [vmem:[%s0 + $0xb0] sm:$0xff]
  %v74 = vld [vmem:[%s0 + $0xb8] sm:$0xff]
  %v75 = vld [vmem:[%s0 + $0xc0] sm:$0xff]
  %v76 = vld [vmem:[%s0 + $0xc8] sm:$0xff]
  %v77 = vld [vmem:[%s0 + $0xd0] sm:$0xff]
  %v78 = vld [vmem:[%s0 + $0xd8] sm:$0xff]
  %v79 = vld [vmem:[%s0 + $0xe0] sm:$0xff]
  %v80 = vld [vmem:[%s0 + $0xe8] sm:$0xff]
  %v81 = vld [vmem:[%s0 + $0xf0] sm:$0xff]
  %v82 = vpack.c.bf16 %v53, %v51
  %v83 = vpack.c.bf16 %v54, %v52
  %v84 = vpack.c.bf16 %v55, %v53
  %v85 = vpack.c.bf16 %v56, %v54
  %v86 = vpack.c.bf16 %v57, %v55
  %v87 = vpack.c.bf16 %v58, %v56
  %v88 = vpack.c.bf16 %v59, %v57
  %v89 = vpack.c.bf16 %v60, %v58
  %v90 = vpack.c.bf16 %v61, %v59
  %v91 = vpack.c.bf16 %v62, %v60
  %v92 = vpack.c.bf16 %v63, %v61
  %v93 = vpack.c.bf16 %v64, %v62
  %v94 = vpack.c.bf16 %v65, %v63
  %v95 = vpack.c.bf16 %v66, %v64
  %v96 = vpack.c.bf16 %v67, %v65
  %v97 = vpack.c.bf16 %v68, %v66
  %v98 = vpack.c.bf16 %v69, %v67
  %v99 = vpack.c.bf16 %v70, %v68
  %v100 = vpack.c.bf16 %v71, %v69
  %v101 = vpack.c.bf16 %v72, %v70
  %v102 = vpack.c.bf16 %v73, %v71
  %v103 = vpack.c.bf16 %v74, %v72
  %v104 = vpack.c.bf16 %v75, %v73
  %v105 = vpack.c.bf16 %v76, %v74
  %v106 = vpack.c.bf16 %v77, %v75
  %v107 = vpack.c.bf16 %v78, %v76
  %v108 = vpack.c.bf16 %v79, %v77
  %v109 = vpack.c.bf16 %v80, %v78
  %v110 = vpack.c.bf16 %v81, %v79
  %v111 = vld [vmem:[%s1] sm:$0xff]
  %v112 = vld [vmem:[%s1 + $0x8] sm:$0xff]
  %v113 = vld [vmem:[%s1 + $0x10] sm:$0xff]
  %v114 = vld [vmem:[%s1 + $0x18] sm:$0xff]
  %v115 = vld [vmem:[%s1 + $0x20] sm:$0xff]
  %v116 = vld [vmem:[%s1 + $0x28] sm:$0xff]
  %v117 = vld [vmem:[%s1 + $0x30] sm:$0xff]
  %v118 = vld [vmem:[%s1 + $0x38] sm:$0xff]
  %v119 = vld [vmem:[%s1 + $0x40] sm:$0xff]
  %v120 = vld [vmem:[%s1 + $0x48] sm:$0xff]
  %v121 = vld [vmem:[%s1 + $0x50] sm:$0xff]
  %v122 = vld [vmem:[%s1 + $0x58] sm:$0xff]
  %v123 = vld [vmem:[%s1 + $0x60] sm:$0xff]
  %v124 = vld [vmem:[%s1 + $0x68] sm:$0xff]
  %v125 = vld [vmem:[%s1 + $0x70] sm:$0xff]
  %v126 = vld [vmem:[%s1 + $0x78] sm:$0xff]
  %v127 = vld [vmem:[%s1 + $0x80] sm:$0xff]
  %v128 = vld [vmem:[%s1 + $0x88] sm:$0xff]
  %v129 = vld [vmem:[%s1 + $0x90] sm:$0xff]
  %v130 = vld [vmem:[%s1 + $0x98] sm:$0xff]
  %v131 = vld [vmem:[%s1 + $0xa0] sm:$0xff]
  %v132 = vld [vmem:[%s1 + $0xa8] sm:$0xff]
  %v133 = vld [vmem:[%s1 + $0xb0] sm:$0xff]
  %v134 = vld [vmem:[%s1 + $0xb8] sm:$0xff]
  %v135 = vld [vmem:[%s1 + $0xc0] sm:$0xff]
  %v136 = vld [vmem:[%s1 + $0xc8] sm:$0xff]
  %v137 = vld [vmem:[%s1 + $0xd0] sm:$0xff]
  %v138 = vld [vmem:[%s1 + $0xd8] sm:$0xff]
  %v139 = vld [vmem:[%s1 + $0xe0] sm:$0xff]
  %v140 = vld [vmem:[%s1 + $0xe8] sm:$0xff]
  %v141 = vld [vmem:[%s1 + $0xf0] sm:$0xff]
  %v142 = vld [vmem:[%s1 + $0xf8] sm:$0xff]
  %v143 = vld [vmem:[%s1 + $0x100] sm:$0xff]
  %v144 = vld [vmem:[%s1 + $0x108] sm:$0xff]
  %v145 = vld [vmem:[%s1 + $0x110] sm:$0xff]
  %v146 = vld [vmem:[%s1 + $0x118] sm:$0xff]
  %v147 = vld [vmem:[%s1 + $0x120] sm:$0xff]
  %v148 = vld [vmem:[%s1 + $0x128] sm:$0xff]
  %v149 = vld [vmem:[%s1 + $0x130] sm:$0xff]
  %v150 = vld [vmem:[%s1 + $0x138] sm:$0xff]
  %v151 = vld [vmem:[%s1 + $0x140] sm:$0xff]
  %v152 = vld [vmem:[%s1 + $0x148] sm:$0xff]
  %v153 = vld [vmem:[%s1 + $0x150] sm:$0xff]
  %v154 = vld [vmem:[%s1 + $0x158] sm:$0xff]
  %v155 = vld [vmem:[%s1 + $0x160] sm:$0xff]
  %v156 = vld [vmem:[%s1 + $0x168] sm:$0xff]
  %v157 = vld [vmem:[%s1 + $0x170] sm:$0xff]
  %v158 = vld [vmem:[%s1 + $0x178] sm:$0xff]
  %v159 = vld [vmem:[%s1 + $0x180] sm:$0xff]
  %v160 = vld [vmem:[%s1 + $0x188] sm:$0xff]
  %v161 = vld [vmem:[%s1 + $0x190] sm:$0xff]
  %v162 = vld [vmem:[%s1 + $0x198] sm:$0xff]
  %v163 = vld [vmem:[%s1 + $0x1a0] sm:$0xff]
  %v164 = vld [vmem:[%s1 + $0x1a8] sm:$0xff]
  %v165 = vld [vmem:[%s1 + $0x1b0] sm:$0xff]
  %v166 = vld [vmem:[%s1 + $0x1b8] sm:$0xff]
  %v167 = vld [vmem:[%s1 + $0x1c0] sm:$0xff]
  %v168 = vld [vmem:[%s1 + $0x1c8] sm:$0xff]
  %v169 = vld [vmem:[%s1 + $0x1d0] sm:$0xff]
  %v170 = vld [vmem:[%s1 + $0x1d8] sm:$0xff]
  %v171 = vld [vmem:[%s1 + $0x1e0] sm:$0xff]
  %v172 = vld [vmem:[%s1 + $0x1e8] sm:$0xff]
  %v173 = vld [vmem:[%s1 + $0x1f0] sm:$0xff]
  %v174 = vld [vmem:[%s1 + $0x1f8] sm:$0xff]
  %v175 = vld [vmem:[%s1 + $0x200] sm:$0xff]
  %v176 = vld [vmem:[%s1 + $0x208] sm:$0xff]
  %v177 = vld [vmem:[%s1 + $0x210] sm:$0xff]
  %v178 = vld [vmem:[%s1 + $0x218] sm:$0xff]
  %v179 = vld [vmem:[%s1 + $0x220] sm:$0xff]
  %v180 = vld [vmem:[%s1 + $0x228] sm:$0xff]
  %v181 = vld [vmem:[%s1 + $0x230] sm:$0xff]
  %v182 = vld [vmem:[%s1 + $0x238] sm:$0xff]
  %v183 = vld [vmem:[%s1 + $0x240] sm:$0xff]
  %v184 = vld [vmem:[%s1 + $0x248] sm:$0xff]
  %v185 = vld [vmem:[%s1 + $0x250] sm:$0xff]
  %v186 = vld [vmem:[%s1 + $0x258] sm:$0xff]
  %v187 = vld [vmem:[%s1 + $0x260] sm:$0xff]
  %v188 = vld [vmem:[%s1 + $0x268] sm:$0xff]
  %v189 = vld [vmem:[%s1 + $0x270] sm:$0xff]
  %v190 = vld [vmem:[%s1 + $0x278] sm:$0xff]
  %v271 = vunpack.c.l.b16 %v111
  %v272 = vunpack.c.h.b16 %v111
  %v273 = vunpack.c.l.b16 %v112
  %v274 = vunpack.c.h.b16 %v112
  %v275 = vunpack.c.l.b16 %v113
  %v276 = vunpack.c.h.b16 %v113
  %v277 = vunpack.c.l.b16 %v114
  %v278 = vunpack.c.h.b16 %v114
  %v279 = vunpack.c.l.b16 %v115
  %v280 = vunpack.c.h.b16 %v115
  %v281 = vunpack.c.l.b16 %v116
  %v282 = vunpack.c.h.b16 %v116
  %v283 = vunpack.c.l.b16 %v117
  %v284 = vunpack.c.h.b16 %v117
  %v285 = vunpack.c.l.b16 %v118
  %v286 = vunpack.c.h.b16 %v118
  %v287 = vunpack.c.l.b16 %v119
  %v288 = vunpack.c.h.b16 %v119
  %v289 = vunpack.c.l.b16 %v120
  %v290 = vunpack.c.h.b16 %v120
  %v291 = vunpack.c.l.b16 %v121
  %v292 = vunpack.c.h.b16 %v121
  %v293 = vunpack.c.l.b16 %v122
  %v294 = vunpack.c.h.b16 %v122
  %v295 = vunpack.c.l.b16 %v123
  %v296 = vunpack.c.h.b16 %v123
  %v297 = vunpack.c.l.b16 %v124
  %v298 = vunpack.c.h.b16 %v124
  %v299 = vunpack.c.l.b16 %v125
  %v300 = vunpack.c.h.b16 %v125
  %v301 = vunpack.c.l.b16 %v126
  %v302 = vunpack.c.h.b16 %v126
  %v303 = vunpack.c.l.b16 %v127
  %v304 = vunpack.c.h.b16 %v127
  %v305 = vunpack.c.l.b16 %v128
  %v306 = vunpack.c.h.b16 %v128
  %v307 = vunpack.c.l.b16 %v129
  %v308 = vunpack.c.h.b16 %v129
  %v309 = vunpack.c.l.b16 %v130
  %v310 = vunpack.c.h.b16 %v130
  %v311 = vunpack.c.l.b16 %v131
  %v312 = vunpack.c.h.b16 %v131
  %v313 = vunpack.c.l.b16 %v132
  %v314 = vunpack.c.h.b16 %v132
  %v315 = vunpack.c.l.b16 %v133
  %v316 = vunpack.c.h.b16 %v133
  %v317 = vunpack.c.l.b16 %v134
  %v318 = vunpack.c.h.b16 %v134
  %v319 = vunpack.c.l.b16 %v135
  %v320 = vunpack.c.h.b16 %v135
  %v321 = vunpack.c.l.b16 %v136
  %v322 = vunpack.c.h.b16 %v136
  %v323 = vunpack.c.l.b16 %v137
  %v324 = vunpack.c.h.b16 %v137
  %v325 = vunpack.c.l.b16 %v138
  %v326 = vunpack.c.h.b16 %v138
  %v327 = vunpack.c.l.b16 %v139
  %v328 = vunpack.c.h.b16 %v139
  %v329 = vunpack.c.l.b16 %v140
  %v330 = vunpack.c.h.b16 %v140
  %v331 = vunpack.c.l.b16 %v141
  %v332 = vunpack.c.h.b16 %v141
  %v333 = vunpack.c.l.b16 %v142
  %v334 = vunpack.c.h.b16 %v142
  %v335 = vunpack.c.l.b16 %v143
  %v336 = vunpack.c.h.b16 %v143
  %v337 = vunpack.c.l.b16 %v144
  %v338 = vunpack.c.h.b16 %v144
  %v339 = vunpack.c.l.b16 %v145
  %v340 = vunpack.c.h.b16 %v145
  %v341 = vunpack.c.l.b16 %v146
  %v342 = vunpack.c.h.b16 %v146
  %v343 = vunpack.c.l.b16 %v147
  %v344 = vunpack.c.h.b16 %v147
  %v345 = vunpack.c.l.b16 %v148
  %v346 = vunpack.c.h.b16 %v148
  %v347 = vunpack.c.l.b16 %v149
  %v348 = vunpack.c.h.b16 %v149
  %v349 = vunpack.c.l.b16 %v150
  %v350 = vunpack.c.h.b16 %v150
  %v351 = vunpack.c.l.b16 %v151
  %v352 = vunpack.c.h.b16 %v151
  %v353 = vunpack.c.l.b16 %v152
  %v354 = vunpack.c.h.b16 %v152
  %v355 = vunpack.c.l.b16 %v153
  %v356 = vunpack.c.h.b16 %v153
  %v357 = vunpack.c.l.b16 %v154
  %v358 = vunpack.c.h.b16 %v154
  %v359 = vunpack.c.l.b16 %v155
  %v360 = vunpack.c.h.b16 %v155
  %v361 = vunpack.c.l.b16 %v156
  %v362 = vunpack.c.h.b16 %v156
  %v363 = vunpack.c.l.b16 %v157
  %v364 = vunpack.c.h.b16 %v157
  %v365 = vunpack.c.l.b16 %v158
  %v366 = vunpack.c.h.b16 %v158
  %v367 = vunpack.c.l.b16 %v159
  %v368 = vunpack.c.h.b16 %v159
  %v369 = vunpack.c.l.b16 %v160
  %v370 = vunpack.c.h.b16 %v160
  %v371 = vunpack.c.l.b16 %v161
  %v372 = vunpack.c.h.b16 %v161
  %v373 = vunpack.c.l.b16 %v162
  %v374 = vunpack.c.h.b16 %v162
  %v375 = vunpack.c.l.b16 %v163
  %v376 = vunpack.c.h.b16 %v163
  %v377 = vunpack.c.l.b16 %v164
  %v378 = vunpack.c.h.b16 %v164
  %v379 = vunpack.c.l.b16 %v165
  %v380 = vunpack.c.h.b16 %v165
  %v381 = vunpack.c.l.b16 %v166
  %v382 = vunpack.c.h.b16 %v166
  %v383 = vunpack.c.l.b16 %v167
  %v384 = vunpack.c.h.b16 %v167
  %v385 = vunpack.c.l.b16 %v168
  %v386 = vunpack.c.h.b16 %v168
  %v387 = vunpack.c.l.b16 %v169
  %v388 = vunpack.c.h.b16 %v169
  %v389 = vunpack.c.l.b16 %v170
  %v390 = vunpack.c.h.b16 %v170
  %v391 = vunpack.c.l.b16 %v171
  %v392 = vunpack.c.h.b16 %v171
  %v393 = vunpack.c.l.b16 %v172
  %v394 = vunpack.c.h.b16 %v172
  %v395 = vunpack.c.l.b16 %v173
  %v396 = vunpack.c.h.b16 %v173
  %v397 = vunpack.c.l.b16 %v174
  %v398 = vunpack.c.h.b16 %v174
  %v399 = vunpack.c.l.b16 %v175
  %v400 = vunpack.c.h.b16 %v175
  %v401 = vunpack.c.l.b16 %v176
  %v402 = vunpack.c.h.b16 %v176
  %v403 = vunpack.c.l.b16 %v177
  %v404 = vunpack.c.h.b16 %v177
  %v405 = vunpack.c.l.b16 %v178
  %v406 = vunpack.c.h.b16 %v178
  %v407 = vunpack.c.l.b16 %v179
  %v408 = vunpack.c.h.b16 %v179
  %v409 = vunpack.c.l.b16 %v180
  %v410 = vunpack.c.h.b16 %v180
  %v411 = vunpack.c.l.b16 %v181
  %v412 = vunpack.c.h.b16 %v181
  %v413 = vunpack.c.l.b16 %v182
  %v414 = vunpack.c.h.b16 %v182
  %v415 = vunpack.c.l.b16 %v183
  %v416 = vunpack.c.h.b16 %v183
  %v417 = vunpack.c.l.b16 %v184
  %v418 = vunpack.c.h.b16 %v184
  %v419 = vunpack.c.l.b16 %v185
  %v420 = vunpack.c.h.b16 %v185
  %v421 = vunpack.c.l.b16 %v186
  %v422 = vunpack.c.h.b16 %v186
  %v423 = vunpack.c.l.b16 %v187
  %v424 = vunpack.c.h.b16 %v187
  %v425 = vunpack.c.l.b16 %v188
  %v426 = vunpack.c.h.b16 %v188
  %v427 = vunpack.c.l.b16 %v189
  %v428 = vunpack.c.h.b16 %v189
  %v429 = vunpack.c.l.b16 %v190
  %v430 = vunpack.c.h.b16 %v190
  %v431 = vpack.c.b16 %v273, %v271
  %v432 = vpack.c.b16 %v274, %v272
  %v433 = vpack.c.b16 %v277, %v275
  %v434 = vpack.c.b16 %v278, %v276
  %v435 = vpack.c.b16 %v281, %v279
  %v436 = vpack.c.b16 %v282, %v280
  %v437 = vpack.c.b16 %v285, %v283
  %v438 = vpack.c.b16 %v286, %v284
  %v439 = vpack.c.b16 %v289, %v287
  %v440 = vpack.c.b16 %v290, %v288
  %v441 = vpack.c.b16 %v293, %v291
  %v442 = vpack.c.b16 %v294, %v292
  %v443 = vpack.c.b16 %v297, %v295
  %v444 = vpack.c.b16 %v298, %v296
  %v445 = vpack.c.b16 %v301, %v299
  %v446 = vpack.c.b16 %v302, %v300
  %v447 = vpack.c.b16 %v305, %v303
  %v448 = vpack.c.b16 %v306, %v304
  %v449 = vpack.c.b16 %v309, %v307
  %v450 = vpack.c.b16 %v310, %v308
  %v451 = vpack.c.b16 %v313, %v311
  %v452 = vpack.c.b16 %v314, %v312
  %v453 = vpack.c.b16 %v317, %v315
  %v454 = vpack.c.b16 %v318, %v316
  %v455 = vpack.c.b16 %v321, %v319
  %v456 = vpack.c.b16 %v322, %v320
  %v457 = vpack.c.b16 %v325, %v323
  %v458 = vpack.c.b16 %v326, %v324
  %v459 = vpack.c.b16 %v329, %v327
  %v460 = vpack.c.b16 %v330, %v328
  %v461 = vpack.c.b16 %v333, %v331
  %v462 = vpack.c.b16 %v334, %v332
  %v463 = vpack.c.b16 %v337, %v335
  %v464 = vpack.c.b16 %v338, %v336
  %v465 = vpack.c.b16 %v341, %v339
  %v466 = vpack.c.b16 %v342, %v340
  %v467 = vpack.c.b16 %v345, %v343
  %v468 = vpack.c.b16 %v346, %v344
  %v469 = vpack.c.b16 %v349, %v347
  %v470 = vpack.c.b16 %v350, %v348
  %v471 = vpack.c.b16 %v353, %v351
  %v472 = vpack.c.b16 %v354, %v352
  %v473 = vpack.c.b16 %v357, %v355
  %v474 = vpack.c.b16 %v358, %v356
  %v475 = vpack.c.b16 %v361, %v359
  %v476 = vpack.c.b16 %v362, %v360
  %v477 = vpack.c.b16 %v365, %v363
  %v478 = vpack.c.b16 %v366, %v364
  %v479 = vpack.c.b16 %v369, %v367
  %v480 = vpack.c.b16 %v370, %v368
  %v481 = vpack.c.b16 %v373, %v371
  %v482 = vpack.c.b16 %v374, %v372
  %v483 = vpack.c.b16 %v377, %v375
  %v484 = vpack.c.b16 %v378, %v376
  %v485 = vpack.c.b16 %v381, %v379
  %v486 = vpack.c.b16 %v382, %v380
  %v487 = vpack.c.b16 %v385, %v383
  %v488 = vpack.c.b16 %v386, %v384
  %v489 = vpack.c.b16 %v389, %v387
  %v490 = vpack.c.b16 %v390, %v388
  %v491 = vpack.c.b16 %v393, %v391
  %v492 = vpack.c.b16 %v394, %v392
  %v493 = vpack.c.b16 %v397, %v395
  %v494 = vpack.c.b16 %v398, %v396
  %v495 = vpack.c.b16 %v401, %v399
  %v496 = vpack.c.b16 %v402, %v400
  %v497 = vpack.c.b16 %v405, %v403
  %v498 = vpack.c.b16 %v406, %v404
  %v499 = vpack.c.b16 %v409, %v407
  %v500 = vpack.c.b16 %v410, %v408
  %v501 = vpack.c.b16 %v413, %v411
  %v502 = vpack.c.b16 %v414, %v412
  %v503 = vpack.c.b16 %v417, %v415
  %v504 = vpack.c.b16 %v418, %v416
  %v505 = vpack.c.b16 %v421, %v419
  %v506 = vpack.c.b16 %v422, %v420
  %v507 = vpack.c.b16 %v425, %v423
  %v508 = vpack.c.b16 %v426, %v424
  %v509 = vpack.c.b16 %v429, %v427
  %v510 = vpack.c.b16 %v430, %v428
  %591 = vmatprep.subr.bf16.mxu0 %v432
  %592 = vmatpush1.bf16.msra.mxu0 %v431
  %593 = vmatprep.subr.bf16.mxu0 %v434
  %594 = vmatpush1.bf16.msra.mxu0 %v433
  %595 = vmatprep.subr.bf16.mxu0 %v436
  %596 = vmatpush1.bf16.msra.mxu0 %v435
  %597 = vmatprep.subr.bf16.mxu0 %v438
  %598 = vmatpush1.bf16.msra.mxu0 %v437
  %599 = vmatprep.subr.bf16.mxu0 %v440
  %600 = vmatpush1.bf16.msra.mxu0 %v439
  %601 = vmatprep.subr.bf16.mxu0 %v442
  %602 = vmatpush1.bf16.msra.mxu0 %v441
  %603 = vmatprep.subr.bf16.mxu0 %v444
  %604 = vmatpush1.bf16.msra.mxu0 %v443
  %605 = vmatprep.subr.bf16.mxu0 %v446
  %606 = vmatpush1.bf16.msra.mxu0 %v445
  %607 = vmatprep.subr.bf16.mxu0 %v448
  %608 = vmatpush1.bf16.msra.mxu0 %v447
  %609 = vmatprep.subr.bf16.mxu0 %v450
  %610 = vmatpush1.bf16.msra.mxu0 %v449
  %611 = vmatprep.subr.bf16.mxu0 %v452
  %612 = vmatpush1.bf16.msra.mxu0 %v451
  %613 = vmatprep.subr.bf16.mxu0 %v454
  %614 = vmatpush1.bf16.msra.mxu0 %v453
  %615 = vmatprep.subr.bf16.mxu0 %v456
  %616 = vmatpush1.bf16.msra.mxu0 %v455
  %617 = vmatprep.subr.bf16.mxu0 %v458
  %618 = vmatpush1.bf16.msra.mxu0 %v457
  %619 = vmatprep.subr.bf16.mxu0 %v460
  %620 = vmatpush1.bf16.msra.mxu0 %v459
  %621 = vmatprep.subr.bf16.mxu0 %v462
  %622 = vmatpush1.bf16.msra.mxu0 %v461
  %623 = vmatprep.mubr.bf16.mxu0 %v83
  %624 = vmatmul.mubr.bf16.gmra.mrb[0].mxu0 %v82
  %v625 = vpop.f32.mrb[0].mxu0
  %v626 = vadd.f32 0.0, %v625
  %v627 = vpop.f32.mrb[0].mxu0
  %v628 = vadd.f32 0.0, %v627
  %v629 = vpop.f32.mrb[0].mxu0
  %v630 = vadd.f32 0.0, %v629
  %v631 = vpop.f32.mrb[0].mxu0
  %v632 = vadd.f32 0.0, %v631
  %633 = vmatprep.mubr.bf16.mxu0 %v87
  %634 = vmatmul.mubr.bf16.gmra.mrb[0].mxu0 %v86
  %v635 = vpop.f32.mrb[0].mxu0
  %v636 = vadd.f32 0.0, %v635
  %v637 = vpop.f32.mrb[0].mxu0
  %v638 = vadd.f32 0.0, %v637
  %v639 = vpop.f32.mrb[0].mxu0
  %v640 = vadd.f32 0.0, %v639
  %v641 = vpop.f32.mrb[0].mxu0
  %v642 = vadd.f32 0.0, %v641
  %643 = vmatprep.mubr.bf16.mxu0 %v91
  %644 = vmatmul.mubr.bf16.gmra.mrb[0].mxu0 %v90
  %v645 = vpop.f32.mrb[0].mxu0
  %v646 = vadd.f32 0.0, %v645
  %v647 = vpop.f32.mrb[0].mxu0
  %v648 = vadd.f32 0.0, %v647
  %v649 = vpop.f32.mrb[0].mxu0
  %v650 = vadd.f32 0.0, %v649
  %v651 = vpop.f32.mrb[0].mxu0
  %v652 = vadd.f32 0.0, %v651
  %653 = vmatprep.mubr.bf16.mxu0 %v95
  %654 = vmatmul.mubr.bf16.gmra.mrb[0].mxu0 %v94
  %v655 = vpop.f32.mrb[0].mxu0
  %v656 = vadd.f32 0.0, %v655
  %v657 = vpop.f32.mrb[0].mxu0
  %v658 = vadd.f32 0.0, %v657
  %v659 = vpop.f32.mrb[0].mxu0
  %v660 = vadd.f32 0.0, %v659
  %v661 = vpop.f32.mrb[0].mxu0
  %v662 = vadd.f32 0.0, %v661
  %663 = vmatprep.mubr.bf16.mxu0 %v99
  %664 = vmatmul.mubr.bf16.gmra.mrb[0].mxu0 %v98
  %v665 = vpop.f32.mrb[0].mxu0
  %v666 = vadd.f32 0.0, %v665
  %v667 = vpop.f32.mrb[0].mxu0
  %v668 = vadd.f32 0.0, %v667
  %v669 = vpop.f32.mrb[0].mxu0
  %v670 = vadd.f32 0.0, %v669
  %v671 = vpop.f32.mrb[0].mxu0
  %v672 = vadd.f32 0.0, %v671
  %673 = vmatprep.mubr.bf16.mxu0 %v103
  %674 = vmatmul.mubr.bf16.gmra.mrb[0].mxu0 %v102
  %v675 = vpop.f32.mrb[0].mxu0
  %v676 = vadd.f32 0.0, %v675
  %v677 = vpop.f32.mrb[0].mxu0
  %v678 = vadd.f32 0.0, %v677
  %v679 = vpop.f32.mrb[0].mxu0
  %v680 = vadd.f32 0.0, %v679
  %v681 = vpop.f32.mrb[0].mxu0
  %v682 = vadd.f32 0.0, %v681
  %683 = vmatprep.mubr.bf16.mxu0 %v107
  %684 = vmatmul.mubr.bf16.gmra.mrb[0].mxu0 %v106
  %v685 = vpop.f32.mrb[0].mxu0
  %v686 = vadd.f32 0.0, %v685
  %v687 = vpop.f32.mrb[0].mxu0
  %v688 = vadd.f32 0.0, %v687
  %v689 = vpop.f32.mrb[0].mxu0
  %v690 = vadd.f32 0.0, %v689
  %v691 = vpop.f32.mrb[0].mxu0
  %v692 = vadd.f32 0.0, %v691
  %693 = vdwg.mxu0
  %694 = vmatprep.subr.bf16.mxu0 %v464
  %695 = vmatpush1.bf16.msra.mxu0 %v463
  %696 = vmatprep.subr.bf16.mxu0 %v466
  %697 = vmatpush1.bf16.msra.mxu0 %v465
  %698 = vmatprep.subr.bf16.mxu0 %v468
  %699 = vmatpush1.bf16.msra.mxu0 %v467
  %700 = vmatprep.subr.bf16.mxu0 %v470
  %701 = vmatpush1.bf16.msra.mxu0 %v469
  %702 = vmatprep.subr.bf16.mxu0 %v472
  %703 = vmatpush1.bf16.msra.mxu0 %v471
  %704 = vmatprep.subr.bf16.mxu0 %v474
  %705 = vmatpush1.bf16.msra.mxu0 %v473
  %706 = vmatprep.subr.bf16.mxu0 %v476
  %707 = vmatpush1.bf16.msra.mxu0 %v475
  %708 = vmatprep.subr.bf16.mxu0 %v478
  %709 = vmatpush1.bf16.msra.mxu0 %v477
  %710 = vmatprep.subr.bf16.mxu0 %v480
  %711 = vmatpush1.bf16.msra.mxu0 %v479
  %712 = vmatprep.subr.bf16.mxu0 %v482
  %713 = vmatpush1.bf16.msra.mxu0 %v481
  %714 = vmatprep.subr.bf16.mxu0 %v484
  %715 = vmatpush1.bf16.msra.mxu0 %v483
  %716 = vmatprep.subr.bf16.mxu0 %v486
  %717 = vmatpush1.bf16.msra.mxu0 %v485
  %718 = vmatprep.subr.bf16.mxu0 %v488
  %719 = vmatpush1.bf16.msra.mxu0 %v487
  %720 = vmatprep.subr.bf16.mxu0 %v490
  %721 = vmatpush1.bf16.msra.mxu0 %v489
  %722 = vmatprep.subr.bf16.mxu0 %v492
  %723 = vmatpush1.bf16.msra.mxu0 %v491
  %724 = vmatprep.subr.bf16.mxu0 %v494
  %725 = vmatpush1.bf16.msra.mxu0 %v493
  %726 = vmatprep.mubr.bf16.mxu0 %v85
  %727 = vmatmul.mubr.bf16.gmra.mrb[0].mxu0 %v84
  %v728 = vpop.f32.mrb[0].mxu0
  %v729 = vadd.f32 %v626, %v728
  %v730 = vpop.f32.mrb[0].mxu0
  %v731 = vadd.f32 %v628, %v730
  %v732 = vpop.f32.mrb[0].mxu0
  %v733 = vadd.f32 %v630, %v732
  %v734 = vpop.f32.mrb[0].mxu0
  %v735 = vadd.f32 %v632, %v734
  %736 = vmatprep.mubr.bf16.mxu0 %v89
  %737 = vmatmul.mubr.bf16.gmra.mrb[0].mxu0 %v88
  %v738 = vpop.f32.mrb[0].mxu0
  %v739 = vadd.f32 %v636, %v738
  %v740 = vpop.f32.mrb[0].mxu0
  %v741 = vadd.f32 %v638, %v740
  %v742 = vpop.f32.mrb[0].mxu0
  %v743 = vadd.f32 %v640, %v742
  %v744 = vpop.f32.mrb[0].mxu0
  %v745 = vadd.f32 %v642, %v744
  %746 = vmatprep.mubr.bf16.mxu0 %v93
  %747 = vmatmul.mubr.bf16.gmra.mrb[0].mxu0 %v92
  %v748 = vpop.f32.mrb[0].mxu0
  %v749 = vadd.f32 %v646, %v748
  %v750 = vpop.f32.mrb[0].mxu0
  %v751 = vadd.f32 %v648, %v750
  %v752 = vpop.f32.mrb[0].mxu0
  %v753 = vadd.f32 %v650, %v752
  %v754 = vpop.f32.mrb[0].mxu0
  %v755 = vadd.f32 %v652, %v754
  %756 = vmatprep.mubr.bf16.mxu0 %v97
  %757 = vmatmul.mubr.bf16.gmra.mrb[0].mxu0 %v96
  %v758 = vpop.f32.mrb[0].mxu0
  %v759 = vadd.f32 %v656, %v758
  %v760 = vpop.f32.mrb[0].mxu0
  %v761 = vadd.f32 %v658, %v760
  %v762 = vpop.f32.mrb[0].mxu0
  %v763 = vadd.f32 %v660, %v762
  %v764 = vpop.f32.mrb[0].mxu0
  %v765 = vadd.f32 %v662, %v764
  %766 = vmatprep.mubr.bf16.mxu0 %v101
  %767 = vmatmul.mubr.bf16.gmra.mrb[0].mxu0 %v100
  %v768 = vpop.f32.mrb[0].mxu0
  %v769 = vadd.f32 %v666, %v768
  %v770 = vpop.f32.mrb[0].mxu0
  %v771 = vadd.f32 %v668, %v770
  %v772 = vpop.f32.mrb[0].mxu0
  %v773 = vadd.f32 %v670, %v772
  %v774 = vpop.f32.mrb[0].mxu0
  %v775 = vadd.f32 %v672, %v774
  %776 = vmatprep.mubr.bf16.mxu0 %v105
  %777 = vmatmul.mubr.bf16.gmra.mrb[0].mxu0 %v104
  %v778 = vpop.f32.mrb[0].mxu0
  %v779 = vadd.f32 %v676, %v778
  %v780 = vpop.f32.mrb[0].mxu0
  %v781 = vadd.f32 %v678, %v780
  %v782 = vpop.f32.mrb[0].mxu0
  %v783 = vadd.f32 %v680, %v782
  %v784 = vpop.f32.mrb[0].mxu0
  %v785 = vadd.f32 %v682, %v784
  %786 = vmatprep.mubr.bf16.mxu0 %v109
  %787 = vmatmul.mubr.bf16.gmra.mrb[0].mxu0 %v108
  %v788 = vpop.f32.mrb[0].mxu0
  %v789 = vadd.f32 %v686, %v788
  %v790 = vpop.f32.mrb[0].mxu0
  %v791 = vadd.f32 %v688, %v790
  %v792 = vpop.f32.mrb[0].mxu0
  %v793 = vadd.f32 %v690, %v792
  %v794 = vpop.f32.mrb[0].mxu0
  %v795 = vadd.f32 %v692, %v794
  %796 = vdwg.mxu0
  %797 = vmatprep.subr.bf16.mxu0 %v496
  %798 = vmatpush1.bf16.msra.mxu0 %v495
  %799 = vmatprep.subr.bf16.mxu0 %v498
  %800 = vmatpush1.bf16.msra.mxu0 %v497
  %801 = vmatprep.subr.bf16.mxu0 %v500
  %802 = vmatpush1.bf16.msra.mxu0 %v499
  %803 = vmatprep.subr.bf16.mxu0 %v502
  %804 = vmatpush1.bf16.msra.mxu0 %v501
  %805 = vmatprep.subr.bf16.mxu0 %v504
  %806 = vmatpush1.bf16.msra.mxu0 %v503
  %807 = vmatprep.subr.bf16.mxu0 %v506
  %808 = vmatpush1.bf16.msra.mxu0 %v505
  %809 = vmatprep.subr.bf16.mxu0 %v508
  %810 = vmatpush1.bf16.msra.mxu0 %v507
  %811 = vmatprep.subr.bf16.mxu0 %v510
  %812 = vmatpush1.bf16.msra.mxu0 %v509
  %813 = vmatprep.subr.bf16.mxu0 0
  %814 = vmatpush1.bf16.msra.mxu0 0
  %815 = vmatprep.subr.bf16.mxu0 0
  %816 = vmatpush1.bf16.msra.mxu0 0
  %817 = vmatprep.subr.bf16.mxu0 0
  %818 = vmatpush1.bf16.msra.mxu0 0
  %819 = vmatprep.subr.bf16.mxu0 0
  %820 = vmatpush1.bf16.msra.mxu0 0
  %821 = vmatprep.subr.bf16.mxu0 0
  %822 = vmatpush1.bf16.msra.mxu0 0
  %823 = vmatprep.subr.bf16.mxu0 0
  %824 = vmatpush1.bf16.msra.mxu0 0
  %825 = vmatprep.subr.bf16.mxu0 0
  %826 = vmatpush1.bf16.msra.mxu0 0
  %827 = vmatprep.subr.bf16.mxu0 0
  %828 = vmatpush1.bf16.msra.mxu0 0
  %829 = vmatprep.mubr.bf16.mxu0 0
  %830 = vmatmul.mubr.bf16.gmra.mrb[0].mxu0 %v86
  %v831 = vpop.f32.mrb[0].mxu0
  %v832 = vadd.f32 %v729, %v831
  %v833 = vpop.f32.mrb[0].mxu0
  %v834 = vadd.f32 %v731, %v833
  %v835 = vpop.f32.mrb[0].mxu0
  %v836 = vadd.f32 %v733, %v835
  %v837 = vpop.f32.mrb[0].mxu0
  %v838 = vadd.f32 %v735, %v837
  %839 = vmatprep.mubr.bf16.mxu0 0
  %840 = vmatmul.mubr.bf16.gmra.mrb[0].mxu0 %v90
  %v841 = vpop.f32.mrb[0].mxu0
  %v842 = vadd.f32 %v739, %v841
  %v843 = vpop.f32.mrb[0].mxu0
  %v844 = vadd.f32 %v741, %v843
  %v845 = vpop.f32.mrb[0].mxu0
  %v846 = vadd.f32 %v743, %v845
  %v847 = vpop.f32.mrb[0].mxu0
  %v848 = vadd.f32 %v745, %v847
  %849 = vmatprep.mubr.bf16.mxu0 0
  %850 = vmatmul.mubr.bf16.gmra.mrb[0].mxu0 %v94
  %v851 = vpop.f32.mrb[0].mxu0
  %v852 = vadd.f32 %v749, %v851
  %v853 = vpop.f32.mrb[0].mxu0
  %v854 = vadd.f32 %v751, %v853
  %v855 = vpop.f32.mrb[0].mxu0
  %v856 = vadd.f32 %v753, %v855
  %v857 = vpop.f32.mrb[0].mxu0
  %v858 = vadd.f32 %v755, %v857
  %859 = vmatprep.mubr.bf16.mxu0 0
  %860 = vmatmul.mubr.bf16.gmra.mrb[0].mxu0 %v98
  %v861 = vpop.f32.mrb[0].mxu0
  %v862 = vadd.f32 %v759, %v861
  %v863 = vpop.f32.mrb[0].mxu0
  %v864 = vadd.f32 %v761, %v863
  %v865 = vpop.f32.mrb[0].mxu0
  %v866 = vadd.f32 %v763, %v865
  %v867 = vpop.f32.mrb[0].mxu0
  %v868 = vadd.f32 %v765, %v867
  %869 = vmatprep.mubr.bf16.mxu0 0
  %870 = vmatmul.mubr.bf16.gmra.mrb[0].mxu0 %v102
  %v871 = vpop.f32.mrb[0].mxu0
  %v872 = vadd.f32 %v769, %v871
  %v873 = vpop.f32.mrb[0].mxu0
  %v874 = vadd.f32 %v771, %v873
  %v875 = vpop.f32.mrb[0].mxu0
  %v876 = vadd.f32 %v773, %v875
  %v877 = vpop.f32.mrb[0].mxu0
  %v878 = vadd.f32 %v775, %v877
  %879 = vmatprep.mubr.bf16.mxu0 0
  %880 = vmatmul.mubr.bf16.gmra.mrb[0].mxu0 %v106
  %v881 = vpop.f32.mrb[0].mxu0
  %v882 = vadd.f32 %v779, %v881
  %v883 = vpop.f32.mrb[0].mxu0
  %v884 = vadd.f32 %v781, %v883
  %v885 = vpop.f32.mrb[0].mxu0
  %v886 = vadd.f32 %v783, %v885
  %v887 = vpop.f32.mrb[0].mxu0
  %v888 = vadd.f32 %v785, %v887
  %889 = vmatprep.mubr.bf16.mxu0 0
  %890 = vmatmul.mubr.bf16.gmra.mrb[0].mxu0 %v110
  %v891 = vpop.f32.mrb[0].mxu0
  %v892 = vadd.f32 %v789, %v891
  %v893 = vpop.f32.mrb[0].mxu0
  %v894 = vadd.f32 %v791, %v893
  %v895 = vpop.f32.mrb[0].mxu0
  %v896 = vadd.f32 %v793, %v895
  %v897 = vpop.f32.mrb[0].mxu0
  %v898 = vadd.f32 %v795, %v897
  %899 = vdwg.mxu0
  %v900 = vadd.f32 %v832, %v836
  %v901 = vadd.f32 %v900, %v842
  %v902 = vadd.f32 %v901, %v846
  %v903 = vadd.f32 %v902, %v852
  %v904 = vadd.f32 %v903, %v856
  %v905 = vadd.f32 %v904, %v862
  %v906 = vadd.f32 %v905, %v866
  %v907 = vadd.f32 %v906, %v872
  %v908 = vadd.f32 %v907, %v876
  %v909 = vadd.f32 %v908, %v882
  %v910 = vadd.f32 %v909, %v886
  %v911 = vadd.f32 %v910, %v892
  %v912 = vadd.f32 %v911, %v896
  %v913 = vrot.slane %v912, 4
  %v914 = vadd.f32 %v912, %v913
  %v915 = vrot.slane %v914, 2
  %v916 = vadd.f32 %v914, %v915
  %v917 = vrot.slane %v916, 1
  %v918 = vadd.f32 %v916, %v917
  %vm919 = vcmask 785408
  %v920 = vsel %vm919, %v834, 0.0
  %v921 = vsel %vm919, %v838, 0.0
  %v922 = vadd.f32 %v920, %v921
  %v923 = vsel %vm919, %v844, 0.0
  %v924 = vadd.f32 %v922, %v923
  %v925 = vsel %vm919, %v848, 0.0
  %v926 = vadd.f32 %v924, %v925
  %v927 = vsel %vm919, %v854, 0.0
  %v928 = vadd.f32 %v926, %v927
  %v929 = vsel %vm919, %v858, 0.0
  %v930 = vadd.f32 %v928, %v929
  %v931 = vsel %vm919, %v864, 0.0
  %v932 = vadd.f32 %v930, %v931
  %v933 = vsel %vm919, %v868, 0.0
  %v934 = vadd.f32 %v932, %v933
  %v935 = vsel %vm919, %v874, 0.0
  %v936 = vadd.f32 %v934, %v935
  %v937 = vsel %vm919, %v878, 0.0
  %v938 = vadd.f32 %v936, %v937
  %v939 = vsel %vm919, %v884, 0.0
  %v940 = vadd.f32 %v938, %v939
  %v941 = vsel %vm919, %v888, 0.0
  %v942 = vadd.f32 %v940, %v941
  %v943 = vsel %vm919, %v894, 0.0
  %v944 = vadd.f32 %v942, %v943
  %v945 = vsel %vm919, %v898, 0.0
  %v946 = vadd.f32 %v944, %v945
  %v947 = vrot.slane %v946, 4
  %v948 = vadd.f32 %v946, %v947
  %v949 = vrot.slane %v948, 2
  %v950 = vadd.f32 %v948, %v949
  %v951 = vrot.slane %v950, 1
  %v952 = vadd.f32 %v950, %v951
  %954 = vrot.lane.b32.xlu0 %v918, 112
  %v955 = vpop.permute.xlu0 %954
  %v957 = vadd.f32 %v918, %v955
  %958 = vrot.lane.b32.xlu0 %v918, 96
  %v959 = vpop.permute.xlu0 %958
  %v961 = vadd.f32 %v957, %v959
  %962 = vrot.lane.b32.xlu0 %v918, 80
  %v963 = vpop.permute.xlu0 %962
  %v965 = vadd.f32 %v961, %v963
  %966 = vrot.lane.b32.xlu0 %v918, 64
  %v967 = vpop.permute.xlu0 %966
  %v969 = vadd.f32 %v965, %v967
  %970 = vrot.lane.b32.xlu0 %v918, 48
  %v971 = vpop.permute.xlu0 %970
  %v973 = vadd.f32 %v969, %v971
  %974 = vrot.lane.b32.xlu0 %v918, 32
  %v975 = vpop.permute.xlu0 %974
  %v977 = vadd.f32 %v973, %v975
  %978 = vrot.lane.b32.xlu0 %v918, 16
  %v979 = vpop.permute.xlu0 %978
  %v981 = vadd.f32 %v977, %v979
  %v982 = vadd.f32 %v981, %v952
  %984 = vrot.lane.b32.xlu0 %v952, 112
  %v985 = vpop.permute.xlu0 %984
  %v987 = vadd.f32 %v982, %v985
  %988 = vrot.lane.b32.xlu0 %v952, 96
  %v989 = vpop.permute.xlu0 %988
  %v991 = vadd.f32 %v987, %v989
  %992 = vrot.lane.b32.xlu0 %v952, 80
  %v993 = vpop.permute.xlu0 %992
  %v995 = vadd.f32 %v991, %v993
  %996 = vrot.lane.b32.xlu0 %v952, 64
  %v997 = vpop.permute.xlu0 %996
  %v999 = vadd.f32 %v995, %v997
  %1000 = vrot.lane.b32.xlu0 %v952, 48
  %v1001 = vpop.permute.xlu0 %1000
  %v1003 = vadd.f32 %v999, %v1001
  %v1004 = vmul.f32 %v832, %v832
  %v1005 = vmul.f32 %v834, %v834
  %v1006 = vmul.f32 %v836, %v836
  %v1007 = vmul.f32 %v838, %v838
  %v1008 = vmul.f32 %v842, %v842
  %v1009 = vmul.f32 %v844, %v844
  %v1010 = vmul.f32 %v846, %v846
  %v1011 = vmul.f32 %v848, %v848
  %v1012 = vmul.f32 %v852, %v852
  %v1013 = vmul.f32 %v854, %v854
  %v1014 = vmul.f32 %v856, %v856
  %v1015 = vmul.f32 %v858, %v858
  %v1016 = vmul.f32 %v862, %v862
  %v1017 = vmul.f32 %v864, %v864
  %v1018 = vmul.f32 %v866, %v866
  %v1019 = vmul.f32 %v868, %v868
  %v1020 = vmul.f32 %v872, %v872
  %v1021 = vmul.f32 %v874, %v874
  %v1022 = vmul.f32 %v876, %v876
  %v1023 = vmul.f32 %v878, %v878
  %v1024 = vmul.f32 %v882, %v882
  %v1025 = vmul.f32 %v884, %v884
  %v1026 = vmul.f32 %v886, %v886
  %v1027 = vmul.f32 %v888, %v888
  %v1028 = vmul.f32 %v892, %v892
  %v1029 = vmul.f32 %v894, %v894
  %v1030 = vmul.f32 %v896, %v896
  %v1031 = vmul.f32 %v898, %v898
  %v1032 = vadd.f32 %v1004, %v1006
  %v1033 = vadd.f32 %v1032, %v1008
  %v1034 = vadd.f32 %v1033, %v1010
  %v1035 = vadd.f32 %v1034, %v1012
  %v1036 = vadd.f32 %v1035, %v1014
  %v1037 = vadd.f32 %v1036, %v1016
  %v1038 = vadd.f32 %v1037, %v1018
  %v1039 = vadd.f32 %v1038, %v1020
  %v1040 = vadd.f32 %v1039, %v1022
  %v1041 = vadd.f32 %v1040, %v1024
  %v1042 = vadd.f32 %v1041, %v1026
  %v1043 = vadd.f32 %v1042, %v1028
  %v1044 = vadd.f32 %v1043, %v1030
  %v1045 = vrot.slane %v1044, 4
  %v1046 = vadd.f32 %v1044, %v1045
  %v1047 = vrot.slane %v1046, 2
  %v1048 = vadd.f32 %v1046, %v1047
  %v1049 = vrot.slane %v1048, 1
  %v1050 = vadd.f32 %v1048, %v1049
  %v1051 = vsel %vm919, %v1005, 0.0
  %v1052 = vsel %vm919, %v1007, 0.0
  %v1053 = vadd.f32 %v1051, %v1052
  %v1054 = vsel %vm919, %v1009, 0.0
  %v1055 = vadd.f32 %v1053, %v1054
  %v1056 = vsel %vm919, %v1011, 0.0
  %v1057 = vadd.f32 %v1055, %v1056
  %v1058 = vsel %vm919, %v1013, 0.0
  %v1059 = vadd.f32 %v1057, %v1058
  %v1060 = vsel %vm919, %v1015, 0.0
  %v1061 = vadd.f32 %v1059, %v1060
  %v1062 = vsel %vm919, %v1017, 0.0
  %v1063 = vadd.f32 %v1061, %v1062
  %v1064 = vsel %vm919, %v1019, 0.0
  %v1065 = vadd.f32 %v1063, %v1064
  %v1066 = vsel %vm919, %v1021, 0.0
  %v1067 = vadd.f32 %v1065, %v1066
  %v1068 = vsel %vm919, %v1023, 0.0
  %v1069 = vadd.f32 %v1067, %v1068
  %v1070 = vsel %vm919, %v1025, 0.0
  %v1071 = vadd.f32 %v1069, %v1070
  %v1072 = vsel %vm919, %v1027, 0.0
  %v1073 = vadd.f32 %v1071, %v1072
  %v1074 = vsel %vm919, %v1029, 0.0
  %v1075 = vadd.f32 %v1073, %v1074
  %v1076 = vsel %vm919, %v1031, 0.0
  %v1077 = vadd.f32 %v1075, %v1076
  %v1078 = vrot.slane %v1077, 4
  %v1079 = vadd.f32 %v1077, %v1078
  %v1080 = vrot.slane %v1079, 2
  %v1081 = vadd.f32 %v1079, %v1080
  %v1082 = vrot.slane %v1081, 1
  %v1083 = vadd.f32 %v1081, %v1082
  %1085 = vrot.lane.b32.xlu0 %v1050, 112
  %v1086 = vpop.permute.xlu0 %1085
  %v1088 = vadd.f32 %v1050, %v1086
  %1089 = vrot.lane.b32.xlu0 %v1050, 96
  %v1090 = vpop.permute.xlu0 %1089
  %v1092 = vadd.f32 %v1088, %v1090
  %1093 = vrot.lane.b32.xlu0 %v1050, 80
  %v1094 = vpop.permute.xlu0 %1093
  %v1096 = vadd.f32 %v1092, %v1094
  %1097 = vrot.lane.b32.xlu0 %v1050, 64
  %v1098 = vpop.permute.xlu0 %1097
  %v1100 = vadd.f32 %v1096, %v1098
  %1101 = vrot.lane.b32.xlu0 %v1050, 48
  %v1102 = vpop.permute.xlu0 %1101
  %v1104 = vadd.f32 %v1100, %v1102
  %1105 = vrot.lane.b32.xlu0 %v1050, 32
  %v1106 = vpop.permute.xlu0 %1105
  %v1108 = vadd.f32 %v1104, %v1106
  %1109 = vrot.lane.b32.xlu0 %v1050, 16
  %v1110 = vpop.permute.xlu0 %1109
  %v1112 = vadd.f32 %v1108, %v1110
  %v1113 = vadd.f32 %v1112, %v1083
  %1115 = vrot.lane.b32.xlu0 %v1083, 112
  %v1116 = vpop.permute.xlu0 %1115
  %v1118 = vadd.f32 %v1113, %v1116
  %1119 = vrot.lane.b32.xlu0 %v1083, 96
  %v1120 = vpop.permute.xlu0 %1119
  %v1122 = vadd.f32 %v1118, %v1120
  %1123 = vrot.lane.b32.xlu0 %v1083, 80
  %v1124 = vpop.permute.xlu0 %1123
  %v1126 = vadd.f32 %v1122, %v1124
  %1127 = vrot.lane.b32.xlu0 %v1083, 64
  %v1128 = vpop.permute.xlu0 %1127
  %v1130 = vadd.f32 %v1126, %v1128
  %1131 = vrot.lane.b32.xlu0 %v1083, 48
  %v1132 = vpop.permute.xlu0 %1131
  %v1134 = vadd.f32 %v1130, %v1132
  %v1135 = vrcp.pop 392.0
  %v1136 = vmul.f32 %v1003, %v1135
  %v1137 = vmul.f32 %v1134, %v1135
  %v1138 = vmul.f32 %v1136, %v1136
  %v1139 = vsub.f32 %v1137, %v1138
  %v1140 = vld [vmem:[%s5] sm:$0x1]
  %v1141 = vadd.f32 %v1139, 1e-05
  %v1142 = vrsqrt.pop %v1141
  %v1143 = vmul.f32 %v1140, %v1142
  %v1144 = vld [vmem:[%s6] sm:$0x1]
  %v1145 = vmul.f32 %v1136, %v1143
  %v1146 = vsub.f32 %v1144, %v1145
  %v1148 = vlaneseq
  %v1149 = vshrl.u32 %v1148, 7
  %v1150 = vsub.s32 0, %v1149
  %v1151 = vrot.slane %v1143, %v1150
  %1152 = vrot.lane.b32.xlu0 %v1151, 16
  %v1153 = vpop.permute.xlu0 %1152
  %1155 = vrot.lane.b32.xlu0 %v1151, 32
  %v1156 = vpop.permute.xlu0 %1155
  %1158 = vrot.lane.b32.xlu0 %v1151, 48
  %v1159 = vpop.permute.xlu0 %1158
  %1161 = vrot.lane.b32.xlu0 %v1151, 64
  %v1162 = vpop.permute.xlu0 %1161
  %1164 = vrot.lane.b32.xlu0 %v1151, 80
  %v1165 = vpop.permute.xlu0 %1164
  %1167 = vrot.lane.b32.xlu0 %v1151, 96
  %v1168 = vpop.permute.xlu0 %1167
  %1170 = vrot.lane.b32.xlu0 %v1151, 112
  %v1171 = vpop.permute.xlu0 %1170
  %vm1173 = vcmask 130048
  %v1174 = vsel %vm1173, %v1143, %v1153
  %vm1175 = vcmask 261120
  %v1176 = vsel %vm1175, %v1174, %v1156
  %vm1177 = vcmask 392192
  %v1178 = vsel %vm1177, %v1176, %v1159
  %vm1179 = vcmask 523264
  %v1180 = vsel %vm1179, %v1178, %v1162
  %vm1181 = vcmask 654336
  %v1182 = vsel %vm1181, %v1180, %v1165
  %v1183 = vsel %vm919, %v1182, %v1168
  %vm1184 = vcmask 916480
  %v1185 = vsel %vm1184, %v1183, %v1171
  %v1186 = vlaneseq
  %v1187 = vshrl.u32 %v1186, 7
  %v1188 = vsub.s32 0, %v1187
  %v1189 = vrot.slane %v1185, %v1188
  %v1190 = vlaneseq
  %v1191 = vshrl.u32 %v1190, 7
  %v1192 = vsub.s32 0, %v1191
  %v1193 = vrot.slane %v1182, %v1192
  %v1194 = vmul.f32 %v832, %v1189
  %v1195 = vmul.f32 %v834, %v1193
  %v1196 = vmul.f32 %v836, %v1189
  %v1197 = vmul.f32 %v838, %v1193
  %v1198 = vmul.f32 %v842, %v1189
  %v1199 = vmul.f32 %v844, %v1193
  %v1200 = vmul.f32 %v846, %v1189
  %v1201 = vmul.f32 %v848, %v1193
  %v1202 = vmul.f32 %v852, %v1189
  %v1203 = vmul.f32 %v854, %v1193
  %v1204 = vmul.f32 %v856, %v1189
  %v1205 = vmul.f32 %v858, %v1193
  %v1206 = vmul.f32 %v862, %v1189
  %v1207 = vmul.f32 %v864, %v1193
  %v1208 = vmul.f32 %v866, %v1189
  %v1209 = vmul.f32 %v868, %v1193
  %v1210 = vmul.f32 %v872, %v1189
  %v1211 = vmul.f32 %v874, %v1193
  %v1212 = vmul.f32 %v876, %v1189
  %v1213 = vmul.f32 %v878, %v1193
  %v1214 = vmul.f32 %v882, %v1189
  %v1215 = vmul.f32 %v884, %v1193
  %v1216 = vmul.f32 %v886, %v1189
  %v1217 = vmul.f32 %v888, %v1193
  %v1218 = vmul.f32 %v892, %v1189
  %v1219 = vmul.f32 %v894, %v1193
  %v1221 = vlaneseq
  %v1222 = vshrl.u32 %v1221, 7
  %v1223 = vsub.s32 0, %v1222
  %v1224 = vrot.slane %v1146, %v1223
  %1225 = vrot.lane.b32.xlu0 %v1224, 16
  %v1226 = vpop.permute.xlu0 %1225
  %1228 = vrot.lane.b32.xlu0 %v1224, 32
  %v1229 = vpop.permute.xlu0 %1228
  %1231 = vrot.lane.b32.xlu0 %v1224, 48
  %v1232 = vpop.permute.xlu0 %1231
  %1234 = vrot.lane.b32.xlu0 %v1224, 64
  %v1235 = vpop.permute.xlu0 %1234
  %1237 = vrot.lane.b32.xlu0 %v1224, 80
  %v1238 = vpop.permute.xlu0 %1237
  %1240 = vrot.lane.b32.xlu0 %v1224, 96
  %v1241 = vpop.permute.xlu0 %1240
  %1243 = vrot.lane.b32.xlu0 %v1224, 112
  %v1244 = vpop.permute.xlu0 %1243
  %v1246 = vsel %vm1173, %v1146, %v1226
  %v1247 = vsel %vm1175, %v1246, %v1229
  %v1248 = vsel %vm1177, %v1247, %v1232
  %v1249 = vsel %vm1179, %v1248, %v1235
  %v1250 = vsel %vm1181, %v1249, %v1238
  %v1251 = vsel %vm919, %v1250, %v1241
  %v1252 = vsel %vm1184, %v1251, %v1244
  %v1253 = vlaneseq
  %v1254 = vshrl.u32 %v1253, 7
  %v1255 = vsub.s32 0, %v1254
  %v1256 = vrot.slane %v1252, %v1255
  %v1257 = vlaneseq
  %v1258 = vshrl.u32 %v1257, 7
  %v1259 = vsub.s32 0, %v1258
  %v1260 = vrot.slane %v1250, %v1259
  %v1261 = vadd.f32 %v1194, %v1256
  %v1262 = vadd.f32 %v1195, %v1260
  %v1263 = vadd.f32 %v1196, %v1256
  %v1264 = vadd.f32 %v1197, %v1260
  %v1265 = vadd.f32 %v1198, %v1256
  %v1266 = vadd.f32 %v1199, %v1260
  %v1267 = vadd.f32 %v1200, %v1256
  %v1268 = vadd.f32 %v1201, %v1260
  %v1269 = vadd.f32 %v1202, %v1256
  %v1270 = vadd.f32 %v1203, %v1260
  %v1271 = vadd.f32 %v1204, %v1256
  %v1272 = vadd.f32 %v1205, %v1260
  %v1273 = vadd.f32 %v1206, %v1256
  %v1274 = vadd.f32 %v1207, %v1260
  %v1275 = vadd.f32 %v1208, %v1256
  %v1276 = vadd.f32 %v1209, %v1260
  %v1277 = vadd.f32 %v1210, %v1256
  %v1278 = vadd.f32 %v1211, %v1260
  %v1279 = vadd.f32 %v1212, %v1256
  %v1280 = vadd.f32 %v1213, %v1260
  %v1281 = vadd.f32 %v1214, %v1256
  %v1282 = vadd.f32 %v1215, %v1260
  %v1283 = vadd.f32 %v1216, %v1256
  %v1284 = vadd.f32 %v1217, %v1260
  %v1285 = vadd.f32 %v1218, %v1256
  %v1286 = vadd.f32 %v1219, %v1260
  %v1287 = vmax.f32 %v1261, 0.0
  %v1288 = vmax.f32 %v1262, 0.0
  %v1289 = vmax.f32 %v1263, 0.0
  %v1290 = vmax.f32 %v1264, 0.0
  %v1291 = vmax.f32 %v1265, 0.0
  %v1292 = vmax.f32 %v1266, 0.0
  %v1293 = vmax.f32 %v1267, 0.0
  %v1294 = vmax.f32 %v1268, 0.0
  %v1295 = vmax.f32 %v1269, 0.0
  %v1296 = vmax.f32 %v1270, 0.0
  %v1297 = vmax.f32 %v1271, 0.0
  %v1298 = vmax.f32 %v1272, 0.0
  %v1299 = vmax.f32 %v1273, 0.0
  %v1300 = vmax.f32 %v1274, 0.0
  %v1301 = vmax.f32 %v1275, 0.0
  %v1302 = vmax.f32 %v1276, 0.0
  %v1303 = vmax.f32 %v1277, 0.0
  %v1304 = vmax.f32 %v1278, 0.0
  %v1305 = vmax.f32 %v1279, 0.0
  %v1306 = vmax.f32 %v1280, 0.0
  %v1307 = vmax.f32 %v1281, 0.0
  %v1308 = vmax.f32 %v1282, 0.0
  %v1309 = vmax.f32 %v1283, 0.0
  %v1310 = vmax.f32 %v1284, 0.0
  %v1311 = vmax.f32 %v1285, 0.0
  %v1312 = vmax.f32 %v1286, 0.0
  %v1313 = vld [vmem:[%s12] sm:$0xff]
  %v1314 = vld [vmem:[%s12 + $0x8] sm:$0xff]
  %v1315 = vld [vmem:[%s12 + $0x10] sm:$0xff]
  %v1316 = vld [vmem:[%s12 + $0x18] sm:$0xff]
  %v1317 = vld [vmem:[%s12 + $0x20] sm:$0xff]
  %v1318 = vld [vmem:[%s12 + $0x28] sm:$0xff]
  %v1319 = vld [vmem:[%s12 + $0x30] sm:$0xff]
  %v1320 = vld [vmem:[%s12 + $0x38] sm:$0xff]
  %v1321 = vld [vmem:[%s12 + $0x40] sm:$0xff]
  %v1322 = vld [vmem:[%s12 + $0x48] sm:$0xff]
  %v1323 = vld [vmem:[%s12 + $0x50] sm:$0xff]
  %v1324 = vld [vmem:[%s12 + $0x58] sm:$0xff]
  %v1325 = vld [vmem:[%s12 + $0x60] sm:$0xff]
  %1327 = vset.pattern.permute.xlu0 0
  %1328 = vperm.xlu0 %1327, %v1313
  %v1329 = vpop.permute.xlu0 %1328
  %1332 = vset.pattern.permute.xlu0 0
  %1333 = vperm.xlu0 %1332, %v1314
  %v1334 = vpop.permute.xlu0 %1333
  %1337 = vset.pattern.permute.xlu0 0
  %1338 = vperm.xlu0 %1337, %v1315
  %v1339 = vpop.permute.xlu0 %1338
  %1342 = vset.pattern.permute.xlu0 0
  %1343 = vperm.xlu0 %1342, %v1316
  %v1344 = vpop.permute.xlu0 %1343
  %1347 = vset.pattern.permute.xlu0 0
  %1348 = vperm.xlu0 %1347, %v1317
  %v1349 = vpop.permute.xlu0 %1348
  %1352 = vset.pattern.permute.xlu0 0
  %1353 = vperm.xlu0 %1352, %v1318
  %v1354 = vpop.permute.xlu0 %1353
  %1357 = vset.pattern.permute.xlu0 0
  %1358 = vperm.xlu0 %1357, %v1319
  %v1359 = vpop.permute.xlu0 %1358
  %1362 = vset.pattern.permute.xlu0 0
  %1363 = vperm.xlu0 %1362, %v1320
  %v1364 = vpop.permute.xlu0 %1363
  %1367 = vset.pattern.permute.xlu0 0
  %1368 = vperm.xlu0 %1367, %v1321
  %v1369 = vpop.permute.xlu0 %1368
  %1372 = vset.pattern.permute.xlu0 0
  %1373 = vperm.xlu0 %1372, %v1322
  %v1374 = vpop.permute.xlu0 %1373
  %1377 = vset.pattern.permute.xlu0 0
  %1378 = vperm.xlu0 %1377, %v1323
  %v1379 = vpop.permute.xlu0 %1378
  %1382 = vset.pattern.permute.xlu0 0
  %1383 = vperm.xlu0 %1382, %v1324
  %v1384 = vpop.permute.xlu0 %1383
  %1387 = vset.pattern.permute.xlu0 0
  %1388 = vperm.xlu0 %1387, %v1325
  %v1389 = vpop.permute.xlu0 %1388
  %v1391 = vmul.f32 %v1287, %v1329
  %v1392 = vmul.f32 %v1288, %v1329
  %v1393 = vmul.f32 %v1289, %v1334
  %v1394 = vmul.f32 %v1290, %v1334
  %v1395 = vmul.f32 %v1291, %v1339
  %v1396 = vmul.f32 %v1292, %v1339
  %v1397 = vmul.f32 %v1293, %v1344
  %v1398 = vmul.f32 %v1294, %v1344
  %v1399 = vmul.f32 %v1295, %v1349
  %v1400 = vmul.f32 %v1296, %v1349
  %v1401 = vmul.f32 %v1297, %v1354
  %v1402 = vmul.f32 %v1298, %v1354
  %v1403 = vmul.f32 %v1299, %v1359
  %v1404 = vmul.f32 %v1300, %v1359
  %v1405 = vmul.f32 %v1301, %v1364
  %v1406 = vmul.f32 %v1302, %v1364
  %v1407 = vmul.f32 %v1303, %v1369
  %v1408 = vmul.f32 %v1304, %v1369
  %v1409 = vmul.f32 %v1305, %v1374
  %v1410 = vmul.f32 %v1306, %v1374
  %v1411 = vmul.f32 %v1307, %v1379
  %v1412 = vmul.f32 %v1308, %v1379
  %v1413 = vmul.f32 %v1309, %v1384
  %v1414 = vmul.f32 %v1310, %v1384
  %v1415 = vmul.f32 %v1311, %v1389
  %v1416 = vmul.f32 %v1312, %v1389
  %1427 = vrot.lane.b32.xlu0 %v1393, 96
  %v1428 = vpop.permute.xlu0 %1427
  %1429 = vrot.lane.b32.xlu0 %v1394, 96
  %v1430 = vpop.permute.xlu0 %1429
  %1431 = vrot.lane.b32.xlu0 %v1397, 96
  %v1432 = vpop.permute.xlu0 %1431
  %1433 = vrot.lane.b32.xlu0 %v1398, 96
  %v1434 = vpop.permute.xlu0 %1433
  %1435 = vrot.lane.b32.xlu0 %v1401, 96
  %v1436 = vpop.permute.xlu0 %1435
  %1437 = vrot.lane.b32.xlu0 %v1402, 96
  %v1438 = vpop.permute.xlu0 %1437
  %1439 = vrot.lane.b32.xlu0 %v1405, 96
  %v1440 = vpop.permute.xlu0 %1439
  %1441 = vrot.lane.b32.xlu0 %v1406, 96
  %v1442 = vpop.permute.xlu0 %1441
  %1443 = vrot.lane.b32.xlu0 %v1409, 96
  %v1444 = vpop.permute.xlu0 %1443
  %1445 = vrot.lane.b32.xlu0 %v1410, 96
  %v1446 = vpop.permute.xlu0 %1445
  %v1447 = vsel %vm919, %v1428, %v1430
  %v1448 = vsel %vm919, %v1432, %v1434
  %v1449 = vsel %vm919, %v1436, %v1438
  %v1450 = vsel %vm919, %v1440, %v1442
  %v1451 = vsel %vm919, %v1444, %v1446
  %1477 = vrot.lane.b32.xlu0 %v1395, 64
  %v1478 = vpop.permute.xlu0 %1477
  %1479 = vrot.lane.b32.xlu0 %v1396, 64
  %v1480 = vpop.permute.xlu0 %1479
  %1481 = vrot.lane.b32.xlu0 %v1399, 64
  %v1482 = vpop.permute.xlu0 %1481
  %1483 = vrot.lane.b32.xlu0 %v1400, 64
  %v1484 = vpop.permute.xlu0 %1483
  %1485 = vrot.lane.b32.xlu0 %v1403, 64
  %v1486 = vpop.permute.xlu0 %1485
  %1487 = vrot.lane.b32.xlu0 %v1404, 64
  %v1488 = vpop.permute.xlu0 %1487
  %1489 = vrot.lane.b32.xlu0 %v1407, 64
  %v1490 = vpop.permute.xlu0 %1489
  %1491 = vrot.lane.b32.xlu0 %v1408, 64
  %v1492 = vpop.permute.xlu0 %1491
  %1493 = vrot.lane.b32.xlu0 %v1411, 64
  %v1494 = vpop.permute.xlu0 %1493
  %1495 = vrot.lane.b32.xlu0 %v1412, 64
  %v1496 = vpop.permute.xlu0 %1495
  %v1497 = vsel %vm1179, %v1478, %v1480
  %v1498 = vsel %vm1179, %v1482, %v1484
  %v1499 = vsel %vm1179, %v1486, %v1488
  %v1500 = vsel %vm1179, %v1490, %v1492
  %v1501 = vsel %vm1179, %v1494, %v1496
  %1519 = vrot.lane.b32.xlu0 %v1397, 32
  %v1520 = vpop.permute.xlu0 %1519
  %1521 = vrot.lane.b32.xlu0 %v1398, 32
  %v1522 = vpop.permute.xlu0 %1521
  %1523 = vrot.lane.b32.xlu0 %v1401, 32
  %v1524 = vpop.permute.xlu0 %1523
  %1525 = vrot.lane.b32.xlu0 %v1402, 32
  %v1526 = vpop.permute.xlu0 %1525
  %1527 = vrot.lane.b32.xlu0 %v1405, 32
  %v1528 = vpop.permute.xlu0 %1527
  %1529 = vrot.lane.b32.xlu0 %v1406, 32
  %v1530 = vpop.permute.xlu0 %1529
  %1531 = vrot.lane.b32.xlu0 %v1409, 32
  %v1532 = vpop.permute.xlu0 %1531
  %1533 = vrot.lane.b32.xlu0 %v1410, 32
  %v1534 = vpop.permute.xlu0 %1533
  %1535 = vrot.lane.b32.xlu0 %v1413, 32
  %v1536 = vpop.permute.xlu0 %1535
  %1537 = vrot.lane.b32.xlu0 %v1414, 32
  %v1538 = vpop.permute.xlu0 %1537
  %v1539 = vsel %vm1175, %v1520, %v1522
  %v1540 = vsel %vm1175, %v1524, %v1526
  %v1541 = vsel %vm1175, %v1528, %v1530
  %v1542 = vsel %vm1175, %v1532, %v1534
  %v1543 = vsel %vm1175, %v1536, %v1538
  %v1554 = vsel %vm919, %v1392, %v1428
  %v1555 = vsel %vm919, %v1396, %v1432
  %v1556 = vsel %vm919, %v1400, %v1436
  %v1557 = vsel %vm919, %v1404, %v1440
  %v1558 = vsel %vm919, %v1408, %v1444
  %v1559 = vsel %vm1179, %v1430, %v1478
  %v1560 = vsel %vm1179, %v1434, %v1482
  %v1561 = vsel %vm1179, %v1438, %v1486
  %v1562 = vsel %vm1179, %v1442, %v1490
  %v1563 = vsel %vm1179, %v1446, %v1494
  %v1564 = vsel %vm1175, %v1480, %v1520
  %v1565 = vsel %vm1175, %v1484, %v1524
  %v1566 = vsel %vm1175, %v1488, %v1528
  %v1567 = vsel %vm1175, %v1492, %v1532
  %v1568 = vsel %vm1175, %v1496, %v1536
  %v1569 = vpack.c.bf16 %v1395, %v1391
  %v1570 = vpack.c.bf16 %v1555, %v1554
  %v1571 = vpack.c.bf16 %v1448, %v1447
  %v1572 = vpack.c.bf16 %v1560, %v1559
  %v1573 = vpack.c.bf16 %v1498, %v1497
  %v1574 = vpack.c.bf16 %v1565, %v1564
  %v1575 = vpack.c.bf16 %v1540, %v1539
  %v1576 = vpack.c.bf16 %v1403, %v1399
  %v1577 = vpack.c.bf16 %v1404, %v1400
  %v1578 = vpack.c.bf16 %v1557, %v1556
  %v1579 = vpack.c.bf16 %v1450, %v1449
  %v1580 = vpack.c.bf16 %v1562, %v1561
  %v1581 = vpack.c.bf16 %v1500, %v1499
  %v1582 = vpack.c.bf16 %v1567, %v1566
  %v1583 = vpack.c.bf16 %v1542, %v1541
  %v1584 = vpack.c.bf16 %v1411, %v1407
  %v1585 = vpack.c.bf16 %v1412, %v1408
  %v1586 = vpack.c.bf16 %v1407, %v1407
  %v1587 = vpack.c.bf16 %v1558, %v1558
  %v1588 = vpack.c.bf16 %v1451, %v1451
  %v1589 = vpack.c.bf16 %v1563, %v1563
  %v1590 = vpack.c.bf16 %v1501, %v1501
  %v1591 = vpack.c.bf16 %v1568, %v1568
  %v1592 = vpack.c.bf16 %v1543, %v1543
  %v1593 = vpack.c.bf16 %v1415, %v1415
  %v1594 = vpack.c.bf16 %v1416, %v1416
  %v1595 = vld [vmem:[%s2] sm:$0xff]
  %v1596 = vld [vmem:[%s2 + $0x8] sm:$0xff]
  %v1597 = vld [vmem:[%s2 + $0x10] sm:$0xff]
  %v1598 = vld [vmem:[%s2 + $0x18] sm:$0xff]
  %v1599 = vld [vmem:[%s2 + $0x20] sm:$0xff]
  %v1600 = vld [vmem:[%s2 + $0x28] sm:$0xff]
  %v1601 = vld [vmem:[%s2 + $0x30] sm:$0xff]
  %v1602 = vld [vmem:[%s2 + $0x38] sm:$0xff]
  %v1603 = vld [vmem:[%s2 + $0x40] sm:$0xff]
  %v1604 = vld [vmem:[%s2 + $0x48] sm:$0xff]
  %v1605 = vld [vmem:[%s2 + $0x50] sm:$0xff]
  %v1606 = vld [vmem:[%s2 + $0x58] sm:$0xff]
  %v1607 = vld [vmem:[%s2 + $0x60] sm:$0xff]
  %v1608 = vld [vmem:[%s2 + $0x68] sm:$0xff]
  %v1609 = vld [vmem:[%s2 + $0x70] sm:$0xff]
  %v1610 = vld [vmem:[%s2 + $0x78] sm:$0xff]
  %v1611 = vld [vmem:[%s2 + $0x80] sm:$0xff]
  %v1612 = vld [vmem:[%s2 + $0x88] sm:$0xff]
  %v1613 = vld [vmem:[%s2 + $0x90] sm:$0xff]
  %v1614 = vld [vmem:[%s2 + $0x98] sm:$0xff]
  %v1615 = vld [vmem:[%s2 + $0xa0] sm:$0xff]
  %v1616 = vld [vmem:[%s2 + $0xa8] sm:$0xff]
  %v1617 = vld [vmem:[%s2 + $0xb0] sm:$0xff]
  %v1618 = vld [vmem:[%s2 + $0xb8] sm:$0xff]
  %v1619 = vld [vmem:[%s2 + $0xc0] sm:$0xff]
  %v1620 = vld [vmem:[%s2 + $0xc8] sm:$0xff]
  %v1621 = vld [vmem:[%s2 + $0xd0] sm:$0xff]
  %v1622 = vld [vmem:[%s2 + $0xd8] sm:$0xff]
  %v1623 = vld [vmem:[%s2 + $0xe0] sm:$0xff]
  %v1624 = vld [vmem:[%s2 + $0xe8] sm:$0xff]
  %v1625 = vld [vmem:[%s2 + $0xf0] sm:$0xff]
  %v1626 = vld [vmem:[%s2 + $0xf8] sm:$0xff]
  %v1627 = vld [vmem:[%s2 + $0x100] sm:$0xff]
  %v1628 = vld [vmem:[%s2 + $0x108] sm:$0xff]
  %v1629 = vld [vmem:[%s2 + $0x110] sm:$0xff]
  %v1630 = vld [vmem:[%s2 + $0x118] sm:$0xff]
  %v1631 = vld [vmem:[%s2 + $0x120] sm:$0xff]
  %v1632 = vld [vmem:[%s2 + $0x128] sm:$0xff]
  %v1633 = vld [vmem:[%s2 + $0x130] sm:$0xff]
  %v1634 = vld [vmem:[%s2 + $0x138] sm:$0xff]
  %v1635 = vld [vmem:[%s2 + $0x140] sm:$0xff]
  %v1636 = vld [vmem:[%s2 + $0x148] sm:$0xff]
  %v1637 = vld [vmem:[%s2 + $0x150] sm:$0xff]
  %v1638 = vld [vmem:[%s2 + $0x158] sm:$0xff]
  %v1639 = vld [vmem:[%s2 + $0x160] sm:$0xff]
  %v1640 = vld [vmem:[%s2 + $0x168] sm:$0xff]
  %v1641 = vld [vmem:[%s2 + $0x170] sm:$0xff]
  %v1642 = vld [vmem:[%s2 + $0x178] sm:$0xff]
  %v1643 = vld [vmem:[%s2 + $0x180] sm:$0xff]
  %v1644 = vld [vmem:[%s2 + $0x188] sm:$0xff]
  %v1645 = vld [vmem:[%s2 + $0x190] sm:$0xff]
  %v1646 = vld [vmem:[%s2 + $0x198] sm:$0xff]
  %v1647 = vld [vmem:[%s2 + $0x1a0] sm:$0xff]
  %v1648 = vld [vmem:[%s2 + $0x1a8] sm:$0xff]
  %v1649 = vld [vmem:[%s2 + $0x1b0] sm:$0xff]
  %v1650 = vld [vmem:[%s2 + $0x1b8] sm:$0xff]
  %v1651 = vld [vmem:[%s2 + $0x1c0] sm:$0xff]
  %v1652 = vld [vmem:[%s2 + $0x1c8] sm:$0xff]
  %v1653 = vld [vmem:[%s2 + $0x1d0] sm:$0xff]
  %v1654 = vld [vmem:[%s2 + $0x1d8] sm:$0xff]
  %v1655 = vld [vmem:[%s2 + $0x1e0] sm:$0xff]
  %v1656 = vld [vmem:[%s2 + $0x1e8] sm:$0xff]
  %v1657 = vld [vmem:[%s2 + $0x1f0] sm:$0xff]
  %v1658 = vld [vmem:[%s2 + $0x1f8] sm:$0xff]
  %v1659 = vld [vmem:[%s2 + $0x200] sm:$0xff]
  %v1660 = vld [vmem:[%s2 + $0x208] sm:$0xff]
  %v1661 = vld [vmem:[%s2 + $0x210] sm:$0xff]
  %v1662 = vld [vmem:[%s2 + $0x218] sm:$0xff]
  %v1663 = vld [vmem:[%s2 + $0x220] sm:$0xff]
  %v1664 = vld [vmem:[%s2 + $0x228] sm:$0xff]
  %v1665 = vld [vmem:[%s2 + $0x230] sm:$0xff]
  %v1666 = vld [vmem:[%s2 + $0x238] sm:$0xff]
  %v1667 = vld [vmem:[%s2 + $0x240] sm:$0xff]
  %v1668 = vld [vmem:[%s2 + $0x248] sm:$0xff]
  %v1669 = vld [vmem:[%s2 + $0x250] sm:$0xff]
  %v1670 = vld [vmem:[%s2 + $0x258] sm:$0xff]
  %v1671 = vld [vmem:[%s2 + $0x260] sm:$0xff]
  %v1672 = vld [vmem:[%s2 + $0x268] sm:$0xff]
  %v1673 = vld [vmem:[%s2 + $0x270] sm:$0xff]
  %v1674 = vld [vmem:[%s2 + $0x278] sm:$0xff]
  %v1675 = vld [vmem:[%s2 + $0x280] sm:$0xff]
  %v1676 = vld [vmem:[%s2 + $0x288] sm:$0xff]
  %v1677 = vld [vmem:[%s2 + $0x290] sm:$0xff]
  %v1678 = vld [vmem:[%s2 + $0x298] sm:$0xff]
  %v1679 = vld [vmem:[%s2 + $0x2a0] sm:$0xff]
  %v1680 = vld [vmem:[%s2 + $0x2a8] sm:$0xff]
  %v1681 = vld [vmem:[%s2 + $0x2b0] sm:$0xff]
  %v1682 = vld [vmem:[%s2 + $0x2b8] sm:$0xff]
  %v1683 = vld [vmem:[%s2 + $0x2c0] sm:$0xff]
  %v1684 = vld [vmem:[%s2 + $0x2c8] sm:$0xff]
  %v1685 = vld [vmem:[%s2 + $0x2d0] sm:$0xff]
  %v1686 = vld [vmem:[%s2 + $0x2d8] sm:$0xff]
  %v1687 = vld [vmem:[%s2 + $0x2e0] sm:$0xff]
  %v1688 = vld [vmem:[%s2 + $0x2e8] sm:$0xff]
  %v1689 = vld [vmem:[%s2 + $0x2f0] sm:$0xff]
  %v1690 = vld [vmem:[%s2 + $0x2f8] sm:$0xff]
  %v1691 = vld [vmem:[%s2 + $0x300] sm:$0xff]
  %v1692 = vld [vmem:[%s2 + $0x308] sm:$0xff]
  %v1693 = vld [vmem:[%s2 + $0x310] sm:$0xff]
  %v1694 = vld [vmem:[%s2 + $0x318] sm:$0xff]
  %v1695 = vld [vmem:[%s2 + $0x320] sm:$0xff]
  %v1696 = vld [vmem:[%s2 + $0x328] sm:$0xff]
  %v1697 = vld [vmem:[%s2 + $0x330] sm:$0xff]
  %v1698 = vld [vmem:[%s2 + $0x338] sm:$0xff]
  %v1699 = vld [vmem:[%s2 + $0x340] sm:$0xff]
  %v1700 = vld [vmem:[%s2 + $0x348] sm:$0xff]
  %v1701 = vld [vmem:[%s2 + $0x350] sm:$0xff]
  %v1702 = vld [vmem:[%s2 + $0x358] sm:$0xff]
  %v1703 = vld [vmem:[%s2 + $0x360] sm:$0xff]
  %v1704 = vld [vmem:[%s2 + $0x368] sm:$0xff]
  %v1705 = vld [vmem:[%s2 + $0x370] sm:$0xff]
  %v1706 = vld [vmem:[%s2 + $0x378] sm:$0xff]
  %v1707 = vld [vmem:[%s2 + $0x380] sm:$0xff]
  %v1708 = vld [vmem:[%s2 + $0x388] sm:$0xff]
  %v1709 = vld [vmem:[%s2 + $0x390] sm:$0xff]
  %v1710 = vld [vmem:[%s2 + $0x398] sm:$0xff]
  %v1711 = vld [vmem:[%s2 + $0x3a0] sm:$0xff]
  %v1712 = vld [vmem:[%s2 + $0x3a8] sm:$0xff]
  %v1713 = vld [vmem:[%s2 + $0x3b0] sm:$0xff]
  %v1714 = vld [vmem:[%s2 + $0x3b8] sm:$0xff]
  %v1715 = vld [vmem:[%s2 + $0x3c0] sm:$0xff]
  %v1716 = vld [vmem:[%s2 + $0x3c8] sm:$0xff]
  %v1717 = vld [vmem:[%s2 + $0x3d0] sm:$0xff]
  %v1718 = vld [vmem:[%s2 + $0x3d8] sm:$0xff]
  %v1719 = vld [vmem:[%s2 + $0x3e0] sm:$0xff]
  %v1720 = vld [vmem:[%s2 + $0x3e8] sm:$0xff]
  %v1721 = vld [vmem:[%s2 + $0x3f0] sm:$0xff]
  %v1722 = vld [vmem:[%s2 + $0x3f8] sm:$0xff]
  %v1723 = vld [vmem:[%s2 + $0x400] sm:$0xff]
  %v1724 = vld [vmem:[%s2 + $0x408] sm:$0xff]
  %v1725 = vld [vmem:[%s2 + $0x410] sm:$0xff]
  %v1726 = vld [vmem:[%s2 + $0x418] sm:$0xff]
  %v1727 = vld [vmem:[%s2 + $0x420] sm:$0xff]
  %v1728 = vld [vmem:[%s2 + $0x428] sm:$0xff]
  %v1729 = vld [vmem:[%s2 + $0x430] sm:$0xff]
  %v1730 = vld [vmem:[%s2 + $0x438] sm:$0xff]
  %v1731 = vld [vmem:[%s2 + $0x440] sm:$0xff]
  %v1732 = vld [vmem:[%s2 + $0x448] sm:$0xff]
  %v1733 = vld [vmem:[%s2 + $0x450] sm:$0xff]
  %v1734 = vld [vmem:[%s2 + $0x458] sm:$0xff]
  %v1875 = vunpack.c.l.b16 %v1595
  %v1876 = vunpack.c.h.b16 %v1595
  %v1877 = vunpack.c.l.b16 %v1596
  %v1878 = vunpack.c.h.b16 %v1596
  %v1879 = vunpack.c.l.b16 %v1597
  %v1880 = vunpack.c.h.b16 %v1597
  %v1881 = vunpack.c.l.b16 %v1598
  %v1882 = vunpack.c.h.b16 %v1598
  %v1883 = vunpack.c.l.b16 %v1599
  %v1884 = vunpack.c.h.b16 %v1599
  %v1885 = vunpack.c.l.b16 %v1600
  %v1886 = vunpack.c.h.b16 %v1600
  %v1887 = vunpack.c.l.b16 %v1601
  %v1888 = vunpack.c.h.b16 %v1601
  %v1889 = vunpack.c.l.b16 %v1602
  %v1890 = vunpack.c.h.b16 %v1602
  %v1891 = vunpack.c.l.b16 %v1603
  %v1892 = vunpack.c.h.b16 %v1603
  %v1893 = vunpack.c.l.b16 %v1604
  %v1894 = vunpack.c.h.b16 %v1604
  %v1895 = vunpack.c.l.b16 %v1605
  %v1896 = vunpack.c.h.b16 %v1605
  %v1897 = vunpack.c.l.b16 %v1606
  %v1898 = vunpack.c.h.b16 %v1606
  %v1899 = vunpack.c.l.b16 %v1607
  %v1900 = vunpack.c.h.b16 %v1607
  %v1901 = vunpack.c.l.b16 %v1608
  %v1902 = vunpack.c.h.b16 %v1608
  %v1903 = vunpack.c.l.b16 %v1609
  %v1904 = vunpack.c.h.b16 %v1609
  %v1905 = vunpack.c.l.b16 %v1610
  %v1906 = vunpack.c.h.b16 %v1610
  %v1907 = vunpack.c.l.b16 %v1611
  %v1908 = vunpack.c.h.b16 %v1611
  %v1909 = vunpack.c.l.b16 %v1612
  %v1910 = vunpack.c.h.b16 %v1612
  %v1911 = vunpack.c.l.b16 %v1613
  %v1912 = vunpack.c.h.b16 %v1613
  %v1913 = vunpack.c.l.b16 %v1614
  %v1914 = vunpack.c.h.b16 %v1614
  %v1915 = vunpack.c.l.b16 %v1615
  %v1916 = vunpack.c.h.b16 %v1615
  %v1917 = vunpack.c.l.b16 %v1616
  %v1918 = vunpack.c.h.b16 %v1616
  %v1919 = vunpack.c.l.b16 %v1617
  %v1920 = vunpack.c.h.b16 %v1617
  %v1921 = vunpack.c.l.b16 %v1618
  %v1922 = vunpack.c.h.b16 %v1618
  %v1923 = vunpack.c.l.b16 %v1619
  %v1924 = vunpack.c.h.b16 %v1619
  %v1925 = vunpack.c.l.b16 %v1620
  %v1926 = vunpack.c.h.b16 %v1620
  %v1927 = vunpack.c.l.b16 %v1621
  %v1928 = vunpack.c.h.b16 %v1621
  %v1929 = vunpack.c.l.b16 %v1622
  %v1930 = vunpack.c.h.b16 %v1622
  %v1931 = vunpack.c.l.b16 %v1623
  %v1932 = vunpack.c.h.b16 %v1623
  %v1933 = vunpack.c.l.b16 %v1624
  %v1934 = vunpack.c.h.b16 %v1624
  %v1935 = vunpack.c.l.b16 %v1625
  %v1936 = vunpack.c.h.b16 %v1625
  %v1937 = vunpack.c.l.b16 %v1626
  %v1938 = vunpack.c.h.b16 %v1626
  %v1939 = vunpack.c.l.b16 %v1627
  %v1940 = vunpack.c.h.b16 %v1627
  %v1941 = vunpack.c.l.b16 %v1628
  %v1942 = vunpack.c.h.b16 %v1628
  %v1943 = vunpack.c.l.b16 %v1629
  %v1944 = vunpack.c.h.b16 %v1629
  %v1945 = vunpack.c.l.b16 %v1630
  %v1946 = vunpack.c.h.b16 %v1630
  %v1947 = vunpack.c.l.b16 %v1631
  %v1948 = vunpack.c.h.b16 %v1631
  %v1949 = vunpack.c.l.b16 %v1632
  %v1950 = vunpack.c.h.b16 %v1632
  %v1951 = vunpack.c.l.b16 %v1633
  %v1952 = vunpack.c.h.b16 %v1633
  %v1953 = vunpack.c.l.b16 %v1634
  %v1954 = vunpack.c.h.b16 %v1634
  %v1955 = vunpack.c.l.b16 %v1635
  %v1956 = vunpack.c.h.b16 %v1635
  %v1957 = vunpack.c.l.b16 %v1636
  %v1958 = vunpack.c.h.b16 %v1636
  %v1959 = vunpack.c.l.b16 %v1637
  %v1960 = vunpack.c.h.b16 %v1637
  %v1961 = vunpack.c.l.b16 %v1638
  %v1962 = vunpack.c.h.b16 %v1638
  %v1963 = vunpack.c.l.b16 %v1639
  %v1964 = vunpack.c.h.b16 %v1639
  %v1965 = vunpack.c.l.b16 %v1640
  %v1966 = vunpack.c.h.b16 %v1640
  %v1967 = vunpack.c.l.b16 %v1641
  %v1968 = vunpack.c.h.b16 %v1641
  %v1969 = vunpack.c.l.b16 %v1642
  %v1970 = vunpack.c.h.b16 %v1642
  %v1971 = vunpack.c.l.b16 %v1643
  %v1972 = vunpack.c.h.b16 %v1643
  %v1973 = vunpack.c.l.b16 %v1644
  %v1974 = vunpack.c.h.b16 %v1644
  %v1975 = vunpack.c.l.b16 %v1645
  %v1976 = vunpack.c.h.b16 %v1645
  %v1977 = vunpack.c.l.b16 %v1646
  %v1978 = vunpack.c.h.b16 %v1646
  %v1979 = vunpack.c.l.b16 %v1647
  %v1980 = vunpack.c.h.b16 %v1647
  %v1981 = vunpack.c.l.b16 %v1648
  %v1982 = vunpack.c.h.b16 %v1648
  %v1983 = vunpack.c.l.b16 %v1649
  %v1984 = vunpack.c.h.b16 %v1649
  %v1985 = vunpack.c.l.b16 %v1650
  %v1986 = vunpack.c.h.b16 %v1650
  %v1987 = vunpack.c.l.b16 %v1651
  %v1988 = vunpack.c.h.b16 %v1651
  %v1989 = vunpack.c.l.b16 %v1652
  %v1990 = vunpack.c.h.b16 %v1652
  %v1991 = vunpack.c.l.b16 %v1653
  %v1992 = vunpack.c.h.b16 %v1653
  %v1993 = vunpack.c.l.b16 %v1654
  %v1994 = vunpack.c.h.b16 %v1654
  %v1995 = vunpack.c.l.b16 %v1655
  %v1996 = vunpack.c.h.b16 %v1655
  %v1997 = vunpack.c.l.b16 %v1656
  %v1998 = vunpack.c.h.b16 %v1656
  %v1999 = vunpack.c.l.b16 %v1657
  %v2000 = vunpack.c.h.b16 %v1657
  %v2001 = vunpack.c.l.b16 %v1658
  %v2002 = vunpack.c.h.b16 %v1658
  %v2003 = vunpack.c.l.b16 %v1659
  %v2004 = vunpack.c.h.b16 %v1659
  %v2005 = vunpack.c.l.b16 %v1660
  %v2006 = vunpack.c.h.b16 %v1660
  %v2007 = vunpack.c.l.b16 %v1661
  %v2008 = vunpack.c.h.b16 %v1661
  %v2009 = vunpack.c.l.b16 %v1662
  %v2010 = vunpack.c.h.b16 %v1662
  %v2011 = vunpack.c.l.b16 %v1663
  %v2012 = vunpack.c.h.b16 %v1663
  %v2013 = vunpack.c.l.b16 %v1664
  %v2014 = vunpack.c.h.b16 %v1664
  %v2015 = vunpack.c.l.b16 %v1665
  %v2016 = vunpack.c.h.b16 %v1665
  %v2017 = vunpack.c.l.b16 %v1666
  %v2018 = vunpack.c.h.b16 %v1666
  %v2019 = vunpack.c.l.b16 %v1667
  %v2020 = vunpack.c.h.b16 %v1667
  %v2021 = vunpack.c.l.b16 %v1668
  %v2022 = vunpack.c.h.b16 %v1668
  %v2023 = vunpack.c.l.b16 %v1669
  %v2024 = vunpack.c.h.b16 %v1669
  %v2025 = vunpack.c.l.b16 %v1670
  %v2026 = vunpack.c.h.b16 %v1670
  %v2027 = vunpack.c.l.b16 %v1671
  %v2028 = vunpack.c.h.b16 %v1671
  %v2029 = vunpack.c.l.b16 %v1672
  %v2030 = vunpack.c.h.b16 %v1672
  %v2031 = vunpack.c.l.b16 %v1673
  %v2032 = vunpack.c.h.b16 %v1673
  %v2033 = vunpack.c.l.b16 %v1674
  %v2034 = vunpack.c.h.b16 %v1674
  %v2035 = vunpack.c.l.b16 %v1675
  %v2036 = vunpack.c.h.b16 %v1675
  %v2037 = vunpack.c.l.b16 %v1676
  %v2038 = vunpack.c.h.b16 %v1676
  %v2039 = vunpack.c.l.b16 %v1677
  %v2040 = vunpack.c.h.b16 %v1677
  %v2041 = vunpack.c.l.b16 %v1678
  %v2042 = vunpack.c.h.b16 %v1678
  %v2043 = vunpack.c.l.b16 %v1679
  %v2044 = vunpack.c.h.b16 %v1679
  %v2045 = vunpack.c.l.b16 %v1680
  %v2046 = vunpack.c.h.b16 %v1680
  %v2047 = vunpack.c.l.b16 %v1681
  %v2048 = vunpack.c.h.b16 %v1681
  %v2049 = vunpack.c.l.b16 %v1682
  %v2050 = vunpack.c.h.b16 %v1682
  %v2051 = vunpack.c.l.b16 %v1683
  %v2052 = vunpack.c.h.b16 %v1683
  %v2053 = vunpack.c.l.b16 %v1684
  %v2054 = vunpack.c.h.b16 %v1684
  %v2055 = vunpack.c.l.b16 %v1685
  %v2056 = vunpack.c.h.b16 %v1685
  %v2057 = vunpack.c.l.b16 %v1686
  %v2058 = vunpack.c.h.b16 %v1686
  %v2059 = vunpack.c.l.b16 %v1687
  %v2060 = vunpack.c.h.b16 %v1687
  %v2061 = vunpack.c.l.b16 %v1688
  %v2062 = vunpack.c.h.b16 %v1688
  %v2063 = vunpack.c.l.b16 %v1689
  %v2064 = vunpack.c.h.b16 %v1689
  %v2065 = vunpack.c.l.b16 %v1690
  %v2066 = vunpack.c.h.b16 %v1690
  %v2067 = vunpack.c.l.b16 %v1691
  %v2068 = vunpack.c.h.b16 %v1691
  %v2069 = vunpack.c.l.b16 %v1692
  %v2070 = vunpack.c.h.b16 %v1692
  %v2071 = vunpack.c.l.b16 %v1693
  %v2072 = vunpack.c.h.b16 %v1693
  %v2073 = vunpack.c.l.b16 %v1694
  %v2074 = vunpack.c.h.b16 %v1694
  %v2075 = vunpack.c.l.b16 %v1695
  %v2076 = vunpack.c.h.b16 %v1695
  %v2077 = vunpack.c.l.b16 %v1696
  %v2078 = vunpack.c.h.b16 %v1696
  %v2079 = vunpack.c.l.b16 %v1697
  %v2080 = vunpack.c.h.b16 %v1697
  %v2081 = vunpack.c.l.b16 %v1698
  %v2082 = vunpack.c.h.b16 %v1698
  %v2083 = vunpack.c.l.b16 %v1699
  %v2084 = vunpack.c.h.b16 %v1699
  %v2085 = vunpack.c.l.b16 %v1700
  %v2086 = vunpack.c.h.b16 %v1700
  %v2087 = vunpack.c.l.b16 %v1701
  %v2088 = vunpack.c.h.b16 %v1701
  %v2089 = vunpack.c.l.b16 %v1702
  %v2090 = vunpack.c.h.b16 %v1702
  %v2091 = vunpack.c.l.b16 %v1703
  %v2092 = vunpack.c.h.b16 %v1703
  %v2093 = vunpack.c.l.b16 %v1704
  %v2094 = vunpack.c.h.b16 %v1704
  %v2095 = vunpack.c.l.b16 %v1705
  %v2096 = vunpack.c.h.b16 %v1705
  %v2097 = vunpack.c.l.b16 %v1706
  %v2098 = vunpack.c.h.b16 %v1706
  %v2099 = vunpack.c.l.b16 %v1707
  %v2100 = vunpack.c.h.b16 %v1707
  %v2101 = vunpack.c.l.b16 %v1708
  %v2102 = vunpack.c.h.b16 %v1708
  %v2103 = vunpack.c.l.b16 %v1709
  %v2104 = vunpack.c.h.b16 %v1709
  %v2105 = vunpack.c.l.b16 %v1710
  %v2106 = vunpack.c.h.b16 %v1710
  %v2107 = vunpack.c.l.b16 %v1711
  %v2108 = vunpack.c.h.b16 %v1711
  %v2109 = vunpack.c.l.b16 %v1712
  %v2110 = vunpack.c.h.b16 %v1712
  %v2111 = vunpack.c.l.b16 %v1713
  %v2112 = vunpack.c.h.b16 %v1713
  %v2113 = vunpack.c.l.b16 %v1714
  %v2114 = vunpack.c.h.b16 %v1714
  %v2115 = vunpack.c.l.b16 %v1715
  %v2116 = vunpack.c.h.b16 %v1715
  %v2117 = vunpack.c.l.b16 %v1716
  %v2118 = vunpack.c.h.b16 %v1716
  %v2119 = vunpack.c.l.b16 %v1717
  %v2120 = vunpack.c.h.b16 %v1717
  %v2121 = vunpack.c.l.b16 %v1718
  %v2122 = vunpack.c.h.b16 %v1718
  %v2123 = vunpack.c.l.b16 %v1719
  %v2124 = vunpack.c.h.b16 %v1719
  %v2125 = vunpack.c.l.b16 %v1720
  %v2126 = vunpack.c.h.b16 %v1720
  %v2127 = vunpack.c.l.b16 %v1721
  %v2128 = vunpack.c.h.b16 %v1721
  %v2129 = vunpack.c.l.b16 %v1722
  %v2130 = vunpack.c.h.b16 %v1722
  %v2131 = vunpack.c.l.b16 %v1723
  %v2132 = vunpack.c.h.b16 %v1723
  %v2133 = vunpack.c.l.b16 %v1724
  %v2134 = vunpack.c.h.b16 %v1724
  %v2135 = vunpack.c.l.b16 %v1725
  %v2136 = vunpack.c.h.b16 %v1725
  %v2137 = vunpack.c.l.b16 %v1726
  %v2138 = vunpack.c.h.b16 %v1726
  %v2139 = vunpack.c.l.b16 %v1727
  %v2140 = vunpack.c.h.b16 %v1727
  %v2141 = vunpack.c.l.b16 %v1728
  %v2142 = vunpack.c.h.b16 %v1728
  %v2143 = vunpack.c.l.b16 %v1729
  %v2144 = vunpack.c.h.b16 %v1729
  %v2145 = vunpack.c.l.b16 %v1730
  %v2146 = vunpack.c.h.b16 %v1730
  %v2147 = vunpack.c.l.b16 %v1731
  %v2148 = vunpack.c.h.b16 %v1731
  %v2149 = vunpack.c.l.b16 %v1732
  %v2150 = vunpack.c.h.b16 %v1732
  %v2151 = vunpack.c.l.b16 %v1733
  %v2152 = vunpack.c.h.b16 %v1733
  %v2153 = vunpack.c.l.b16 %v1734
  %v2154 = vunpack.c.h.b16 %v1734
  %v2155 = vpack.c.b16 %v1877, %v1875
  %v2156 = vpack.c.b16 %v1878, %v1876
  %v2157 = vpack.c.b16 %v1881, %v1879
  %v2158 = vpack.c.b16 %v1882, %v1880
  %v2159 = vpack.c.b16 %v1885, %v1883
  %v2160 = vpack.c.b16 %v1886, %v1884
  %v2161 = vpack.c.b16 %v1889, %v1887
  %v2162 = vpack.c.b16 %v1890, %v1888
  %v2163 = vpack.c.b16 %v1893, %v1891
  %v2164 = vpack.c.b16 %v1894, %v1892
  %v2165 = vpack.c.b16 %v1897, %v1895
  %v2166 = vpack.c.b16 %v1898, %v1896
  %v2167 = vpack.c.b16 %v1901, %v1899
  %v2168 = vpack.c.b16 %v1902, %v1900
  %v2169 = vpack.c.b16 %v1905, %v1903
  %v2170 = vpack.c.b16 %v1906, %v1904
  %v2171 = vpack.c.b16 %v1909, %v1907
  %v2172 = vpack.c.b16 %v1910, %v1908
  %v2173 = vpack.c.b16 %v1913, %v1911
  %v2174 = vpack.c.b16 %v1914, %v1912
  %v2175 = vpack.c.b16 %v1917, %v1915
  %v2176 = vpack.c.b16 %v1918, %v1916
  %v2177 = vpack.c.b16 %v1921, %v1919
  %v2178 = vpack.c.b16 %v1922, %v1920
  %v2179 = vpack.c.b16 %v1925, %v1923
  %v2180 = vpack.c.b16 %v1926, %v1924
  %v2181 = vpack.c.b16 %v1929, %v1927
  %v2182 = vpack.c.b16 %v1930, %v1928
  %v2183 = vpack.c.b16 %v1933, %v1931
  %v2184 = vpack.c.b16 %v1934, %v1932
  %v2185 = vpack.c.b16 %v1937, %v1935
  %v2186 = vpack.c.b16 %v1938, %v1936
  %v2187 = vpack.c.b16 %v1941, %v1939
  %v2188 = vpack.c.b16 %v1942, %v1940
  %v2189 = vpack.c.b16 %v1945, %v1943
  %v2190 = vpack.c.b16 %v1946, %v1944
  %v2191 = vpack.c.b16 %v1949, %v1947
  %v2192 = vpack.c.b16 %v1950, %v1948
  %v2193 = vpack.c.b16 %v1953, %v1951
  %v2194 = vpack.c.b16 %v1954, %v1952
  %v2195 = vpack.c.b16 %v1957, %v1955
  %v2196 = vpack.c.b16 %v1958, %v1956
  %v2197 = vpack.c.b16 %v1961, %v1959
  %v2198 = vpack.c.b16 %v1962, %v1960
  %v2199 = vpack.c.b16 %v1965, %v1963
  %v2200 = vpack.c.b16 %v1966, %v1964
  %v2201 = vpack.c.b16 %v1969, %v1967
  %v2202 = vpack.c.b16 %v1970, %v1968
  %v2203 = vpack.c.b16 %v1973, %v1971
  %v2204 = vpack.c.b16 %v1974, %v1972
  %v2205 = vpack.c.b16 %v1977, %v1975
  %v2206 = vpack.c.b16 %v1978, %v1976
  %v2207 = vpack.c.b16 %v1981, %v1979
  %v2208 = vpack.c.b16 %v1982, %v1980
  %v2209 = vpack.c.b16 %v1985, %v1983
  %v2210 = vpack.c.b16 %v1986, %v1984
  %v2211 = vpack.c.b16 %v1989, %v1987
  %v2212 = vpack.c.b16 %v1990, %v1988
  %v2213 = vpack.c.b16 %v1993, %v1991
  %v2214 = vpack.c.b16 %v1994, %v1992
  %v2215 = vpack.c.b16 %v1997, %v1995
  %v2216 = vpack.c.b16 %v1998, %v1996
  %v2217 = vpack.c.b16 %v2001, %v1999
  %v2218 = vpack.c.b16 %v2002, %v2000
  %v2219 = vpack.c.b16 %v2005, %v2003
  %v2220 = vpack.c.b16 %v2006, %v2004
  %v2221 = vpack.c.b16 %v2009, %v2007
  %v2222 = vpack.c.b16 %v2010, %v2008
  %v2223 = vpack.c.b16 %v2013, %v2011
  %v2224 = vpack.c.b16 %v2014, %v2012
  %v2225 = vpack.c.b16 %v2017, %v2015
  %v2226 = vpack.c.b16 %v2018, %v2016
  %v2227 = vpack.c.b16 %v2021, %v2019
  %v2228 = vpack.c.b16 %v2022, %v2020
  %v2229 = vpack.c.b16 %v2025, %v2023
  %v2230 = vpack.c.b16 %v2026, %v2024
  %v2231 = vpack.c.b16 %v2029, %v2027
  %v2232 = vpack.c.b16 %v2030, %v2028
  %v2233 = vpack.c.b16 %v2033, %v2031
  %v2234 = vpack.c.b16 %v2034, %v2032
  %v2235 = vpack.c.b16 %v2037, %v2035
  %v2236 = vpack.c.b16 %v2038, %v2036
  %v2237 = vpack.c.b16 %v2041, %v2039
  %v2238 = vpack.c.b16 %v2042, %v2040
  %v2239 = vpack.c.b16 %v2045, %v2043
  %v2240 = vpack.c.b16 %v2046, %v2044
  %v2241 = vpack.c.b16 %v2049, %v2047
  %v2242 = vpack.c.b16 %v2050, %v2048
  %v2243 = vpack.c.b16 %v2053, %v2051
  %v2244 = vpack.c.b16 %v2054, %v2052
  %v2245 = vpack.c.b16 %v2057, %v2055
  %v2246 = vpack.c.b16 %v2058, %v2056
  %v2247 = vpack.c.b16 %v2061, %v2059
  %v2248 = vpack.c.b16 %v2062, %v2060
  %v2249 = vpack.c.b16 %v2065, %v2063
  %v2250 = vpack.c.b16 %v2066, %v2064
  %v2251 = vpack.c.b16 %v2069, %v2067
  %v2252 = vpack.c.b16 %v2070, %v2068
  %v2253 = vpack.c.b16 %v2073, %v2071
  %v2254 = vpack.c.b16 %v2074, %v2072
  %v2255 = vpack.c.b16 %v2077, %v2075
  %v2256 = vpack.c.b16 %v2078, %v2076
  %v2257 = vpack.c.b16 %v2081, %v2079
  %v2258 = vpack.c.b16 %v2082, %v2080
  %v2259 = vpack.c.b16 %v2085, %v2083
  %v2260 = vpack.c.b16 %v2086, %v2084
  %v2261 = vpack.c.b16 %v2089, %v2087
  %v2262 = vpack.c.b16 %v2090, %v2088
  %v2263 = vpack.c.b16 %v2093, %v2091
  %v2264 = vpack.c.b16 %v2094, %v2092
  %v2265 = vpack.c.b16 %v2097, %v2095
  %v2266 = vpack.c.b16 %v2098, %v2096
  %v2267 = vpack.c.b16 %v2101, %v2099
  %v2268 = vpack.c.b16 %v2102, %v2100
  %v2269 = vpack.c.b16 %v2105, %v2103
  %v2270 = vpack.c.b16 %v2106, %v2104
  %v2271 = vpack.c.b16 %v2109, %v2107
  %v2272 = vpack.c.b16 %v2110, %v2108
  %v2273 = vpack.c.b16 %v2113, %v2111
  %v2274 = vpack.c.b16 %v2114, %v2112
  %v2275 = vpack.c.b16 %v2117, %v2115
  %v2276 = vpack.c.b16 %v2118, %v2116
  %v2277 = vpack.c.b16 %v2121, %v2119
  %v2278 = vpack.c.b16 %v2122, %v2120
  %v2279 = vpack.c.b16 %v2125, %v2123
  %v2280 = vpack.c.b16 %v2126, %v2124
  %v2281 = vpack.c.b16 %v2129, %v2127
  %v2282 = vpack.c.b16 %v2130, %v2128
  %v2283 = vpack.c.b16 %v2133, %v2131
  %v2284 = vpack.c.b16 %v2134, %v2132
  %v2285 = vpack.c.b16 %v2137, %v2135
  %v2286 = vpack.c.b16 %v2138, %v2136
  %v2287 = vpack.c.b16 %v2141, %v2139
  %v2288 = vpack.c.b16 %v2142, %v2140
  %v2289 = vpack.c.b16 %v2145, %v2143
  %v2290 = vpack.c.b16 %v2146, %v2144
  %v2291 = vpack.c.b16 %v2149, %v2147
  %v2292 = vpack.c.b16 %v2150, %v2148
  %v2293 = vpack.c.b16 %v2153, %v2151
  %v2294 = vpack.c.b16 %v2154, %v2152
  %v2436 = vsel %vm919, %v1577, 0
  %v2439 = vsel %vm919, %v1585, 0
  %v2442 = vsel %vm919, %v1594, 0
  %2444 = vmatprep.subr.bf16.mxu0 %v2156
  %2445 = vmatpush1.bf16.msra.mxu0 %v2155
  %2446 = vmatprep.subr.bf16.mxu0 %v2158
  %2447 = vmatpush1.bf16.msra.mxu0 %v2157
  %2448 = vmatprep.subr.bf16.mxu0 %v2160
  %2449 = vmatpush1.bf16.msra.mxu0 %v2159
  %2450 = vmatprep.subr.bf16.mxu0 %v2162
  %2451 = vmatpush1.bf16.msra.mxu0 %v2161
  %2452 = vmatprep.subr.bf16.mxu0 %v2164
  %2453 = vmatpush1.bf16.msra.mxu0 %v2163
  %2454 = vmatprep.subr.bf16.mxu0 %v2166
  %2455 = vmatpush1.bf16.msra.mxu0 %v2165
  %2456 = vmatprep.subr.bf16.mxu0 %v2168
  %2457 = vmatpush1.bf16.msra.mxu0 %v2167
  %2458 = vmatprep.subr.bf16.mxu0 %v2170
  %2459 = vmatpush1.bf16.msra.mxu0 %v2169
  %2460 = vmatprep.subr.bf16.mxu0 %v2172
  %2461 = vmatpush1.bf16.msra.mxu0 %v2171
  %2462 = vmatprep.subr.bf16.mxu0 %v2174
  %2463 = vmatpush1.bf16.msra.mxu0 %v2173
  %2464 = vmatprep.subr.bf16.mxu0 %v2176
  %2465 = vmatpush1.bf16.msra.mxu0 %v2175
  %2466 = vmatprep.subr.bf16.mxu0 %v2178
  %2467 = vmatpush1.bf16.msra.mxu0 %v2177
  %2468 = vmatprep.subr.bf16.mxu0 %v2180
  %2469 = vmatpush1.bf16.msra.mxu0 %v2179
  %2470 = vmatprep.subr.bf16.mxu0 %v2182
  %2471 = vmatpush1.bf16.msra.mxu0 %v2181
  %2472 = vmatprep.subr.bf16.mxu0 %v2184
  %2473 = vmatpush1.bf16.msra.mxu0 %v2183
  %2474 = vmatprep.subr.bf16.mxu0 %v2186
  %2475 = vmatpush1.bf16.msra.mxu0 %v2185
  %2476 = vmatprep.mubr.bf16.mxu0 %v1570
  %2477 = vmatmul.mubr.bf16.gmra.mrb[0].mxu0 %v1569
  %v2478 = vpop.f32.mrb[0].mxu0
  %v2479 = vadd.f32 0.0, %v2478
  %v2480 = vpop.f32.mrb[0].mxu0
  %v2481 = vadd.f32 0.0, %v2480
  %v2482 = vpop.f32.mrb[0].mxu0
  %v2483 = vadd.f32 0.0, %v2482
  %v2484 = vpop.f32.mrb[0].mxu0
  %v2485 = vadd.f32 0.0, %v2484
  %2486 = vmatprep.mubr.bf16.mxu0 %v1578
  %2487 = vmatmul.mubr.bf16.gmra.mrb[0].mxu0 %v1576
  %v2488 = vpop.f32.mrb[0].mxu0
  %v2489 = vadd.f32 0.0, %v2488
  %v2490 = vpop.f32.mrb[0].mxu0
  %v2491 = vadd.f32 0.0, %v2490
  %v2492 = vpop.f32.mrb[0].mxu0
  %v2493 = vadd.f32 0.0, %v2492
  %v2494 = vpop.f32.mrb[0].mxu0
  %v2495 = vadd.f32 0.0, %v2494
  %2496 = vmatprep.mubr.bf16.mxu0 %v1587
  %2497 = vmatmul.mubr.bf16.gmra.mrb[0].mxu0 %v1586
  %v2498 = vpop.f32.mrb[0].mxu0
  %v2499 = vadd.f32 0.0, %v2498
  %v2500 = vpop.f32.mrb[0].mxu0
  %v2501 = vadd.f32 0.0, %v2500
  %v2502 = vpop.f32.mrb[0].mxu0
  %v2503 = vpop.f32.mrb[0].mxu0
  %2504 = vdwg.mxu0
  %2505 = vmatprep.subr.bf16.mxu0 %v2188
  %2506 = vmatpush1.bf16.msra.mxu0 %v2187
  %2507 = vmatprep.subr.bf16.mxu0 %v2190
  %2508 = vmatpush1.bf16.msra.mxu0 %v2189
  %2509 = vmatprep.subr.bf16.mxu0 %v2192
  %2510 = vmatpush1.bf16.msra.mxu0 %v2191
  %2511 = vmatprep.subr.bf16.mxu0 %v2194
  %2512 = vmatpush1.bf16.msra.mxu0 %v2193
  %2513 = vmatprep.subr.bf16.mxu0 %v2196
  %2514 = vmatpush1.bf16.msra.mxu0 %v2195
  %2515 = vmatprep.subr.bf16.mxu0 %v2198
  %2516 = vmatpush1.bf16.msra.mxu0 %v2197
  %2517 = vmatprep.subr.bf16.mxu0 %v2200
  %2518 = vmatpush1.bf16.msra.mxu0 %v2199
  %2519 = vmatprep.subr.bf16.mxu0 %v2202
  %2520 = vmatpush1.bf16.msra.mxu0 %v2201
  %2521 = vmatprep.subr.bf16.mxu0 %v2204
  %2522 = vmatpush1.bf16.msra.mxu0 %v2203
  %2523 = vmatprep.subr.bf16.mxu0 %v2206
  %2524 = vmatpush1.bf16.msra.mxu0 %v2205
  %2525 = vmatprep.subr.bf16.mxu0 %v2208
  %2526 = vmatpush1.bf16.msra.mxu0 %v2207
  %2527 = vmatprep.subr.bf16.mxu0 %v2210
  %2528 = vmatpush1.bf16.msra.mxu0 %v2209
  %2529 = vmatprep.subr.bf16.mxu0 %v2212
  %2530 = vmatpush1.bf16.msra.mxu0 %v2211
  %2531 = vmatprep.subr.bf16.mxu0 %v2214
  %2532 = vmatpush1.bf16.msra.mxu0 %v2213
  %2533 = vmatprep.subr.bf16.mxu0 %v2216
  %2534 = vmatpush1.bf16.msra.mxu0 %v2215
  %2535 = vmatprep.subr.bf16.mxu0 %v2218
  %2536 = vmatpush1.bf16.msra.mxu0 %v2217
  %2537 = vmatprep.mubr.bf16.mxu0 %v1572
  %2538 = vmatmul.mubr.bf16.gmra.mrb[0].mxu0 %v1571
  %v2539 = vpop.f32.mrb[0].mxu0
  %v2540 = vadd.f32 %v2479, %v2539
  %v2541 = vpop.f32.mrb[0].mxu0
  %v2542 = vadd.f32 %v2481, %v2541
  %v2543 = vpop.f32.mrb[0].mxu0
  %v2544 = vadd.f32 %v2483, %v2543
  %v2545 = vpop.f32.mrb[0].mxu0
  %v2546 = vadd.f32 %v2485, %v2545
  %2547 = vmatprep.mubr.bf16.mxu0 %v1580
  %2548 = vmatmul.mubr.bf16.gmra.mrb[0].mxu0 %v1579
  %v2549 = vpop.f32.mrb[0].mxu0
  %v2550 = vadd.f32 %v2489, %v2549
  %v2551 = vpop.f32.mrb[0].mxu0
  %v2552 = vadd.f32 %v2491, %v2551
  %v2553 = vpop.f32.mrb[0].mxu0
  %v2554 = vadd.f32 %v2493, %v2553
  %v2555 = vpop.f32.mrb[0].mxu0
  %v2556 = vadd.f32 %v2495, %v2555
  %2557 = vmatprep.mubr.bf16.mxu0 %v1589
  %2558 = vmatmul.mubr.bf16.gmra.mrb[0].mxu0 %v1588
  %v2559 = vpop.f32.mrb[0].mxu0
  %v2560 = vadd.f32 %v2499, %v2559
  %v2561 = vpop.f32.mrb[0].mxu0
  %v2562 = vadd.f32 %v2501, %v2561
  %v2563 = vpop.f32.mrb[0].mxu0
  %v2564 = vpop.f32.mrb[0].mxu0
  %2565 = vdwg.mxu0
  %2566 = vmatprep.subr.bf16.mxu0 %v2220
  %2567 = vmatpush1.bf16.msra.mxu0 %v2219
  %2568 = vmatprep.subr.bf16.mxu0 %v2222
  %2569 = vmatpush1.bf16.msra.mxu0 %v2221
  %2570 = vmatprep.subr.bf16.mxu0 %v2224
  %2571 = vmatpush1.bf16.msra.mxu0 %v2223
  %2572 = vmatprep.subr.bf16.mxu0 %v2226
  %2573 = vmatpush1.bf16.msra.mxu0 %v2225
  %2574 = vmatprep.subr.bf16.mxu0 %v2228
  %2575 = vmatpush1.bf16.msra.mxu0 %v2227
  %2576 = vmatprep.subr.bf16.mxu0 %v2230
  %2577 = vmatpush1.bf16.msra.mxu0 %v2229
  %2578 = vmatprep.subr.bf16.mxu0 %v2232
  %2579 = vmatpush1.bf16.msra.mxu0 %v2231
  %2580 = vmatprep.subr.bf16.mxu0 %v2234
  %2581 = vmatpush1.bf16.msra.mxu0 %v2233
  %2582 = vmatprep.subr.bf16.mxu0 %v2236
  %2583 = vmatpush1.bf16.msra.mxu0 %v2235
  %2584 = vmatprep.subr.bf16.mxu0 %v2238
  %2585 = vmatpush1.bf16.msra.mxu0 %v2237
  %2586 = vmatprep.subr.bf16.mxu0 %v2240
  %2587 = vmatpush1.bf16.msra.mxu0 %v2239
  %2588 = vmatprep.subr.bf16.mxu0 %v2242
  %2589 = vmatpush1.bf16.msra.mxu0 %v2241
  %2590 = vmatprep.subr.bf16.mxu0 %v2244
  %2591 = vmatpush1.bf16.msra.mxu0 %v2243
  %2592 = vmatprep.subr.bf16.mxu0 %v2246
  %2593 = vmatpush1.bf16.msra.mxu0 %v2245
  %2594 = vmatprep.subr.bf16.mxu0 %v2248
  %2595 = vmatpush1.bf16.msra.mxu0 %v2247
  %2596 = vmatprep.subr.bf16.mxu0 %v2250
  %2597 = vmatpush1.bf16.msra.mxu0 %v2249
  %2598 = vmatprep.mubr.bf16.mxu0 %v1574
  %2599 = vmatmul.mubr.bf16.gmra.mrb[0].mxu0 %v1573
  %v2600 = vpop.f32.mrb[0].mxu0
  %v2601 = vadd.f32 %v2540, %v2600
  %v2602 = vpop.f32.mrb[0].mxu0
  %v2603 = vadd.f32 %v2542, %v2602
  %v2604 = vpop.f32.mrb[0].mxu0
  %v2605 = vadd.f32 %v2544, %v2604
  %v2606 = vpop.f32.mrb[0].mxu0
  %v2607 = vadd.f32 %v2546, %v2606
  %2608 = vmatprep.mubr.bf16.mxu0 %v1582
  %2609 = vmatmul.mubr.bf16.gmra.mrb[0].mxu0 %v1581
  %v2610 = vpop.f32.mrb[0].mxu0
  %v2611 = vadd.f32 %v2550, %v2610
  %v2612 = vpop.f32.mrb[0].mxu0
  %v2613 = vadd.f32 %v2552, %v2612
  %v2614 = vpop.f32.mrb[0].mxu0
  %v2615 = vadd.f32 %v2554, %v2614
  %v2616 = vpop.f32.mrb[0].mxu0
  %v2617 = vadd.f32 %v2556, %v2616
  %2618 = vmatprep.mubr.bf16.mxu0 %v1591
  %2619 = vmatmul.mubr.bf16.gmra.mrb[0].mxu0 %v1590
  %v2620 = vpop.f32.mrb[0].mxu0
  %v2621 = vadd.f32 %v2560, %v2620
  %v2622 = vpop.f32.mrb[0].mxu0
  %v2623 = vadd.f32 %v2562, %v2622
  %v2624 = vpop.f32.mrb[0].mxu0
  %v2625 = vpop.f32.mrb[0].mxu0
  %2626 = vdwg.mxu0
  %2627 = vmatprep.subr.bf16.mxu0 %v2252
  %2628 = vmatpush1.bf16.msra.mxu0 %v2251
  %2629 = vmatprep.subr.bf16.mxu0 %v2254
  %2630 = vmatpush1.bf16.msra.mxu0 %v2253
  %2631 = vmatprep.subr.bf16.mxu0 %v2256
  %2632 = vmatpush1.bf16.msra.mxu0 %v2255
  %2633 = vmatprep.subr.bf16.mxu0 %v2258
  %2634 = vmatpush1.bf16.msra.mxu0 %v2257
  %2635 = vmatprep.subr.bf16.mxu0 %v2260
  %2636 = vmatpush1.bf16.msra.mxu0 %v2259
  %2637 = vmatprep.subr.bf16.mxu0 %v2262
  %2638 = vmatpush1.bf16.msra.mxu0 %v2261
  %2639 = vmatprep.subr.bf16.mxu0 %v2264
  %2640 = vmatpush1.bf16.msra.mxu0 %v2263
  %2641 = vmatprep.subr.bf16.mxu0 %v2266
  %2642 = vmatpush1.bf16.msra.mxu0 %v2265
  %2643 = vmatprep.subr.bf16.mxu0 %v2268
  %2644 = vmatpush1.bf16.msra.mxu0 %v2267
  %2645 = vmatprep.subr.bf16.mxu0 %v2270
  %2646 = vmatpush1.bf16.msra.mxu0 %v2269
  %2647 = vmatprep.subr.bf16.mxu0 %v2272
  %2648 = vmatpush1.bf16.msra.mxu0 %v2271
  %2649 = vmatprep.subr.bf16.mxu0 %v2274
  %2650 = vmatpush1.bf16.msra.mxu0 %v2273
  %2651 = vmatprep.subr.bf16.mxu0 %v2276
  %2652 = vmatpush1.bf16.msra.mxu0 %v2275
  %2653 = vmatprep.subr.bf16.mxu0 %v2278
  %2654 = vmatpush1.bf16.msra.mxu0 %v2277
  %2655 = vmatprep.subr.bf16.mxu0 %v2280
  %2656 = vmatpush1.bf16.msra.mxu0 %v2279
  %2657 = vmatprep.subr.bf16.mxu0 %v2282
  %2658 = vmatpush1.bf16.msra.mxu0 %v2281
  %2659 = vmatprep.mubr.bf16.mxu0 %v1576
  %2660 = vmatmul.mubr.bf16.gmra.mrb[0].mxu0 %v1575
  %v2661 = vpop.f32.mrb[0].mxu0
  %v2662 = vadd.f32 %v2601, %v2661
  %v2663 = vpop.f32.mrb[0].mxu0
  %v2664 = vadd.f32 %v2603, %v2663
  %v2665 = vpop.f32.mrb[0].mxu0
  %v2666 = vadd.f32 %v2605, %v2665
  %v2667 = vpop.f32.mrb[0].mxu0
  %v2668 = vadd.f32 %v2607, %v2667
  %2669 = vmatprep.mubr.bf16.mxu0 %v1584
  %2670 = vmatmul.mubr.bf16.gmra.mrb[0].mxu0 %v1583
  %v2671 = vpop.f32.mrb[0].mxu0
  %v2672 = vadd.f32 %v2611, %v2671
  %v2673 = vpop.f32.mrb[0].mxu0
  %v2674 = vadd.f32 %v2613, %v2673
  %v2675 = vpop.f32.mrb[0].mxu0
  %v2676 = vadd.f32 %v2615, %v2675
  %v2677 = vpop.f32.mrb[0].mxu0
  %v2678 = vadd.f32 %v2617, %v2677
  %2679 = vmatprep.mubr.bf16.mxu0 %v1593
  %2680 = vmatmul.mubr.bf16.gmra.mrb[0].mxu0 %v1592
  %v2681 = vpop.f32.mrb[0].mxu0
  %v2682 = vadd.f32 %v2621, %v2681
  %v2683 = vpop.f32.mrb[0].mxu0
  %v2684 = vadd.f32 %v2623, %v2683
  %v2685 = vpop.f32.mrb[0].mxu0
  %v2686 = vpop.f32.mrb[0].mxu0
  %2687 = vdwg.mxu0
  %2688 = vmatprep.subr.bf16.mxu0 %v2284
  %2689 = vmatpush1.bf16.msra.mxu0 %v2283
  %2690 = vmatprep.subr.bf16.mxu0 %v2286
  %2691 = vmatpush1.bf16.msra.mxu0 %v2285
  %2692 = vmatprep.subr.bf16.mxu0 %v2288
  %2693 = vmatpush1.bf16.msra.mxu0 %v2287
  %2694 = vmatprep.subr.bf16.mxu0 %v2290
  %2695 = vmatpush1.bf16.msra.mxu0 %v2289
  %2696 = vmatprep.subr.bf16.mxu0 %v2292
  %2697 = vmatpush1.bf16.msra.mxu0 %v2291
  %2698 = vmatprep.subr.bf16.mxu0 %v2294
  %2699 = vmatpush1.bf16.msra.mxu0 %v2293
  %2700 = vmatprep.subr.bf16.mxu0 0
  %2701 = vmatpush1.bf16.msra.mxu0 0
  %2702 = vmatprep.subr.bf16.mxu0 0
  %2703 = vmatpush1.bf16.msra.mxu0 0
  %2704 = vmatprep.subr.bf16.mxu0 0
  %2705 = vmatpush1.bf16.msra.mxu0 0
  %2706 = vmatprep.subr.bf16.mxu0 0
  %2707 = vmatpush1.bf16.msra.mxu0 0
  %2708 = vmatprep.subr.bf16.mxu0 0
  %2709 = vmatpush1.bf16.msra.mxu0 0
  %2710 = vmatprep.subr.bf16.mxu0 0
  %2711 = vmatpush1.bf16.msra.mxu0 0
  %2712 = vmatprep.subr.bf16.mxu0 0
  %2713 = vmatpush1.bf16.msra.mxu0 0
  %2714 = vmatprep.subr.bf16.mxu0 0
  %2715 = vmatpush1.bf16.msra.mxu0 0
  %2716 = vmatprep.subr.bf16.mxu0 0
  %2717 = vmatpush1.bf16.msra.mxu0 0
  %2718 = vmatprep.subr.bf16.mxu0 0
  %2719 = vmatpush1.bf16.msra.mxu0 0
  %2720 = vmatprep.mubr.bf16.mxu0 0
  %2721 = vmatmul.mubr.bf16.gmra.mrb[0].mxu0 %v2436
  %v2722 = vpop.f32.mrb[0].mxu0
  %v2723 = vadd.f32 %v2662, %v2722
  %v2724 = vpop.f32.mrb[0].mxu0
  %v2725 = vadd.f32 %v2664, %v2724
  %v2726 = vpop.f32.mrb[0].mxu0
  %v2727 = vadd.f32 %v2666, %v2726
  %v2728 = vpop.f32.mrb[0].mxu0
  %v2729 = vadd.f32 %v2668, %v2728
  %2730 = vmatprep.mubr.bf16.mxu0 0
  %2731 = vmatmul.mubr.bf16.gmra.mrb[0].mxu0 %v2439
  %v2732 = vpop.f32.mrb[0].mxu0
  %v2733 = vadd.f32 %v2672, %v2732
  %v2734 = vpop.f32.mrb[0].mxu0
  %v2735 = vadd.f32 %v2674, %v2734
  %v2736 = vpop.f32.mrb[0].mxu0
  %v2737 = vadd.f32 %v2676, %v2736
  %v2738 = vpop.f32.mrb[0].mxu0
  %v2739 = vadd.f32 %v2678, %v2738
  %2740 = vmatprep.mubr.bf16.mxu0 0
  %2741 = vmatmul.mubr.bf16.gmra.mrb[0].mxu0 %v2442
  %v2742 = vpop.f32.mrb[0].mxu0
  %v2743 = vadd.f32 %v2682, %v2742
  %v2744 = vpop.f32.mrb[0].mxu0
  %v2745 = vadd.f32 %v2684, %v2744
  %v2746 = vpop.f32.mrb[0].mxu0
  %v2747 = vpop.f32.mrb[0].mxu0
  %2748 = vdwg.mxu0
  %v2749 = vadd.f32 %v2723, %v2727
  %v2750 = vadd.f32 %v2749, %v2733
  %v2751 = vadd.f32 %v2750, %v2737
  %v2752 = vadd.f32 %v2751, %v2743
  %v2753 = vrot.slane %v2752, 4
  %v2754 = vadd.f32 %v2752, %v2753
  %v2755 = vrot.slane %v2754, 2
  %v2756 = vadd.f32 %v2754, %v2755
  %v2757 = vrot.slane %v2756, 1
  %v2758 = vadd.f32 %v2756, %v2757
  %v2759 = vsel %vm1175, %v2725, 0.0
  %v2760 = vsel %vm1175, %v2729, 0.0
  %v2761 = vadd.f32 %v2759, %v2760
  %v2762 = vsel %vm1175, %v2735, 0.0
  %v2763 = vadd.f32 %v2761, %v2762
  %v2764 = vsel %vm1175, %v2739, 0.0
  %v2765 = vadd.f32 %v2763, %v2764
  %v2766 = vsel %vm1175, %v2745, 0.0
  %v2767 = vadd.f32 %v2765, %v2766
  %v2768 = vrot.slane %v2767, 4
  %v2769 = vadd.f32 %v2767, %v2768
  %v2770 = vrot.slane %v2769, 2
  %v2771 = vadd.f32 %v2769, %v2770
  %v2772 = vrot.slane %v2771, 1
  %v2773 = vadd.f32 %v2771, %v2772
  %2775 = vrot.lane.b32.xlu0 %v2758, 96
  %v2776 = vpop.permute.xlu0 %2775
  %v2778 = vadd.f32 %v2758, %v2776
  %2779 = vrot.lane.b32.xlu0 %v2758, 64
  %v2780 = vpop.permute.xlu0 %2779
  %v2782 = vadd.f32 %v2778, %v2780
  %2783 = vrot.lane.b32.xlu0 %v2758, 32
  %v2784 = vpop.permute.xlu0 %2783
  %v2786 = vadd.f32 %v2782, %v2784
  %v2787 = vadd.f32 %v2786, %v2773
  %v2788 = vmul.f32 %v2723, %v2723
  %v2789 = vmul.f32 %v2725, %v2725
  %v2790 = vmul.f32 %v2727, %v2727
  %v2791 = vmul.f32 %v2729, %v2729
  %v2792 = vmul.f32 %v2733, %v2733
  %v2793 = vmul.f32 %v2735, %v2735
  %v2794 = vmul.f32 %v2737, %v2737
  %v2795 = vmul.f32 %v2739, %v2739
  %v2796 = vmul.f32 %v2743, %v2743
  %v2797 = vmul.f32 %v2745, %v2745
  %v2798 = vadd.f32 %v2788, %v2790
  %v2799 = vadd.f32 %v2798, %v2792
  %v2800 = vadd.f32 %v2799, %v2794
  %v2801 = vadd.f32 %v2800, %v2796
  %v2802 = vrot.slane %v2801, 4
  %v2803 = vadd.f32 %v2801, %v2802
  %v2804 = vrot.slane %v2803, 2
  %v2805 = vadd.f32 %v2803, %v2804
  %v2806 = vrot.slane %v2805, 1
  %v2807 = vadd.f32 %v2805, %v2806
  %v2808 = vsel %vm1175, %v2789, 0.0
  %v2809 = vsel %vm1175, %v2791, 0.0
  %v2810 = vadd.f32 %v2808, %v2809
  %v2811 = vsel %vm1175, %v2793, 0.0
  %v2812 = vadd.f32 %v2810, %v2811
  %v2813 = vsel %vm1175, %v2795, 0.0
  %v2814 = vadd.f32 %v2812, %v2813
  %v2815 = vsel %vm1175, %v2797, 0.0
  %v2816 = vadd.f32 %v2814, %v2815
  %v2817 = vrot.slane %v2816, 4
  %v2818 = vadd.f32 %v2816, %v2817
  %v2819 = vrot.slane %v2818, 2
  %v2820 = vadd.f32 %v2818, %v2819
  %v2821 = vrot.slane %v2820, 1
  %v2822 = vadd.f32 %v2820, %v2821
  %2824 = vrot.lane.b32.xlu0 %v2807, 96
  %v2825 = vpop.permute.xlu0 %2824
  %v2827 = vadd.f32 %v2807, %v2825
  %2828 = vrot.lane.b32.xlu0 %v2807, 64
  %v2829 = vpop.permute.xlu0 %2828
  %v2831 = vadd.f32 %v2827, %v2829
  %2832 = vrot.lane.b32.xlu0 %v2807, 32
  %v2833 = vpop.permute.xlu0 %2832
  %v2835 = vadd.f32 %v2831, %v2833
  %v2836 = vadd.f32 %v2835, %v2822
  %v2837 = vrcp.pop 50.0
  %v2838 = vmul.f32 %v2787, %v2837
  %v2839 = vmul.f32 %v2836, %v2837
  %v2840 = vmul.f32 %v2838, %v2838
  %v2841 = vsub.f32 %v2839, %v2840
  %v2842 = vld [vmem:[%s7] sm:$0x1]
  %v2843 = vadd.f32 %v2841, 1e-05
  %v2844 = vrsqrt.pop %v2843
  %v2845 = vmul.f32 %v2842, %v2844
  %v2846 = vld [vmem:[%s8] sm:$0x1]
  %v2847 = vmul.f32 %v2838, %v2845
  %v2848 = vsub.f32 %v2846, %v2847
  %v2850 = vlaneseq
  %v2851 = vshrl.u32 %v2850, 7
  %v2852 = vsub.s32 0, %v2851
  %v2853 = vrot.slane %v2845, %v2852
  %2854 = vrot.lane.b32.xlu0 %v2853, 32
  %v2855 = vpop.permute.xlu0 %2854
  %2857 = vrot.lane.b32.xlu0 %v2853, 64
  %v2858 = vpop.permute.xlu0 %2857
  %2860 = vrot.lane.b32.xlu0 %v2853, 96
  %v2861 = vpop.permute.xlu0 %2860
  %v2863 = vsel %vm1175, %v2845, %v2855
  %v2864 = vsel %vm1179, %v2863, %v2858
  %v2865 = vsel %vm919, %v2864, %v2861
  %v2866 = vlaneseq
  %v2867 = vshrl.u32 %v2866, 7
  %v2868 = vsub.s32 0, %v2867
  %v2869 = vrot.slane %v2865, %v2868
  %v2870 = vlaneseq
  %v2871 = vshrl.u32 %v2870, 7
  %v2872 = vsub.s32 0, %v2871
  %v2873 = vrot.slane %v2845, %v2872
  %v2874 = vmul.f32 %v2723, %v2869
  %v2875 = vmul.f32 %v2725, %v2873
  %v2876 = vmul.f32 %v2727, %v2869
  %v2877 = vmul.f32 %v2729, %v2873
  %v2878 = vmul.f32 %v2733, %v2869
  %v2879 = vmul.f32 %v2735, %v2873
  %v2880 = vmul.f32 %v2737, %v2869
  %v2881 = vmul.f32 %v2739, %v2873
  %v2882 = vmul.f32 %v2743, %v2869
  %v2883 = vmul.f32 %v2745, %v2873
  %v2885 = vlaneseq
  %v2886 = vshrl.u32 %v2885, 7
  %v2887 = vsub.s32 0, %v2886
  %v2888 = vrot.slane %v2848, %v2887
  %2889 = vrot.lane.b32.xlu0 %v2888, 32
  %v2890 = vpop.permute.xlu0 %2889
  %2892 = vrot.lane.b32.xlu0 %v2888, 64
  %v2893 = vpop.permute.xlu0 %2892
  %2895 = vrot.lane.b32.xlu0 %v2888, 96
  %v2896 = vpop.permute.xlu0 %2895
  %v2898 = vsel %vm1175, %v2848, %v2890
  %v2899 = vsel %vm1179, %v2898, %v2893
  %v2900 = vsel %vm919, %v2899, %v2896
  %v2901 = vlaneseq
  %v2902 = vshrl.u32 %v2901, 7
  %v2903 = vsub.s32 0, %v2902
  %v2904 = vrot.slane %v2900, %v2903
  %v2905 = vlaneseq
  %v2906 = vshrl.u32 %v2905, 7
  %v2907 = vsub.s32 0, %v2906
  %v2908 = vrot.slane %v2848, %v2907
  %v2909 = vadd.f32 %v2874, %v2904
  %v2910 = vadd.f32 %v2875, %v2908
  %v2911 = vadd.f32 %v2876, %v2904
  %v2912 = vadd.f32 %v2877, %v2908
  %v2913 = vadd.f32 %v2878, %v2904
  %v2914 = vadd.f32 %v2879, %v2908
  %v2915 = vadd.f32 %v2880, %v2904
  %v2916 = vadd.f32 %v2881, %v2908
  %v2917 = vadd.f32 %v2882, %v2904
  %v2918 = vadd.f32 %v2883, %v2908
  %v2919 = vmax.f32 %v2909, 0.0
  %v2920 = vmax.f32 %v2910, 0.0
  %v2921 = vmax.f32 %v2911, 0.0
  %v2922 = vmax.f32 %v2912, 0.0
  %v2923 = vmax.f32 %v2913, 0.0
  %v2924 = vmax.f32 %v2914, 0.0
  %v2925 = vmax.f32 %v2915, 0.0
  %v2926 = vmax.f32 %v2916, 0.0
  %v2927 = vmax.f32 %v2917, 0.0
  %v2928 = vmax.f32 %v2918, 0.0
  %v2929 = vld [vmem:[%s13] sm:$0xff]
  %v2930 = vld [vmem:[%s13 + $0x8] sm:$0xff]
  %v2931 = vld [vmem:[%s13 + $0x10] sm:$0xff]
  %v2932 = vld [vmem:[%s13 + $0x18] sm:$0xff]
  %v2933 = vld [vmem:[%s13 + $0x20] sm:$0xff]
  %2935 = vset.pattern.permute.xlu0 0
  %2936 = vperm.xlu0 %2935, %v2929
  %v2937 = vpop.permute.xlu0 %2936
  %2940 = vset.pattern.permute.xlu0 0
  %2941 = vperm.xlu0 %2940, %v2930
  %v2942 = vpop.permute.xlu0 %2941
  %2945 = vset.pattern.permute.xlu0 0
  %2946 = vperm.xlu0 %2945, %v2931
  %v2947 = vpop.permute.xlu0 %2946
  %2950 = vset.pattern.permute.xlu0 0
  %2951 = vperm.xlu0 %2950, %v2932
  %v2952 = vpop.permute.xlu0 %2951
  %2955 = vset.pattern.permute.xlu0 0
  %2956 = vperm.xlu0 %2955, %v2933
  %v2957 = vpop.permute.xlu0 %2956
  %v2959 = vmul.f32 %v2919, %v2937
  %v2960 = vmul.f32 %v2920, %v2937
  %v2961 = vmul.f32 %v2921, %v2942
  %v2962 = vmul.f32 %v2922, %v2942
  %v2963 = vmul.f32 %v2923, %v2947
  %v2964 = vmul.f32 %v2924, %v2947
  %v2965 = vmul.f32 %v2925, %v2952
  %v2966 = vmul.f32 %v2926, %v2952
  %v2967 = vmul.f32 %v2927, %v2957
  %v2968 = vmul.f32 %v2928, %v2957
  %2971 = vrot.lane.b32.xlu0 %v2961, 32
  %v2972 = vpop.permute.xlu0 %2971
  %2973 = vrot.lane.b32.xlu0 %v2962, 32
  %v2974 = vpop.permute.xlu0 %2973
  %v2975 = vsel %vm1175, %v2972, %v2974
  %2980 = vrot.lane.b32.xlu0 %v2963, 64
  %v2981 = vpop.permute.xlu0 %2980
  %2982 = vrot.lane.b32.xlu0 %v2964, 64
  %v2983 = vpop.permute.xlu0 %2982
  %v2984 = vsel %vm1179, %v2981, %v2983
  %2989 = vrot.lane.b32.xlu0 %v2965, 96
  %v2990 = vpop.permute.xlu0 %2989
  %2991 = vrot.lane.b32.xlu0 %v2966, 96
  %v2992 = vpop.permute.xlu0 %2991
  %v2993 = vsel %vm919, %v2990, %v2992
  %v2996 = vsel %vm1175, %v2960, %v2972
  %v2997 = vsel %vm1179, %v2975, %v2981
  %v2998 = vsel %vm919, %v2984, %v2990
  %v2999 = vpack.c.bf16 %v2959, %v2959
  %v3000 = vpack.c.bf16 %v2996, %v2996
  %v3001 = vpack.c.bf16 %v2997, %v2997
  %v3002 = vpack.c.bf16 %v2998, %v2998
  %v3003 = vpack.c.bf16 %v2993, %v2993
  %v3004 = vpack.c.bf16 %v2967, %v2967
  %v3005 = vpack.c.bf16 %v2968, %v2968
  %v3006 = vld [vmem:[%s3] sm:$0xf]
  %v3007 = vld [vmem:[%s3 + $0x4] sm:$0xf]
  %v3008 = vld [vmem:[%s3 + $0x8] sm:$0xf]
  %v3009 = vld [vmem:[%s3 + $0xc] sm:$0xf]
  %v3010 = vld [vmem:[%s3 + $0x10] sm:$0xf]
  %v3011 = vld [vmem:[%s3 + $0x14] sm:$0xf]
  %v3012 = vld [vmem:[%s3 + $0x18] sm:$0xf]
  %v3013 = vld [vmem:[%s3 + $0x1c] sm:$0xf]
  %v3014 = vld [vmem:[%s3 + $0x20] sm:$0xf]
  %v3015 = vld [vmem:[%s3 + $0x24] sm:$0xf]
  %v3016 = vld [vmem:[%s3 + $0x28] sm:$0xf]
  %v3017 = vld [vmem:[%s3 + $0x2c] sm:$0xf]
  %v3018 = vld [vmem:[%s3 + $0x30] sm:$0xf]
  %v3019 = vld [vmem:[%s3 + $0x34] sm:$0xf]
  %v3020 = vld [vmem:[%s3 + $0x38] sm:$0xf]
  %v3021 = vld [vmem:[%s3 + $0x3c] sm:$0xf]
  %v3022 = vld [vmem:[%s3 + $0x40] sm:$0xf]
  %v3023 = vld [vmem:[%s3 + $0x44] sm:$0xf]
  %v3024 = vld [vmem:[%s3 + $0x48] sm:$0xf]
  %v3025 = vld [vmem:[%s3 + $0x4c] sm:$0xf]
  %v3026 = vld [vmem:[%s3 + $0x50] sm:$0xf]
  %v3027 = vld [vmem:[%s3 + $0x54] sm:$0xf]
  %v3028 = vld [vmem:[%s3 + $0x58] sm:$0xf]
  %v3029 = vld [vmem:[%s3 + $0x5c] sm:$0xf]
  %v3030 = vld [vmem:[%s3 + $0x60] sm:$0xf]
  %v3031 = vld [vmem:[%s3 + $0x64] sm:$0xf]
  %v3032 = vld [vmem:[%s3 + $0x68] sm:$0xf]
  %v3033 = vld [vmem:[%s3 + $0x6c] sm:$0xf]
  %v3034 = vld [vmem:[%s3 + $0x70] sm:$0xf]
  %v3035 = vld [vmem:[%s3 + $0x74] sm:$0xf]
  %v3036 = vld [vmem:[%s3 + $0x78] sm:$0xf]
  %v3037 = vld [vmem:[%s3 + $0x7c] sm:$0xf]
  %v3038 = vld [vmem:[%s3 + $0x80] sm:$0xf]
  %v3039 = vld [vmem:[%s3 + $0x84] sm:$0xf]
  %v3040 = vld [vmem:[%s3 + $0x88] sm:$0xf]
  %v3041 = vld [vmem:[%s3 + $0x8c] sm:$0xf]
  %v3042 = vld [vmem:[%s3 + $0x90] sm:$0xf]
  %v3043 = vld [vmem:[%s3 + $0x94] sm:$0xf]
  %v3044 = vld [vmem:[%s3 + $0x98] sm:$0xf]
  %v3045 = vld [vmem:[%s3 + $0x9c] sm:$0xf]
  %v3046 = vld [vmem:[%s3 + $0xa0] sm:$0xf]
  %v3047 = vld [vmem:[%s3 + $0xa4] sm:$0xf]
  %v3048 = vld [vmem:[%s3 + $0xa8] sm:$0xf]
  %v3049 = vld [vmem:[%s3 + $0xac] sm:$0xf]
  %v3050 = vld [vmem:[%s3 + $0xb0] sm:$0xf]
  %v3051 = vld [vmem:[%s3 + $0xb4] sm:$0xf]
  %v3052 = vld [vmem:[%s3 + $0xb8] sm:$0xf]
  %v3053 = vld [vmem:[%s3 + $0xbc] sm:$0xf]
  %v3054 = vld [vmem:[%s3 + $0xc0] sm:$0xf]
  %v3055 = vld [vmem:[%s3 + $0xc4] sm:$0xf]
  %v3056 = vld [vmem:[%s3 + $0xc8] sm:$0xf]
  %v3057 = vld [vmem:[%s3 + $0xcc] sm:$0xf]
  %v3058 = vld [vmem:[%s3 + $0xd0] sm:$0xf]
  %v3059 = vld [vmem:[%s3 + $0xd4] sm:$0xf]
  %v3060 = vld [vmem:[%s3 + $0xd8] sm:$0xf]
  %v3061 = vld [vmem:[%s3 + $0xdc] sm:$0xf]
  %v3062 = vld [vmem:[%s3 + $0xe0] sm:$0xf]
  %v3063 = vld [vmem:[%s3 + $0xe4] sm:$0xf]
  %v3064 = vld [vmem:[%s3 + $0xe8] sm:$0xf]
  %v3065 = vld [vmem:[%s3 + $0xec] sm:$0xf]
  %v3066 = vld [vmem:[%s3 + $0xf0] sm:$0xf]
  %v3067 = vld [vmem:[%s3 + $0xf4] sm:$0xf]
  %v3068 = vld [vmem:[%s3 + $0xf8] sm:$0xf]
  %v3069 = vld [vmem:[%s3 + $0xfc] sm:$0xf]
  %v3070 = vld [vmem:[%s3 + $0x100] sm:$0xf]
  %v3071 = vld [vmem:[%s3 + $0x104] sm:$0xf]
  %v3072 = vld [vmem:[%s3 + $0x108] sm:$0xf]
  %v3073 = vld [vmem:[%s3 + $0x10c] sm:$0xf]
  %v3074 = vld [vmem:[%s3 + $0x110] sm:$0xf]
  %v3075 = vld [vmem:[%s3 + $0x114] sm:$0xf]
  %v3076 = vld [vmem:[%s3 + $0x118] sm:$0xf]
  %v3077 = vld [vmem:[%s3 + $0x11c] sm:$0xf]
  %v3078 = vld [vmem:[%s3 + $0x120] sm:$0xf]
  %v3079 = vld [vmem:[%s3 + $0x124] sm:$0xf]
  %v3080 = vld [vmem:[%s3 + $0x128] sm:$0xf]
  %v3081 = vld [vmem:[%s3 + $0x12c] sm:$0xf]
  %v3082 = vld [vmem:[%s3 + $0x130] sm:$0xf]
  %v3083 = vld [vmem:[%s3 + $0x134] sm:$0xf]
  %v3084 = vld [vmem:[%s3 + $0x138] sm:$0xf]
  %v3085 = vld [vmem:[%s3 + $0x13c] sm:$0xf]
  %v3086 = vld [vmem:[%s3 + $0x140] sm:$0xf]
  %v3087 = vld [vmem:[%s3 + $0x144] sm:$0xf]
  %v3088 = vld [vmem:[%s3 + $0x148] sm:$0xf]
  %v3089 = vld [vmem:[%s3 + $0x14c] sm:$0xf]
  %v3090 = vld [vmem:[%s3 + $0x150] sm:$0xf]
  %v3091 = vld [vmem:[%s3 + $0x154] sm:$0xf]
  %v3092 = vld [vmem:[%s3 + $0x158] sm:$0xf]
  %v3093 = vld [vmem:[%s3 + $0x15c] sm:$0xf]
  %v3094 = vld [vmem:[%s3 + $0x160] sm:$0xf]
  %v3095 = vld [vmem:[%s3 + $0x164] sm:$0xf]
  %v3096 = vld [vmem:[%s3 + $0x168] sm:$0xf]
  %v3097 = vld [vmem:[%s3 + $0x16c] sm:$0xf]
  %v3098 = vld [vmem:[%s3 + $0x170] sm:$0xf]
  %v3099 = vld [vmem:[%s3 + $0x174] sm:$0xf]
  %v3100 = vld [vmem:[%s3 + $0x178] sm:$0xf]
  %v3101 = vld [vmem:[%s3 + $0x17c] sm:$0xf]
  %v3102 = vld [vmem:[%s3 + $0x180] sm:$0xf]
  %v3103 = vld [vmem:[%s3 + $0x184] sm:$0xf]
  %v3104 = vld [vmem:[%s3 + $0x188] sm:$0xf]
  %v3105 = vld [vmem:[%s3 + $0x18c] sm:$0xf]
  %v3206 = vunpack.c.l.b16 %v3006
  %v3207 = vunpack.c.l.b16 %v3007
  %v3208 = vunpack.c.l.b16 %v3008
  %v3209 = vunpack.c.l.b16 %v3009
  %v3210 = vunpack.c.l.b16 %v3010
  %v3211 = vunpack.c.l.b16 %v3011
  %v3212 = vunpack.c.l.b16 %v3012
  %v3213 = vunpack.c.l.b16 %v3013
  %v3214 = vunpack.c.l.b16 %v3014
  %v3215 = vunpack.c.l.b16 %v3015
  %v3216 = vunpack.c.l.b16 %v3016
  %v3217 = vunpack.c.l.b16 %v3017
  %v3218 = vunpack.c.l.b16 %v3018
  %v3219 = vunpack.c.l.b16 %v3019
  %v3220 = vunpack.c.l.b16 %v3020
  %v3221 = vunpack.c.l.b16 %v3021
  %v3222 = vunpack.c.l.b16 %v3022
  %v3223 = vunpack.c.l.b16 %v3023
  %v3224 = vunpack.c.l.b16 %v3024
  %v3225 = vunpack.c.l.b16 %v3025
  %v3226 = vunpack.c.l.b16 %v3026
  %v3227 = vunpack.c.l.b16 %v3027
  %v3228 = vunpack.c.l.b16 %v3028
  %v3229 = vunpack.c.l.b16 %v3029
  %v3230 = vunpack.c.l.b16 %v3030
  %v3231 = vunpack.c.l.b16 %v3031
  %v3232 = vunpack.c.l.b16 %v3032
  %v3233 = vunpack.c.l.b16 %v3033
  %v3234 = vunpack.c.l.b16 %v3034
  %v3235 = vunpack.c.l.b16 %v3035
  %v3236 = vunpack.c.l.b16 %v3036
  %v3237 = vunpack.c.l.b16 %v3037
  %v3238 = vunpack.c.l.b16 %v3038
  %v3239 = vunpack.c.l.b16 %v3039
  %v3240 = vunpack.c.l.b16 %v3040
  %v3241 = vunpack.c.l.b16 %v3041
  %v3242 = vunpack.c.l.b16 %v3042
  %v3243 = vunpack.c.l.b16 %v3043
  %v3244 = vunpack.c.l.b16 %v3044
  %v3245 = vunpack.c.l.b16 %v3045
  %v3246 = vunpack.c.l.b16 %v3046
  %v3247 = vunpack.c.l.b16 %v3047
  %v3248 = vunpack.c.l.b16 %v3048
  %v3249 = vunpack.c.l.b16 %v3049
  %v3250 = vunpack.c.l.b16 %v3050
  %v3251 = vunpack.c.l.b16 %v3051
  %v3252 = vunpack.c.l.b16 %v3052
  %v3253 = vunpack.c.l.b16 %v3053
  %v3254 = vunpack.c.l.b16 %v3054
  %v3255 = vunpack.c.l.b16 %v3055
  %v3256 = vunpack.c.l.b16 %v3056
  %v3257 = vunpack.c.l.b16 %v3057
  %v3258 = vunpack.c.l.b16 %v3058
  %v3259 = vunpack.c.l.b16 %v3059
  %v3260 = vunpack.c.l.b16 %v3060
  %v3261 = vunpack.c.l.b16 %v3061
  %v3262 = vunpack.c.l.b16 %v3062
  %v3263 = vunpack.c.l.b16 %v3063
  %v3264 = vunpack.c.l.b16 %v3064
  %v3265 = vunpack.c.l.b16 %v3065
  %v3266 = vunpack.c.l.b16 %v3066
  %v3267 = vunpack.c.l.b16 %v3067
  %v3268 = vunpack.c.l.b16 %v3068
  %v3269 = vunpack.c.l.b16 %v3069
  %v3270 = vunpack.c.l.b16 %v3070
  %v3271 = vunpack.c.l.b16 %v3071
  %v3272 = vunpack.c.l.b16 %v3072
  %v3273 = vunpack.c.l.b16 %v3073
  %v3274 = vunpack.c.l.b16 %v3074
  %v3275 = vunpack.c.l.b16 %v3075
  %v3276 = vunpack.c.l.b16 %v3076
  %v3277 = vunpack.c.l.b16 %v3077
  %v3278 = vunpack.c.l.b16 %v3078
  %v3279 = vunpack.c.l.b16 %v3079
  %v3280 = vunpack.c.l.b16 %v3080
  %v3281 = vunpack.c.l.b16 %v3081
  %v3282 = vunpack.c.l.b16 %v3082
  %v3283 = vunpack.c.l.b16 %v3083
  %v3284 = vunpack.c.l.b16 %v3084
  %v3285 = vunpack.c.l.b16 %v3085
  %v3286 = vunpack.c.l.b16 %v3086
  %v3287 = vunpack.c.l.b16 %v3087
  %v3288 = vunpack.c.l.b16 %v3088
  %v3289 = vunpack.c.l.b16 %v3089
  %v3290 = vunpack.c.l.b16 %v3090
  %v3291 = vunpack.c.l.b16 %v3091
  %v3292 = vunpack.c.l.b16 %v3092
  %v3293 = vunpack.c.l.b16 %v3093
  %v3294 = vunpack.c.l.b16 %v3094
  %v3295 = vunpack.c.l.b16 %v3095
  %v3296 = vunpack.c.l.b16 %v3096
  %v3297 = vunpack.c.l.b16 %v3097
  %v3298 = vunpack.c.l.b16 %v3098
  %v3299 = vunpack.c.l.b16 %v3099
  %v3300 = vunpack.c.l.b16 %v3100
  %v3301 = vunpack.c.l.b16 %v3101
  %v3302 = vunpack.c.l.b16 %v3102
  %v3303 = vunpack.c.l.b16 %v3103
  %v3304 = vunpack.c.l.b16 %v3104
  %v3305 = vunpack.c.l.b16 %v3105
  %v3306 = vpack.c.b16 %v3207, %v3206
  %v3307 = vpack.c.b16 %v3209, %v3208
  %v3308 = vpack.c.b16 %v3211, %v3210
  %v3309 = vpack.c.b16 %v3213, %v3212
  %v3310 = vpack.c.b16 %v3215, %v3214
  %v3311 = vpack.c.b16 %v3217, %v3216
  %v3312 = vpack.c.b16 %v3219, %v3218
  %v3313 = vpack.c.b16 %v3221, %v3220
  %v3314 = vpack.c.b16 %v3223, %v3222
  %v3315 = vpack.c.b16 %v3225, %v3224
  %v3316 = vpack.c.b16 %v3227, %v3226
  %v3317 = vpack.c.b16 %v3229, %v3228
  %v3318 = vpack.c.b16 %v3231, %v3230
  %v3319 = vpack.c.b16 %v3233, %v3232
  %v3320 = vpack.c.b16 %v3235, %v3234
  %v3321 = vpack.c.b16 %v3237, %v3236
  %v3322 = vpack.c.b16 %v3239, %v3238
  %v3323 = vpack.c.b16 %v3241, %v3240
  %v3324 = vpack.c.b16 %v3243, %v3242
  %v3325 = vpack.c.b16 %v3245, %v3244
  %v3326 = vpack.c.b16 %v3247, %v3246
  %v3327 = vpack.c.b16 %v3249, %v3248
  %v3328 = vpack.c.b16 %v3251, %v3250
  %v3329 = vpack.c.b16 %v3253, %v3252
  %v3330 = vpack.c.b16 %v3255, %v3254
  %v3331 = vpack.c.b16 %v3257, %v3256
  %v3332 = vpack.c.b16 %v3259, %v3258
  %v3333 = vpack.c.b16 %v3261, %v3260
  %v3334 = vpack.c.b16 %v3263, %v3262
  %v3335 = vpack.c.b16 %v3265, %v3264
  %v3336 = vpack.c.b16 %v3267, %v3266
  %v3337 = vpack.c.b16 %v3269, %v3268
  %v3338 = vpack.c.b16 %v3271, %v3270
  %v3339 = vpack.c.b16 %v3273, %v3272
  %v3340 = vpack.c.b16 %v3275, %v3274
  %v3341 = vpack.c.b16 %v3277, %v3276
  %v3342 = vpack.c.b16 %v3279, %v3278
  %v3343 = vpack.c.b16 %v3281, %v3280
  %v3344 = vpack.c.b16 %v3283, %v3282
  %v3345 = vpack.c.b16 %v3285, %v3284
  %v3346 = vpack.c.b16 %v3287, %v3286
  %v3347 = vpack.c.b16 %v3289, %v3288
  %v3348 = vpack.c.b16 %v3291, %v3290
  %v3349 = vpack.c.b16 %v3293, %v3292
  %v3350 = vpack.c.b16 %v3295, %v3294
  %v3351 = vpack.c.b16 %v3297, %v3296
  %v3352 = vpack.c.b16 %v3299, %v3298
  %v3353 = vpack.c.b16 %v3301, %v3300
  %v3354 = vpack.c.b16 %v3303, %v3302
  %v3355 = vpack.c.b16 %v3305, %v3304
  %v3407 = vsel %vm1175, %v3005, 0
  %3409 = vmatprep.subr.bf16.mxu0 0
  %3410 = vmatpush1.bf16.msra.mxu0 %v3306
  %3411 = vmatprep.subr.bf16.mxu0 0
  %3412 = vmatpush1.bf16.msra.mxu0 %v3307
  %3413 = vmatprep.subr.bf16.mxu0 0
  %3414 = vmatpush1.bf16.msra.mxu0 %v3308
  %3415 = vmatprep.subr.bf16.mxu0 0
  %3416 = vmatpush1.bf16.msra.mxu0 %v3309
  %3417 = vmatprep.subr.bf16.mxu0 0
  %3418 = vmatpush1.bf16.msra.mxu0 %v3310
  %3419 = vmatprep.subr.bf16.mxu0 0
  %3420 = vmatpush1.bf16.msra.mxu0 %v3311
  %3421 = vmatprep.subr.bf16.mxu0 0
  %3422 = vmatpush1.bf16.msra.mxu0 %v3312
  %3423 = vmatprep.subr.bf16.mxu0 0
  %3424 = vmatpush1.bf16.msra.mxu0 %v3313
  %3425 = vmatprep.subr.bf16.mxu0 0
  %3426 = vmatpush1.bf16.msra.mxu0 %v3314
  %3427 = vmatprep.subr.bf16.mxu0 0
  %3428 = vmatpush1.bf16.msra.mxu0 %v3315
  %3429 = vmatprep.subr.bf16.mxu0 0
  %3430 = vmatpush1.bf16.msra.mxu0 %v3316
  %3431 = vmatprep.subr.bf16.mxu0 0
  %3432 = vmatpush1.bf16.msra.mxu0 %v3317
  %3433 = vmatprep.subr.bf16.mxu0 0
  %3434 = vmatpush1.bf16.msra.mxu0 %v3318
  %3435 = vmatprep.subr.bf16.mxu0 0
  %3436 = vmatpush1.bf16.msra.mxu0 %v3319
  %3437 = vmatprep.subr.bf16.mxu0 0
  %3438 = vmatpush1.bf16.msra.mxu0 %v3320
  %3439 = vmatprep.subr.bf16.mxu0 0
  %3440 = vmatpush1.bf16.msra.mxu0 %v3321
  %3441 = vmatprep.mubr.bf16.mxu0 %v3000
  %3442 = vmatmul.mubr.bf16.gmra.mrb[0].mxu0 %v2999
  %v3443 = vpop.f32.mrb[0].mxu0
  %v3444 = vadd.f32 0.0, %v3443
  %v3445 = vpop.f32.mrb[0].mxu0
  %v3446 = vpop.f32.mrb[0].mxu0
  %v3447 = vpop.f32.mrb[0].mxu0
  %3448 = vdwg.mxu0
  %3449 = vmatprep.subr.bf16.mxu0 0
  %3450 = vmatpush1.bf16.msra.mxu0 %v3322
  %3451 = vmatprep.subr.bf16.mxu0 0
  %3452 = vmatpush1.bf16.msra.mxu0 %v3323
  %3453 = vmatprep.subr.bf16.mxu0 0
  %3454 = vmatpush1.bf16.msra.mxu0 %v3324
  %3455 = vmatprep.subr.bf16.mxu0 0
  %3456 = vmatpush1.bf16.msra.mxu0 %v3325
  %3457 = vmatprep.subr.bf16.mxu0 0
  %3458 = vmatpush1.bf16.msra.mxu0 %v3326
  %3459 = vmatprep.subr.bf16.mxu0 0
  %3460 = vmatpush1.bf16.msra.mxu0 %v3327
  %3461 = vmatprep.subr.bf16.mxu0 0
  %3462 = vmatpush1.bf16.msra.mxu0 %v3328
  %3463 = vmatprep.subr.bf16.mxu0 0
  %3464 = vmatpush1.bf16.msra.mxu0 %v3329
  %3465 = vmatprep.subr.bf16.mxu0 0
  %3466 = vmatpush1.bf16.msra.mxu0 %v3330
  %3467 = vmatprep.subr.bf16.mxu0 0
  %3468 = vmatpush1.bf16.msra.mxu0 %v3331
  %3469 = vmatprep.subr.bf16.mxu0 0
  %3470 = vmatpush1.bf16.msra.mxu0 %v3332
  %3471 = vmatprep.subr.bf16.mxu0 0
  %3472 = vmatpush1.bf16.msra.mxu0 %v3333
  %3473 = vmatprep.subr.bf16.mxu0 0
  %3474 = vmatpush1.bf16.msra.mxu0 %v3334
  %3475 = vmatprep.subr.bf16.mxu0 0
  %3476 = vmatpush1.bf16.msra.mxu0 %v3335
  %3477 = vmatprep.subr.bf16.mxu0 0
  %3478 = vmatpush1.bf16.msra.mxu0 %v3336
  %3479 = vmatprep.subr.bf16.mxu0 0
  %3480 = vmatpush1.bf16.msra.mxu0 %v3337
  %3481 = vmatprep.mubr.bf16.mxu0 %v3002
  %3482 = vmatmul.mubr.bf16.gmra.mrb[0].mxu0 %v3001
  %v3483 = vpop.f32.mrb[0].mxu0
  %v3484 = vadd.f32 %v3444, %v3483
  %v3485 = vpop.f32.mrb[0].mxu0
  %v3486 = vpop.f32.mrb[0].mxu0
  %v3487 = vpop.f32.mrb[0].mxu0
  %3488 = vdwg.mxu0
  %3489 = vmatprep.subr.bf16.mxu0 0
  %3490 = vmatpush1.bf16.msra.mxu0 %v3338
  %3491 = vmatprep.subr.bf16.mxu0 0
  %3492 = vmatpush1.bf16.msra.mxu0 %v3339
  %3493 = vmatprep.subr.bf16.mxu0 0
  %3494 = vmatpush1.bf16.msra.mxu0 %v3340
  %3495 = vmatprep.subr.bf16.mxu0 0
  %3496 = vmatpush1.bf16.msra.mxu0 %v3341
  %3497 = vmatprep.subr.bf16.mxu0 0
  %3498 = vmatpush1.bf16.msra.mxu0 %v3342
  %3499 = vmatprep.subr.bf16.mxu0 0
  %3500 = vmatpush1.bf16.msra.mxu0 %v3343
  %3501 = vmatprep.subr.bf16.mxu0 0
  %3502 = vmatpush1.bf16.msra.mxu0 %v3344
  %3503 = vmatprep.subr.bf16.mxu0 0
  %3504 = vmatpush1.bf16.msra.mxu0 %v3345
  %3505 = vmatprep.subr.bf16.mxu0 0
  %3506 = vmatpush1.bf16.msra.mxu0 %v3346
  %3507 = vmatprep.subr.bf16.mxu0 0
  %3508 = vmatpush1.bf16.msra.mxu0 %v3347
  %3509 = vmatprep.subr.bf16.mxu0 0
  %3510 = vmatpush1.bf16.msra.mxu0 %v3348
  %3511 = vmatprep.subr.bf16.mxu0 0
  %3512 = vmatpush1.bf16.msra.mxu0 %v3349
  %3513 = vmatprep.subr.bf16.mxu0 0
  %3514 = vmatpush1.bf16.msra.mxu0 %v3350
  %3515 = vmatprep.subr.bf16.mxu0 0
  %3516 = vmatpush1.bf16.msra.mxu0 %v3351
  %3517 = vmatprep.subr.bf16.mxu0 0
  %3518 = vmatpush1.bf16.msra.mxu0 %v3352
  %3519 = vmatprep.subr.bf16.mxu0 0
  %3520 = vmatpush1.bf16.msra.mxu0 %v3353
  %3521 = vmatprep.mubr.bf16.mxu0 %v3004
  %3522 = vmatmul.mubr.bf16.gmra.mrb[0].mxu0 %v3003
  %v3523 = vpop.f32.mrb[0].mxu0
  %v3524 = vadd.f32 %v3484, %v3523
  %v3525 = vpop.f32.mrb[0].mxu0
  %v3526 = vpop.f32.mrb[0].mxu0
  %v3527 = vpop.f32.mrb[0].mxu0
  %3528 = vdwg.mxu0
  %3529 = vmatprep.subr.bf16.mxu0 0
  %3530 = vmatpush1.bf16.msra.mxu0 %v3354
  %3531 = vmatprep.subr.bf16.mxu0 0
  %3532 = vmatpush1.bf16.msra.mxu0 %v3355
  %3533 = vmatprep.subr.bf16.mxu0 0
  %3534 = vmatpush1.bf16.msra.mxu0 0
  %3535 = vmatprep.subr.bf16.mxu0 0
  %3536 = vmatpush1.bf16.msra.mxu0 0
  %3537 = vmatprep.subr.bf16.mxu0 0
  %3538 = vmatpush1.bf16.msra.mxu0 0
  %3539 = vmatprep.subr.bf16.mxu0 0
  %3540 = vmatpush1.bf16.msra.mxu0 0
  %3541 = vmatprep.subr.bf16.mxu0 0
  %3542 = vmatpush1.bf16.msra.mxu0 0
  %3543 = vmatprep.subr.bf16.mxu0 0
  %3544 = vmatpush1.bf16.msra.mxu0 0
  %3545 = vmatprep.subr.bf16.mxu0 0
  %3546 = vmatpush1.bf16.msra.mxu0 0
  %3547 = vmatprep.subr.bf16.mxu0 0
  %3548 = vmatpush1.bf16.msra.mxu0 0
  %3549 = vmatprep.subr.bf16.mxu0 0
  %3550 = vmatpush1.bf16.msra.mxu0 0
  %3551 = vmatprep.subr.bf16.mxu0 0
  %3552 = vmatpush1.bf16.msra.mxu0 0
  %3553 = vmatprep.subr.bf16.mxu0 0
  %3554 = vmatpush1.bf16.msra.mxu0 0
  %3555 = vmatprep.subr.bf16.mxu0 0
  %3556 = vmatpush1.bf16.msra.mxu0 0
  %3557 = vmatprep.subr.bf16.mxu0 0
  %3558 = vmatpush1.bf16.msra.mxu0 0
  %3559 = vmatprep.subr.bf16.mxu0 0
  %3560 = vmatpush1.bf16.msra.mxu0 0
  %3561 = vmatprep.mubr.bf16.mxu0 0
  %3562 = vmatmul.mubr.bf16.gmra.mrb[0].mxu0 %v3407
  %v3563 = vpop.f32.mrb[0].mxu0
  %v3564 = vadd.f32 %v3524, %v3563
  %v3565 = vpop.f32.mrb[0].mxu0
  %v3566 = vpop.f32.mrb[0].mxu0
  %v3567 = vpop.f32.mrb[0].mxu0
  %3568 = vdwg.mxu0
  %v3569 = vsel %vm1175, %v3564, 0.0
  %v3570 = vrot.slane %v3569, 4
  %v3571 = vadd.f32 %v3569, %v3570
  %v3572 = vrot.slane %v3571, 2
  %v3573 = vadd.f32 %v3571, %v3572
  %v3574 = vrot.slane %v3573, 1
  %v3575 = vadd.f32 %v3573, %v3574
  %v3576 = vmul.f32 %v3564, %v3564
  %v3577 = vsel %vm1175, %v3576, 0.0
  %v3578 = vrot.slane %v3577, 4
  %v3579 = vadd.f32 %v3577, %v3578
  %v3580 = vrot.slane %v3579, 2
  %v3581 = vadd.f32 %v3579, %v3580
  %v3582 = vrot.slane %v3581, 1
  %v3583 = vadd.f32 %v3581, %v3582
  %v3584 = vrcp.pop 2.0
  %v3585 = vmul.f32 %v3575, %v3584
  %v3586 = vmul.f32 %v3583, %v3584
  %v3587 = vmul.f32 %v3585, %v3585
  %v3588 = vsub.f32 %v3586, %v3587
  %v3589 = vld [vmem:[%s9] sm:$0x1]
  %v3590 = vadd.f32 %v3588, 1e-05
  %v3591 = vrsqrt.pop %v3590
  %v3592 = vmul.f32 %v3589, %v3591
  %v3593 = vld [vmem:[%s10] sm:$0x1]
  %v3594 = vmul.f32 %v3585, %v3592
  %v3595 = vsub.f32 %v3593, %v3594
  %v3597 = vlaneseq
  %v3598 = vshrl.u32 %v3597, 7
  %v3599 = vsub.s32 0, %v3598
  %v3600 = vrot.slane %v3592, %v3599
  %v3602 = vmul.f32 %v3564, %v3600
  %v3604 = vlaneseq
  %v3605 = vshrl.u32 %v3604, 7
  %v3606 = vsub.s32 0, %v3605
  %v3607 = vrot.slane %v3595, %v3606
  %v3609 = vadd.f32 %v3602, %v3607
  %v3610 = vmax.f32 %v3609, 0.0
  %v3611 = vld [vmem:[%s14] sm:$0xff]
  %3613 = vset.pattern.permute.xlu0 0
  %3614 = vperm.xlu0 %3613, %v3611
  %v3615 = vpop.permute.xlu0 %3614
  %v3617 = vmul.f32 %v3610, %v3615
  %v3618 = vpack.c.bf16 %v3617, %v3617
  %v3619 = vld [vmem:[%s4] sm:$0xf]
  %v3620 = vld [vmem:[%s4 + $0x4] sm:$0xf]
  %v3621 = vld [vmem:[%s4 + $0x8] sm:$0xf]
  %v3622 = vld [vmem:[%s4 + $0xc] sm:$0xf]
  %v3623 = vld [vmem:[%s11] sm:$0x1]
  %v3625 = vlaneseq
  %v3626 = vshrl.u32 %v3625, 7
  %v3627 = vsub.s32 0, %v3626
  %v3628 = vrot.slane %v3623, %v3627
  %v3634 = vunpack.c.l.b16 %v3619
  %v3635 = vunpack.c.l.b16 %v3620
  %v3636 = vunpack.c.l.b16 %v3621
  %v3637 = vunpack.c.l.b16 %v3622
  %v3638 = vpack.c.b16 %v3635, %v3634
  %v3639 = vpack.c.b16 %v3637, %v3636
  %v3643 = vsel %vm1175, %v3618, 0
  %3645 = vmatprep.subr.bf16.mxu0 0
  %3646 = vmatpush1.bf16.msra.mxu0 %v3638
  %3647 = vmatprep.subr.bf16.mxu0 0
  %3648 = vmatpush1.bf16.msra.mxu0 %v3639
  %3649 = vmatprep.subr.bf16.mxu0 0
  %3650 = vmatpush1.bf16.msra.mxu0 0
  %3651 = vmatprep.subr.bf16.mxu0 0
  %3652 = vmatpush1.bf16.msra.mxu0 0
  %3653 = vmatprep.subr.bf16.mxu0 0
  %3654 = vmatpush1.bf16.msra.mxu0 0
  %3655 = vmatprep.subr.bf16.mxu0 0
  %3656 = vmatpush1.bf16.msra.mxu0 0
  %3657 = vmatprep.subr.bf16.mxu0 0
  %3658 = vmatpush1.bf16.msra.mxu0 0
  %3659 = vmatprep.subr.bf16.mxu0 0
  %3660 = vmatpush1.bf16.msra.mxu0 0
  %3661 = vmatprep.subr.bf16.mxu0 0
  %3662 = vmatpush1.bf16.msra.mxu0 0
  %3663 = vmatprep.subr.bf16.mxu0 0
  %3664 = vmatpush1.bf16.msra.mxu0 0
  %3665 = vmatprep.subr.bf16.mxu0 0
  %3666 = vmatpush1.bf16.msra.mxu0 0
  %3667 = vmatprep.subr.bf16.mxu0 0
  %3668 = vmatpush1.bf16.msra.mxu0 0
  %3669 = vmatprep.subr.bf16.mxu0 0
  %3670 = vmatpush1.bf16.msra.mxu0 0
  %3671 = vmatprep.subr.bf16.mxu0 0
  %3672 = vmatpush1.bf16.msra.mxu0 0
  %3673 = vmatprep.subr.bf16.mxu0 0
  %3674 = vmatpush1.bf16.msra.mxu0 0
  %3675 = vmatprep.subr.bf16.mxu0 0
  %3676 = vmatpush1.bf16.msra.mxu0 0
  %3677 = vmatprep.mubr.bf16.mxu0 0
  %3678 = vmatmul.mubr.bf16.gmra.mrb[0].mxu0 %v3643
  %v3679 = vpop.f32.mrb[0].mxu0
  %v3680 = vadd.f32 %v3628, %v3679
  %v3681 = vpop.f32.mrb[0].mxu0
  %v3682 = vpop.f32.mrb[0].mxu0
  %v3683 = vpop.f32.mrb[0].mxu0
  %3684 = vdwg.mxu0
  %3685 = vst [vmem:[%s15] sm:$0xff] %v3680
  // Predicated region
  $region62: #{dqn_forward.1} parent=0 // pred_check
    _
  $region63: #{dqn_forward.1} parent=0 // pred_check_branch
    %3687 = sbr.rel (0) target = $region65
  $region64: #{dqn_forward.1} parent=0 // pred_region
    _
  $region65: #{dqn_forward.1} parent=0 // pred_fallthru
    _
  // Predicated region
  $region66: #{dqn_forward.1} parent=0 // pred_check
    _
  $region67: #{dqn_forward.1} parent=0 // pred_check_branch
    %3689 = sbr.rel (0) target = $region69
  $region68: #{dqn_forward.1} parent=0 // pred_region
    _
  $region69: #{dqn_forward.1} parent=0 // pred_fallthru
    _

</llo_original>
